<compile_context>
chip_gen: v6e
topology: v6e:2x2x1
jax: 0.10.0
libtpu: 0.0.40
codegen_flags: <defaults>
</compile_context>

<pallas_src>
import functools
import math

import jax
import jax.numpy as jnp
from jax.experimental import pallas as pl
from jax.experimental.pallas import tpu as pltpu

EPS = 1e-6
_VMEM_LIMIT = 32 * 1024 * 1024  # fits the scoped default on v5e/v6e/v7x


# ---------------------------------------------------------------------------
# Fused [LayerNorm +] Linear:  out = [LN(x)] @ W + b
# x is (rows, K) row-tiled; LN (when requested) is computed on the (tm, K)
# block in VMEM so the normalized activation never round-trips through HBM.
# ---------------------------------------------------------------------------
def _ln_matmul_kernel(alpha_ref, beta_ref, x_ref, w_ref, b_ref, o_ref, *, apply_ln):
    x = x_ref[...]
    if x.dtype != jnp.float32:          # guarded cast (no-op for f32 callers)
        x = x.astype(jnp.float32)
    if apply_ln:
        d = x.shape[-1]
        mean = jnp.sum(x, axis=-1, keepdims=True) * jnp.float32(1.0 / d)
        diff = x - mean
        # torch .std() is unbiased (divide by d - 1); eps is added to std.
        var = jnp.sum(diff * diff, axis=-1, keepdims=True) * jnp.float32(1.0 / (d - 1))
        scale = alpha_ref[0] * pl.reciprocal(jnp.sqrt(var) + jnp.float32(EPS),
                                             approx=True)
        x = diff * scale + beta_ref[0]
    acc = jnp.dot(x, w_ref[...], preferred_element_type=jnp.float32)
    acc = acc + b_ref[...].astype(jnp.float32)
    o_ref[...] = acc.astype(o_ref.dtype)


def ln_linear(x, w, b, *, ln=None):
    """(rows, K) -> (rows, N) = [LN(x)] @ w + b. LN fused when ln=(alpha, beta)."""
    rows, K = x.shape
    N = w.shape[1]
    tm = rows if rows <= 256 else 256          # 256 % 8 == 0
    tn = N if N <= 512 else 512                # multiples of 128: lane-dense stores
    apply_ln = ln is not None
    if apply_ln:
        alpha, beta = ln
    else:  # dummies; never read when apply_ln=False (static flag)
        alpha = jnp.ones((1,), jnp.float32)
        beta = jnp.zeros((1,), jnp.float32)
    return pl.pallas_call(
        functools.partial(_ln_matmul_kernel, apply_ln=apply_ln),
        out_shape=jax.ShapeDtypeStruct((rows, N), x.dtype),
        grid=(pl.cdiv(rows, tm), pl.cdiv(N, tn)),
        in_specs=[
            pl.BlockSpec(memory_space=pltpu.MemorySpace.SMEM),   # alpha (1,)
            pl.BlockSpec(memory_space=pltpu.MemorySpace.SMEM),   # beta  (1,)
            pl.BlockSpec((tm, K), lambda i, j: (i, 0)),
            pl.BlockSpec((K, tn), lambda i, j: (0, j)),
            pl.BlockSpec((1, tn), lambda i, j: (0, j)),
        ],
        out_specs=pl.BlockSpec((tm, tn), lambda i, j: (i, j)),
        compiler_params=pltpu.CompilerParams(
            dimension_semantics=("parallel", "parallel"),
            vmem_limit_bytes=_VMEM_LIMIT,
        ),
        cost_estimate=pl.CostEstimate(
            flops=2 * rows * N * K + (7 * rows * K if apply_ln else 0),
            transcendentals=(2 * rows) if apply_ln else 0,
            bytes_accessed=(rows * K + K * N + rows * N + N) * 4,
        ),
    )(alpha, beta, x, w, b.reshape(1, N))


# ---------------------------------------------------------------------------
# Fused multi-head attention sublayer: one grid step per batch element.
#   out = residual + concat_h(softmax(mask(q_h k_h^T / sqrt(dk))) v_h) @ wo + bo
# Q/K/V arrive as lane-contiguous (S, D) column blocks of larger projection
# tensors (selected purely via BlockSpec column indices -> no wrapper slices,
# no head transposes through HBM). All heads, the softmax, the output
# projection and the residual add happen inside the kernel.
# TODO(synk): for long sequences this should become a flash-attention style
# kernel with KV tiling; the dense per-batch score tile is fine at these sizes.
# ---------------------------------------------------------------------------
def _attn_kernel(q_ref, k_ref, v_ref, m_ref, res_ref, wo_ref, bo_ref, o_ref,
                 *, num_heads, sm_scale):
    q = q_ref[...].astype(jnp.float32)        # (Sq, D)
    k = k_ref[...].astype(jnp.float32)        # (Sk, D)
    v = v_ref[...].astype(jnp.float32)        # (Sk, D)
    masked = m_ref[...] == 0                  # (Sq, Sk)  (torch: fill -1e9 where 0)
    acc = res_ref[...].astype(jnp.float32) + bo_ref[...].astype(jnp.float32)
    d_model = q.shape[-1]
    dk = d_model // num_heads
    for h in range(num_heads):                # static unroll over heads
        sl = slice(h * dk, (h + 1) * dk)
        s = jax.lax.dot_general(q[:, sl], k[:, sl], (((1,), (1,)), ((), ())),
                                preferred_element_type=jnp.float32)
        s = s * jnp.float32(sm_scale)
        s = jnp.where(masked, jnp.float32(-1e9), s)
        s = s - jnp.max(s, axis=-1, keepdims=True)
        p = jnp.exp(s)
        l = jnp.sum(p, axis=-1, keepdims=True)
        # Normalization folded into a post-scale of the (Sq, dk) context
        # (exact divide -> attention weights still sum to 1).
        ctx = jnp.dot(p, v[:, sl], preferred_element_type=jnp.float32) / l
        acc = acc + jnp.dot(ctx, wo_ref[sl, :], preferred_element_type=jnp.float32)
    o_ref[...] = acc.astype(o_ref.dtype)


def fused_attention(q_src, kv_src, mask, residual, wo, bo, *,
                    num_heads, q_col, k_col, v_col):
    """q_src: (B, Sq, *) and kv_src: (B, Sk, *); q/k/v are D-wide column blocks
    q_col/k_col/v_col of those arrays. mask: (B, 1, Sq, Sk) int (0 = masked).
    Returns residual + MHA(...) @ wo + bo, shape (B, Sq, D)."""
    B, Sq, _ = q_src.shape
    Sk = kv_src.shape[1]
    D = residual.shape[-1]
    dk = D // num_heads
    kernel = functools.partial(_attn_kernel, num_heads=num_heads,
                               sm_scale=1.0 / math.sqrt(dk))
    return pl.pallas_call(
        kernel,
        out_shape=jax.ShapeDtypeStruct((B, Sq, D), residual.dtype),
        grid=(B,),
        in_specs=[
            pl.BlockSpec((None, Sq, D), lambda b: (b, 0, q_col)),
            pl.BlockSpec((None, Sk, D), lambda b: (b, 0, k_col)),
            pl.BlockSpec((None, Sk, D), lambda b: (b, 0, v_col)),
            pl.BlockSpec((None, None, Sq, Sk), lambda b: (b, 0, 0, 0)),
            pl.BlockSpec((None, Sq, D), lambda b: (b, 0, 0)),    # residual
            pl.BlockSpec((D, D), lambda b: (0, 0)),              # wo (kept resident)
            pl.BlockSpec((1, D), lambda b: (0, 0)),              # bo
        ],
        out_specs=pl.BlockSpec((None, Sq, D), lambda b: (b, 0, 0)),
        compiler_params=pltpu.CompilerParams(
            dimension_semantics=("parallel",),
            vmem_limit_bytes=_VMEM_LIMIT,
        ),
        cost_estimate=pl.CostEstimate(
            flops=B * (4 * Sq * Sk * D + 2 * Sq * D * D),
            transcendentals=B * num_heads * Sq * Sk,
            bytes_accessed=4 * (2 * B * Sq * D + 2 * B * Sk * D
                                + B * Sq * Sk + D * D + D + B * Sq * D),
        ),
    )(q_src, kv_src, kv_src, mask, residual, wo, bo.reshape(1, D))


# ---------------------------------------------------------------------------
# Fused feed-forward sublayer:
#   out = x + ReLU(LN(x) @ w1 + b1) @ w2 + b2
# Grid = (row tiles, d_ff chunks); the (tm, d_ff) ReLU intermediate lives only
# in VMEM and is contracted chunk-by-chunk into an f32 accumulator. LN(x) is
# computed once per row tile (chunk 0) into VMEM scratch.
# ---------------------------------------------------------------------------
def _ffn_kernel(alpha_ref, beta_ref, x_ref, w1_ref, b1_ref, w2_ref, b2_ref,
                o_ref, h_ref, acc_ref):
    j = pl.program_id(1)

    @pl.when(j == 0)
    def _():
        x = x_ref[...].astype(jnp.float32)
        d = x.shape[-1]
        mean = jnp.sum(x, axis=-1, keepdims=True) * jnp.float32(1.0 / d)
        diff = x - mean
        var = jnp.sum(diff * diff, axis=-1, keepdims=True) * jnp.float32(1.0 / (d - 1))
        scale = alpha_ref[0] * pl.reciprocal(jnp.sqrt(var) + jnp.float32(EPS),
                                             approx=True)
        h_ref[...] = diff * scale + beta_ref[0]
        acc_ref[...] = jnp.zeros_like(acc_ref)

    hidden = jnp.dot(h_ref[...], w1_ref[...], preferred_element_type=jnp.float32)
    hidden = jnp.maximum(hidden + b1_ref[...].astype(jnp.float32), jnp.float32(0.0))
    acc_ref[...] += jnp.dot(hidden, w2_ref[...], preferred_element_type=jnp.float32)

    @pl.when(j == pl.num_programs(1) - 1)
    def _():
        o_ref[...] = (acc_ref[...] + b2_ref[...].astype(jnp.float32)
                      + x_ref[...].astype(jnp.float32)).astype(o_ref.dtype)


def _ff_chunk(d_ff):
    for c in (512, 384, 256, 128):
        if d_ff >= c and d_ff % c == 0:
            return c
    return d_ff


def fused_ffn(x, w1, b1, w2, b2, ln):
    rows, D = x.shape
    d_ff = w1.shape[1]
    tm = rows if rows <= 256 else 256
    tf = _ff_chunk(d_ff)
    alpha, beta = ln
    return pl.pallas_call(
        _ffn_kernel,
        out_shape=jax.ShapeDtypeStruct((rows, D), x.dtype),
        grid=(pl.cdiv(rows, tm), d_ff // tf),
        in_specs=[
            pl.BlockSpec(memory_space=pltpu.MemorySpace.SMEM),   # alpha (1,)
            pl.BlockSpec(memory_space=pltpu.MemorySpace.SMEM),   # beta  (1,)
            pl.BlockSpec((tm, D), lambda i, j: (i, 0)),          # x (LN + residual)
            pl.BlockSpec((D, tf), lambda i, j: (0, j)),          # w1 chunk
            pl.BlockSpec((1, tf), lambda i, j: (0, j)),          # b1 chunk
            pl.BlockSpec((tf, D), lambda i, j: (j, 0)),          # w2 chunk
            pl.BlockSpec((1, D), lambda i, j: (0, 0)),           # b2
        ],
        out_specs=pl.BlockSpec((tm, D), lambda i, j: (i, 0)),
        scratch_shapes=[pltpu.VMEM((tm, D), jnp.float32),        # LN(x)
                        pltpu.VMEM((tm, D), jnp.float32)],       # accumulator
        compiler_params=pltpu.CompilerParams(
            dimension_semantics=("parallel", "arbitrary"),
            vmem_limit_bytes=_VMEM_LIMIT,
        ),
        cost_estimate=pl.CostEstimate(
            flops=4 * rows * D * d_ff + 9 * rows * D,
            transcendentals=2 * rows,
            bytes_accessed=4 * (2 * rows * D + 2 * D * d_ff + d_ff + D),
        ),
    )(alpha, beta, x, w1, b1.reshape(1, d_ff), w2, b2.reshape(1, D))


# ---------------------------------------------------------------------------
# DecoderBlock forward
# ---------------------------------------------------------------------------
@functools.partial(jax.jit, static_argnames=("num_heads",))
def decoder_block_forward(x, encoder_output, src_mask, tgt_mask, params, num_heads):
    B, S, D = x.shape
    Senc = encoder_output.shape[1]
    attn = params["attn"]   # shared by both attention sublayers (ref. forward)
    (a0, g0), (a1, g1), (a2, g2) = params["ln"]
    ffn = params["ffn"]

    xf = x.reshape(B * S, D)

    # Sublayer 0: self-attention. LN0 fused into the single fused QKV matmul;
    # heads + softmax + wo + bo + residual fused into one attention kernel.
    qkv = ln_linear(xf, attn["wqkv"], attn["bqkv"], ln=(a0, g0)).reshape(B, S, 3 * D)
    x1 = fused_attention(qkv, qkv, tgt_mask, x, attn["wo"], attn["bo"],
                         num_heads=num_heads, q_col=0, k_col=1, v_col=2)

    # Sublayer 1: "cross" attention (reference reuses the self-attention
    # weights). q = LN1(x1) @ wq; k,v = encoder_output @ [wk|wv] (no LN).
    q1 = ln_linear(x1.reshape(B * S, D), attn["wq"], attn["bq"],
                   ln=(a1, g1)).reshape(B, S, D)
    kv1 = ln_linear(encoder_output.reshape(B * Senc, D), attn["wkv"],
                    attn["bkv"]).reshape(B, Senc, 2 * D)
    x2 = fused_attention(q1, kv1, src_mask, x1, attn["wo"], attn["bo"],
                         num_heads=num_heads, q_col=0, k_col=0, v_col=1)

    # Sublayer 2: feed-forward, fully fused (LN2 + w1 + ReLU + w2 + residual).
    x3 = fused_ffn(x2.reshape(B * S, D), ffn["w1"], ffn["b1"],
                   ffn["w2"], ffn["b2"], ln=(a2, g2))
    return x3.reshape(B, S, D)


def init_params(key, d_model, d_ff):
    def lin_init(k, din, dout):
        kw, kb = jax.random.split(k)
        lim = 1.0 / math.sqrt(din)
        w = jax.random.uniform(kw, (din, dout), jnp.float32, -lim, lim)
        b = jax.random.uniform(kb, (dout,), jnp.float32, -lim, lim)
        return w, b

    keys = jax.random.split(key, 6)
    wq, bq = lin_init(keys[0], d_model, d_model)
    wk, bk = lin_init(keys[1], d_model, d_model)
    wv, bv = lin_init(keys[2], d_model, d_model)
    wo, bo = lin_init(keys[3], d_model, d_model)
    w1, b1 = lin_init(keys[4], d_model, d_ff)
    w2, b2 = lin_init(keys[5], d_ff, d_model)
    ln = tuple((jnp.ones((1,), jnp.float32), jnp.zeros((1,), jnp.float32))
               for _ in range(3))
    # TODO(synk): the reference DecoderBlock.forward never calls
    # cross_attention_block, so its weights are not materialized here.
    return {
        "attn": dict(
            wq=wq, bq=bq, wk=wk, bk=bk, wv=wv, bv=bv, wo=wo, bo=bo,
            # Fused projection weights (precomputed once, not per step).
            wqkv=jnp.concatenate([wq, wk, wv], axis=1),
            bqkv=jnp.concatenate([bq, bk, bv]),
            wkv=jnp.concatenate([wk, wv], axis=1),
            bkv=jnp.concatenate([bk, bv]),
        ),
        "ffn": dict(w1=w1, b1=b1, w2=w2, b2=b2),
        "ln": ln,
    }


def _reference_decoder_block(x, enc, src_mask, tgt_mask, params, num_heads):
    def ln(t, a, b):
        mean = jnp.mean(t, axis=-1, keepdims=True)
        std = jnp.std(t, axis=-1, keepdims=True, ddof=1)
        return a * (t - mean) / (std + EPS) + b

    def mha(q, k, v, mask, p):
        B, Sq, D = q.shape
        Sk = k.shape[1]
        dk = D // num_heads
        qq = (q @ p["wq"] + p["bq"]).reshape(B, Sq, num_heads, dk).transpose(0, 2, 1, 3)
        kk = (k @ p["wk"] + p["bk"]).reshape(B, Sk, num_heads, dk).transpose(0, 2, 1, 3)
        vv = (v @ p["wv"] + p["bv"]).reshape(B, Sk, num_heads, dk).transpose(0, 2, 1, 3)
        s = qq @ kk.transpose(0, 1, 3, 2) / math.sqrt(dk)
        s = jnp.where(mask == 0, -1e9, s)
        a = jax.nn.softmax(s, axis=-1)
        o = (a @ vv).transpose(0, 2, 1, 3).reshape(B, Sq, D)
        return o @ p["wo"] + p["bo"]

    attn = params["attn"]
    (a0, b0), (a1, b1), (a2, b2) = params["ln"]
    ffn = params["ffn"]
    h0 = ln(x, a0, b0)
    x1 = x + mha(h0, h0, h0, tgt_mask, attn)
    x2 = x1 + mha(ln(x1, a1, b1), enc, enc, src_mask, attn)
    h2 = ln(x2, a2, b2)
    x3 = x2 + (jax.nn.relu(h2 @ ffn["w1"] + ffn["b1"]) @ ffn["w2"] + ffn["b2"])
    return x3


if __name__ == "__main__":
    key = jax.random.PRNGKey(0)
    k_param, k_x, k_enc = jax.random.split(key, 3)

    B, S_DEC, S_ENC = 2, 8, 16
    D_MODEL, N_HEADS, D_FF = 128, 4, 256   # multiples of 128 -> lane-dense stores

    params = init_params(k_param, D_MODEL, D_FF)
    x = jax.random.normal(k_x, (B, S_DEC, D_MODEL), dtype=jnp.float32)
    encoder_output = jax.random.normal(k_enc, (B, S_ENC, D_MODEL), dtype=jnp.float32)
    tgt_mask = jnp.broadcast_to(
        jnp.tril(jnp.ones((S_DEC, S_DEC), jnp.int32))[None, None],
        (B, 1, S_DEC, S_DEC))
    src_mask = jnp.ones((B, 1, S_DEC, S_ENC), jnp.int32)

    out = decoder_block_forward(x, encoder_output, src_mask, tgt_mask, params,
                                num_heads=N_HEADS)
    out = jax.block_until_ready(out)

    ref = _reference_decoder_block(x, encoder_output, src_mask, tgt_mask, params,
                                   N_HEADS)
    assert out.shape == (B, S_DEC, D_MODEL)
    max_err = float(jnp.max(jnp.abs(out - ref)))
    # Tolerance covers the approx EUP reciprocal in the fused LayerNorms and
    # MXU default matmul precision (both kernel and reference run on TPU).
    assert max_err < 1e-2, f"max abs err = {max_err}"
    print("KERNEL_OK")
</pallas_src>

<mosaic_0001>
module attributes {stable_mosaic.version = 11 : i64} {
  func.func @_ln_matmul_kernel(%arg0: i32, %arg1: i32, %arg2: memref<1xf32, #tpu.memory_space<smem>>, %arg3: memref<1xf32, #tpu.memory_space<smem>>, %arg4: memref<16x128xf32, #tpu.memory_space<vmem>>, %arg5: memref<128x384xf32, #tpu.memory_space<vmem>>, %arg6: memref<1x384xf32, #tpu.memory_space<vmem>>, %arg7: memref<16x384xf32, #tpu.memory_space<vmem>>) attributes {dimension_semantics = [#tpu.dimension_semantics<parallel>, #tpu.dimension_semantics<parallel>], iteration_bounds = array<i64: 1, 1>, scalar_prefetch = 0 : i64, scratch_operands = 0 : i64, tpu.core_type = #tpu.core_type<tc>, window_params = [{transform_indices = @transform_0, window_bounds = array<i64: 1>}, {transform_indices = @transform_1, window_bounds = array<i64: 1>}, {transform_indices = @transform_2, window_bounds = array<i64: 16, 128>}, {transform_indices = @transform_3, window_bounds = array<i64: 128, 384>}, {transform_indices = @transform_4, window_bounds = array<i64: 1, 384>}, {transform_indices = @transform_5, window_bounds = array<i64: 16, 384>}]} {
    %c0 = arith.constant 0 : index
    %c0_0 = arith.constant 0 : index
    %0 = vector.load %arg4[%c0, %c0_0] : memref<16x128xf32, #tpu.memory_space<vmem>>, vector<16x128xf32>
    %cst = arith.constant dense<0.000000e+00> : vector<16xf32>
    %1 = vector.multi_reduction <add>, %0, %cst [1] : vector<16x128xf32> to vector<16xf32>
    %2 = vector.shape_cast %1 : vector<16xf32> to vector<16x1xf32>
    %cst_1 = arith.constant 7.812500e-03 : f32
    %3 = vector.broadcast %cst_1 : f32 to vector<16x1xf32>
    %4 = arith.mulf %2, %3 : vector<16x1xf32>
    %5 = vector.broadcast %4 : vector<16x1xf32> to vector<16x128xf32>
    %6 = arith.subf %0, %5 : vector<16x128xf32>
    %7 = arith.mulf %6, %6 : vector<16x128xf32>
    %cst_2 = arith.constant dense<0.000000e+00> : vector<16xf32>
    %8 = vector.multi_reduction <add>, %7, %cst_2 [1] : vector<16x128xf32> to vector<16xf32>
    %9 = vector.shape_cast %8 : vector<16xf32> to vector<16x1xf32>
    %cst_3 = arith.constant 0.00787401571 : f32
    %10 = vector.broadcast %cst_3 : f32 to vector<16x1xf32>
    %11 = arith.mulf %9, %10 : vector<16x1xf32>
    %c0_4 = arith.constant 0 : index
    %12 = memref.load %arg2[%c0_4] : memref<1xf32, #tpu.memory_space<smem>>
    %13 = math.sqrt %11 : vector<16x1xf32>
    %cst_5 = arith.constant 9.99999997E-7 : f32
    %14 = vector.broadcast %cst_5 : f32 to vector<16x1xf32>
    %15 = arith.addf %13, %14 : vector<16x1xf32>
    %16 = tpu.reciprocal %15 {approx = true} : vector<16x1xf32> -> vector<16x1xf32>
    %17 = vector.broadcast %12 : f32 to vector<16x1xf32>
    %18 = arith.mulf %17, %16 : vector<16x1xf32>
    %19 = vector.broadcast %18 : vector<16x1xf32> to vector<16x128xf32>
    %20 = arith.mulf %6, %19 : vector<16x128xf32>
    %c0_6 = arith.constant 0 : index
    %21 = memref.load %arg3[%c0_6] : memref<1xf32, #tpu.memory_space<smem>>
    %22 = vector.broadcast %21 : f32 to vector<16x128xf32>
    %23 = arith.addf %20, %22 : vector<16x128xf32>
    %c0_7 = arith.constant 0 : index
    %c0_8 = arith.constant 0 : index
    %24 = vector.load %arg5[%c0_7, %c0_8] : memref<128x384xf32, #tpu.memory_space<vmem>>, vector<128x384xf32>
    %cst_9 = arith.constant dense<0.000000e+00> : vector<16x384xf32>
    %25 = tpu.matmul %23, %24, %cst_9 {dimension_numbers = #tpu.dot_dimension_numbers<[1], [0], [0], [1], [0, 0, 1, 1], [], []>} : vector<16x128xf32>, vector<128x384xf32>, vector<16x384xf32> -> vector<16x384xf32>
    %c0_10 = arith.constant 0 : index
    %c0_11 = arith.constant 0 : index
    %26 = vector.load %arg6[%c0_10, %c0_11] : memref<1x384xf32, #tpu.memory_space<vmem>>, vector<1x384xf32>
    %27 = vector.broadcast %26 : vector<1x384xf32> to vector<16x384xf32>
    %28 = arith.addf %25, %27 : vector<16x384xf32>
    %c0_12 = arith.constant 0 : index
    %c0_13 = arith.constant 0 : index
    %29 = vector.load %arg7[%c0_12, %c0_13] : memref<16x384xf32, #tpu.memory_space<vmem>>, vector<16x384xf32>
    tpu.vector_store %arg7[%c0_12, %c0_13], %28 {strides = array<i32>} : memref<16x384xf32, #tpu.memory_space<vmem>>, vector<16x384xf32>,
    return
  }
  func.func @transform_0(%arg0: i32, %arg1: i32) -> i32 {
    %c0_i32 = arith.constant 0 : i32
    %c0_i32_0 = arith.constant 0 : i32
    return %c0_i32 : i32
  }
  func.func @transform_1(%arg0: i32, %arg1: i32) -> i32 {
    %c0_i32 = arith.constant 0 : i32
    %c0_i32_0 = arith.constant 0 : i32
    return %c0_i32 : i32
  }
  func.func @transform_2(%arg0: i32, %arg1: i32) -> (i32, i32) {
    %c0_i32 = arith.constant 0 : i32
    %c0_i32_0 = arith.constant 0 : i32
    return %arg0, %c0_i32 : i32, i32
  }
  func.func @transform_3(%arg0: i32, %arg1: i32) -> (i32, i32) {
    %c0_i32 = arith.constant 0 : i32
    %c0_i32_0 = arith.constant 0 : i32
    return %c0_i32, %arg1 : i32, i32
  }
  func.func @transform_4(%arg0: i32, %arg1: i32) -> (i32, i32) {
    %c0_i32 = arith.constant 0 : i32
    %c0_i32_0 = arith.constant 0 : i32
    return %c0_i32, %arg1 : i32, i32
  }
  func.func @transform_5(%arg0: i32, %arg1: i32) -> (i32, i32) {
    %c0_i32 = arith.constant 0 : i32
    return %arg0, %arg1 : i32, i32
  }
}

module attributes {stable_mosaic.version = 11 : i64} {
  func.func @_ln_matmul_kernel(%arg0: i32, %arg1: i32, %arg2: memref<1xf32, #tpu.memory_space<smem>>, %arg3: memref<1xf32, #tpu.memory_space<smem>>, %arg4: memref<16x128xf32, #tpu.memory_space<vmem>>, %arg5: memref<128x128xf32, #tpu.memory_space<vmem>>, %arg6: memref<1x128xf32, #tpu.memory_space<vmem>>, %arg7: memref<16x128xf32, #tpu.memory_space<vmem>>) attributes {dimension_semantics = [#tpu.dimension_semantics<parallel>, #tpu.dimension_semantics<parallel>], iteration_bounds = array<i64: 1, 1>, scalar_prefetch = 0 : i64, scratch_operands = 0 : i64, tpu.core_type = #tpu.core_type<tc>, window_params = [{transform_indices = @transform_0, window_bounds = array<i64: 1>}, {transform_indices = @transform_1, window_bounds = array<i64: 1>}, {transform_indices = @transform_2, window_bounds = array<i64: 16, 128>}, {transform_indices = @transform_3, window_bounds = array<i64: 128, 128>}, {transform_indices = @transform_4, window_bounds = array<i64: 1, 128>}, {transform_indices = @transform_5, window_bounds = array<i64: 16, 128>}]} {
    %c0 = arith.constant 0 : index
    %c0_0 = arith.constant 0 : index
    %0 = vector.load %arg4[%c0, %c0_0] : memref<16x128xf32, #tpu.memory_space<vmem>>, vector<16x128xf32>
    %cst = arith.constant dense<0.000000e+00> : vector<16xf32>
    %1 = vector.multi_reduction <add>, %0, %cst [1] : vector<16x128xf32> to vector<16xf32>
    %2 = vector.shape_cast %1 : vector<16xf32> to vector<16x1xf32>
    %cst_1 = arith.constant 7.812500e-03 : f32
    %3 = vector.broadcast %cst_1 : f32 to vector<16x1xf32>
    %4 = arith.mulf %2, %3 : vector<16x1xf32>
    %5 = vector.broadcast %4 : vector<16x1xf32> to vector<16x128xf32>
    %6 = arith.subf %0, %5 : vector<16x128xf32>
    %7 = arith.mulf %6, %6 : vector<16x128xf32>
    %cst_2 = arith.constant dense<0.000000e+00> : vector<16xf32>
    %8 = vector.multi_reduction <add>, %7, %cst_2 [1] : vector<16x128xf32> to vector<16xf32>
    %9 = vector.shape_cast %8 : vector<16xf32> to vector<16x1xf32>
    %cst_3 = arith.constant 0.00787401571 : f32
    %10 = vector.broadcast %cst_3 : f32 to vector<16x1xf32>
    %11 = arith.mulf %9, %10 : vector<16x1xf32>
    %c0_4 = arith.constant 0 : index
    %12 = memref.load %arg2[%c0_4] : memref<1xf32, #tpu.memory_space<smem>>
    %13 = math.sqrt %11 : vector<16x1xf32>
    %cst_5 = arith.constant 9.99999997E-7 : f32
    %14 = vector.broadcast %cst_5 : f32 to vector<16x1xf32>
    %15 = arith.addf %13, %14 : vector<16x1xf32>
    %16 = tpu.reciprocal %15 {approx = true} : vector<16x1xf32> -> vector<16x1xf32>
    %17 = vector.broadcast %12 : f32 to vector<16x1xf32>
    %18 = arith.mulf %17, %16 : vector<16x1xf32>
    %19 = vector.broadcast %18 : vector<16x1xf32> to vector<16x128xf32>
    %20 = arith.mulf %6, %19 : vector<16x128xf32>
    %c0_6 = arith.constant 0 : index
    %21 = memref.load %arg3[%c0_6] : memref<1xf32, #tpu.memory_space<smem>>
    %22 = vector.broadcast %21 : f32 to vector<16x128xf32>
    %23 = arith.addf %20, %22 : vector<16x128xf32>
    %c0_7 = arith.constant 0 : index
    %c0_8 = arith.constant 0 : index
    %24 = vector.load %arg5[%c0_7, %c0_8] : memref<128x128xf32, #tpu.memory_space<vmem>>, vector<128x128xf32>
    %cst_9 = arith.constant dense<0.000000e+00> : vector<16x128xf32>
    %25 = tpu.matmul %23, %24, %cst_9 {dimension_numbers = #tpu.dot_dimension_numbers<[1], [0], [0], [1], [0, 0, 1, 1], [], []>} : vector<16x128xf32>, vector<128x128xf32>, vector<16x128xf32> -> vector<16x128xf32>
    %c0_10 = arith.constant 0 : index
    %c0_11 = arith.constant 0 : index
    %26 = vector.load %arg6[%c0_10, %c0_11] : memref<1x128xf32, #tpu.memory_space<vmem>>, vector<1x128xf32>
    %27 = vector.broadcast %26 : vector<1x128xf32> to vector<16x128xf32>
    %28 = arith.addf %25, %27 : vector<16x128xf32>
    %c0_12 = arith.constant 0 : index
    %c0_13 = arith.constant 0 : index
    %29 = vector.load %arg7[%c0_12, %c0_13] : memref<16x128xf32, #tpu.memory_space<vmem>>, vector<16x128xf32>
    tpu.vector_store %arg7[%c0_12, %c0_13], %28 {strides = array<i32>} : memref<16x128xf32, #tpu.memory_space<vmem>>, vector<16x128xf32>,
    return
  }
  func.func @transform_0(%arg0: i32, %arg1: i32) -> i32 {
    %c0_i32 = arith.constant 0 : i32
    %c0_i32_0 = arith.constant 0 : i32
    return %c0_i32 : i32
  }
  func.func @transform_1(%arg0: i32, %arg1: i32) -> i32 {
    %c0_i32 = arith.constant 0 : i32
    %c0_i32_0 = arith.constant 0 : i32
    return %c0_i32 : i32
  }
  func.func @transform_2(%arg0: i32, %arg1: i32) -> (i32, i32) {
    %c0_i32 = arith.constant 0 : i32
    %c0_i32_0 = arith.constant 0 : i32
    return %arg0, %c0_i32 : i32, i32
  }
  func.func @transform_3(%arg0: i32, %arg1: i32) -> (i32, i32) {
    %c0_i32 = arith.constant 0 : i32
    %c0_i32_0 = arith.constant 0 : i32
    return %c0_i32, %arg1 : i32, i32
  }
  func.func @transform_4(%arg0: i32, %arg1: i32) -> (i32, i32) {
    %c0_i32 = arith.constant 0 : i32
    %c0_i32_0 = arith.constant 0 : i32
    return %c0_i32, %arg1 : i32, i32
  }
  func.func @transform_5(%arg0: i32, %arg1: i32) -> (i32, i32) {
    %c0_i32 = arith.constant 0 : i32
    return %arg0, %arg1 : i32, i32
  }
}

module attributes {stable_mosaic.version = 11 : i64} {
  func.func @_attn_kernel(%arg0: i32, %arg1: memref<1x8x128xf32, #tpu.memory_space<vmem>>, %arg2: memref<1x8x128xf32, #tpu.memory_space<vmem>>, %arg3: memref<1x8x128xf32, #tpu.memory_space<vmem>>, %arg4: memref<1x1x8x8xi32, #tpu.memory_space<vmem>>, %arg5: memref<1x8x128xf32, #tpu.memory_space<vmem>>, %arg6: memref<128x128xf32, #tpu.memory_space<vmem>>, %arg7: memref<1x128xf32, #tpu.memory_space<vmem>>, %arg8: memref<1x8x128xf32, #tpu.memory_space<vmem>>) attributes {dimension_semantics = [#tpu.dimension_semantics<parallel>], iteration_bounds = array<i64: 2>, scalar_prefetch = 0 : i64, scratch_operands = 0 : i64, tpu.core_type = #tpu.core_type<tc>, window_params = [{transform_indices = @transform_0, window_bounds = array<i64: 1, 8, 128>}, {transform_indices = @transform_1, window_bounds = array<i64: 1, 8, 128>}, {transform_indices = @transform_2, window_bounds = array<i64: 1, 8, 128>}, {transform_indices = @transform_3, window_bounds = array<i64: 1, 1, 8, 8>}, {transform_indices = @transform_4, window_bounds = array<i64: 1, 8, 128>}, {pipeline_mode = #tpu.pipeline_mode<synchronous>, transform_indices = @transform_5, window_bounds = array<i64: 128, 128>}, {pipeline_mode = #tpu.pipeline_mode<synchronous>, transform_indices = @transform_6, window_bounds = array<i64: 1, 128>}, {transform_indices = @transform_7, window_bounds = array<i64: 1, 8, 128>}]} {
    %c0 = arith.constant 0 : index
    %c0_0 = arith.constant 0 : index
    %c0_1 = arith.constant 0 : index
    %0 = vector.load %arg1[%c0, %c0_0, %c0_1] : memref<1x8x128xf32, #tpu.memory_space<vmem>>, vector<1x8x128xf32>
    %1 = vector.shape_cast %0 : vector<1x8x128xf32> to vector<8x128xf32>
    %c0_2 = arith.constant 0 : index
    %c0_3 = arith.constant 0 : index
    %c0_4 = arith.constant 0 : index
    %2 = vector.load %arg2[%c0_2, %c0_3, %c0_4] : memref<1x8x128xf32, #tpu.memory_space<vmem>>, vector<1x8x128xf32>
    %3 = vector.shape_cast %2 : vector<1x8x128xf32> to vector<8x128xf32>
    %c0_5 = arith.constant 0 : index
    %c0_6 = arith.constant 0 : index
    %c0_7 = arith.constant 0 : index
    %4 = vector.load %arg3[%c0_5, %c0_6, %c0_7] : memref<1x8x128xf32, #tpu.memory_space<vmem>>, vector<1x8x128xf32>
    %5 = vector.shape_cast %4 : vector<1x8x128xf32> to vector<8x128xf32>
    %c0_8 = arith.constant 0 : index
    %c0_9 = arith.constant 0 : index
    %c0_10 = arith.constant 0 : index
    %c0_11 = arith.constant 0 : index
    %6 = vector.load %arg4[%c0_8, %c0_9, %c0_10, %c0_11] : memref<1x1x8x8xi32, #tpu.memory_space<vmem>>, vector<1x1x8x8xi32>
    %7 = vector.shape_cast %6 : vector<1x1x8x8xi32> to vector<8x8xi32>
    %c0_i32 = arith.constant 0 : i32
    %8 = vector.broadcast %c0_i32 : i32 to vector<8x8xi32>
    %9 = arith.cmpi eq, %7, %8 : vector<8x8xi32>
    %c0_12 = arith.constant 0 : index
    %c0_13 = arith.constant 0 : index
    %c0_14 = arith.constant 0 : index
    %10 = vector.load %arg5[%c0_12, %c0_13, %c0_14] : memref<1x8x128xf32, #tpu.memory_space<vmem>>, vector<1x8x128xf32>
    %11 = vector.shape_cast %10 : vector<1x8x128xf32> to vector<8x128xf32>
    %c0_15 = arith.constant 0 : index
    %c0_16 = arith.constant 0 : index
    %12 = vector.load %arg7[%c0_15, %c0_16] : memref<1x128xf32, #tpu.memory_space<vmem>>, vector<1x128xf32>
    %13 = vector.broadcast %12 : vector<1x128xf32> to vector<8x128xf32>
    %14 = arith.addf %11, %13 : vector<8x128xf32>
    %15 = vector.extract_strided_slice %1 {offsets = [0, 0], sizes = [8, 32], strides = [1, 1]} : vector<8x128xf32> to vector<8x32xf32>
    %16 = vector.extract_strided_slice %3 {offsets = [0, 0], sizes = [8, 32], strides = [1, 1]} : vector<8x128xf32> to vector<8x32xf32>
    %cst = arith.constant dense<0.000000e+00> : vector<8x8xf32>
    %17 = tpu.matmul %15, %16, %cst {dimension_numbers = #tpu.dot_dimension_numbers<[1], [1], [0], [0], [0, 0, 1, 0], [], []>} : vector<8x32xf32>, vector<8x32xf32>, vector<8x8xf32> -> vector<8x8xf32>
    %cst_17 = arith.constant 0.176776692 : f32
    %18 = vector.broadcast %cst_17 : f32 to vector<8x8xf32>
    %19 = arith.mulf %17, %18 : vector<8x8xf32>
    %cst_18 = arith.constant -1.000000e+09 : f32
    %20 = vector.broadcast %cst_18 : f32 to vector<8x8xf32>
    %21 = arith.select %9, %20, %19 : vector<8x8xi1>, vector<8x8xf32>
    %cst_19 = arith.constant dense<0xFF800000> : vector<8xf32>
    %22 = vector.multi_reduction <maximumf>, %21, %cst_19 [1] : vector<8x8xf32> to vector<8xf32>
    %23 = vector.shape_cast %22 : vector<8xf32> to vector<8x1xf32>
    %24 = vector.broadcast %23 : vector<8x1xf32> to vector<8x8xf32>
    %25 = arith.subf %21, %24 : vector<8x8xf32>
    %26 = math.exp %25 : vector<8x8xf32>
    %cst_20 = arith.constant dense<0.000000e+00> : vector<8xf32>
    %27 = vector.multi_reduction <add>, %26, %cst_20 [1] : vector<8x8xf32> to vector<8xf32>
    %28 = vector.shape_cast %27 : vector<8xf32> to vector<8x1xf32>
    %29 = vector.extract_strided_slice %5 {offsets = [0, 0], sizes = [8, 32], strides = [1, 1]} : vector<8x128xf32> to vector<8x32xf32>
    %cst_21 = arith.constant dense<0.000000e+00> : vector<8x32xf32>
    %30 = tpu.matmul %26, %29, %cst_21 {dimension_numbers = #tpu.dot_dimension_numbers<[1], [0], [0], [1], [0, 0, 1, 1], [], []>} : vector<8x8xf32>, vector<8x32xf32>, vector<8x32xf32> -> vector<8x32xf32>
    %31 = vector.broadcast %28 : vector<8x1xf32> to vector<8x32xf32>
    %32 = arith.divf %30, %31 : vector<8x32xf32>
    %c0_22 = arith.constant 0 : index
    %c0_23 = arith.constant 0 : index
    %33 = vector.load %arg6[%c0_22, %c0_23] : memref<128x128xf32, #tpu.memory_space<vmem>>, vector<32x128xf32>
    %cst_24 = arith.constant dense<0.000000e+00> : vector<8x128xf32>
    %34 = tpu.matmul %32, %33, %cst_24 {dimension_numbers = #tpu.dot_dimension_numbers<[1], [0], [0], [1], [0, 0, 1, 1], [], []>} : vector<8x32xf32>, vector<32x128xf32>, vector<8x128xf32> -> vector<8x128xf32>
    %35 = arith.addf %14, %34 : vector<8x128xf32>
    %36 = vector.extract_strided_slice %1 {offsets = [0, 32], sizes = [8, 32], strides = [1, 1]} : vector<8x128xf32> to vector<8x32xf32>
    %37 = vector.extract_strided_slice %3 {offsets = [0, 32], sizes = [8, 32], strides = [1, 1]} : vector<8x128xf32> to vector<8x32xf32>
    %cst_25 = arith.constant dense<0.000000e+00> : vector<8x8xf32>
    %38 = tpu.matmul %36, %37, %cst_25 {dimension_numbers = #tpu.dot_dimension_numbers<[1], [1], [0], [0], [0, 0, 1, 0], [], []>} : vector<8x32xf32>, vector<8x32xf32>, vector<8x8xf32> -> vector<8x8xf32>
    %cst_26 = arith.constant 0.176776692 : f32
    %39 = vector.broadcast %cst_26 : f32 to vector<8x8xf32>
    %40 = arith.mulf %38, %39 : vector<8x8xf32>
    %cst_27 = arith.constant -1.000000e+09 : f32
    %41 = vector.broadcast %cst_27 : f32 to vector<8x8xf32>
    %42 = arith.select %9, %41, %40 : vector<8x8xi1>, vector<8x8xf32>
    %cst_28 = arith.constant dense<0xFF800000> : vector<8xf32>
    %43 = vector.multi_reduction <maximumf>, %42, %cst_28 [1] : vector<8x8xf32> to vector<8xf32>
    %44 = vector.shape_cast %43 : vector<8xf32> to vector<8x1xf32>
    %45 = vector.broadcast %44 : vector<8x1xf32> to vector<8x8xf32>
    %46 = arith.subf %42, %45 : vector<8x8xf32>
    %47 = math.exp %46 : vector<8x8xf32>
    %cst_29 = arith.constant dense<0.000000e+00> : vector<8xf32>
    %48 = vector.multi_reduction <add>, %47, %cst_29 [1] : vector<8x8xf32> to vector<8xf32>
    %49 = vector.shape_cast %48 : vector<8xf32> to vector<8x1xf32>
    %50 = vector.extract_strided_slice %5 {offsets = [0, 32], sizes = [8, 32], strides = [1, 1]} : vector<8x128xf32> to vector<8x32xf32>
    %cst_30 = arith.constant dense<0.000000e+00> : vector<8x32xf32>
    %51 = tpu.matmul %47, %50, %cst_30 {dimension_numbers = #tpu.dot_dimension_numbers<[1], [0], [0], [1], [0, 0, 1, 1], [], []>} : vector<8x8xf32>, vector<8x32xf32>, vector<8x32xf32> -> vector<8x32xf32>
    %52 = vector.broadcast %49 : vector<8x1xf32> to vector<8x32xf32>
    %53 = arith.divf %51, %52 : vector<8x32xf32>
    %c32 = arith.constant 32 : index
    %c0_31 = arith.constant 0 : index
    %54 = vector.load %arg6[%c32, %c0_31] : memref<128x128xf32, #tpu.memory_space<vmem>>, vector<32x128xf32>
    %cst_32 = arith.constant dense<0.000000e+00> : vector<8x128xf32>
    %55 = tpu.matmul %53, %54, %cst_32 {dimension_numbers = #tpu.dot_dimension_numbers<[1], [0], [0], [1], [0, 0, 1, 1], [], []>} : vector<8x32xf32>, vector<32x128xf32>, vector<8x128xf32> -> vector<8x128xf32>
    %56 = arith.addf %35, %55 : vector<8x128xf32>
    %57 = vector.extract_strided_slice %1 {offsets = [0, 64], sizes = [8, 32], strides = [1, 1]} : vector<8x128xf32> to vector<8x32xf32>
    %58 = vector.extract_strided_slice %3 {offsets = [0, 64], sizes = [8, 32], strides = [1, 1]} : vector<8x128xf32> to vector<8x32xf32>
    %cst_33 = arith.constant dense<0.000000e+00> : vector<8x8xf32>
    %59 = tpu.matmul %57, %58, %cst_33 {dimension_numbers = #tpu.dot_dimension_numbers<[1], [1], [0], [0], [0, 0, 1, 0], [], []>} : vector<8x32xf32>, vector<8x32xf32>, vector<8x8xf32> -> vector<8x8xf32>
    %cst_34 = arith.constant 0.176776692 : f32
    %60 = vector.broadcast %cst_34 : f32 to vector<8x8xf32>
    %61 = arith.mulf %59, %60 : vector<8x8xf32>
    %cst_35 = arith.constant -1.000000e+09 : f32
    %62 = vector.broadcast %cst_35 : f32 to vector<8x8xf32>
    %63 = arith.select %9, %62, %61 : vector<8x8xi1>, vector<8x8xf32>
    %cst_36 = arith.constant dense<0xFF800000> : vector<8xf32>
    %64 = vector.multi_reduction <maximumf>, %63, %cst_36 [1] : vector<8x8xf32> to vector<8xf32>
    %65 = vector.shape_cast %64 : vector<8xf32> to vector<8x1xf32>
    %66 = vector.broadcast %65 : vector<8x1xf32> to vector<8x8xf32>
    %67 = arith.subf %63, %66 : vector<8x8xf32>
    %68 = math.exp %67 : vector<8x8xf32>
    %cst_37 = arith.constant dense<0.000000e+00> : vector<8xf32>
    %69 = vector.multi_reduction <add>, %68, %cst_37 [1] : vector<8x8xf32> to vector<8xf32>
    %70 = vector.shape_cast %69 : vector<8xf32> to vector<8x1xf32>
    %71 = vector.extract_strided_slice %5 {offsets = [0, 64], sizes = [8, 32], strides = [1, 1]} : vector<8x128xf32> to vector<8x32xf32>
    %cst_38 = arith.constant dense<0.000000e+00> : vector<8x32xf32>
    %72 = tpu.matmul %68, %71, %cst_38 {dimension_numbers = #tpu.dot_dimension_numbers<[1], [0], [0], [1], [0, 0, 1, 1], [], []>} : vector<8x8xf32>, vector<8x32xf32>, vector<8x32xf32> -> vector<8x32xf32>
    %73 = vector.broadcast %70 : vector<8x1xf32> to vector<8x32xf32>
    %74 = arith.divf %72, %73 : vector<8x32xf32>
    %c64 = arith.constant 64 : index
    %c0_39 = arith.constant 0 : index
    %75 = vector.load %arg6[%c64, %c0_39] : memref<128x128xf32, #tpu.memory_space<vmem>>, vector<32x128xf32>
    %cst_40 = arith.constant dense<0.000000e+00> : vector<8x128xf32>
    %76 = tpu.matmul %74, %75, %cst_40 {dimension_numbers = #tpu.dot_dimension_numbers<[1], [0], [0], [1], [0, 0, 1, 1], [], []>} : vector<8x32xf32>, vector<32x128xf32>, vector<8x128xf32> -> vector<8x128xf32>
    %77 = arith.addf %56, %76 : vector<8x128xf32>
    %78 = vector.extract_strided_slice %1 {offsets = [0, 96], sizes = [8, 32], strides = [1, 1]} : vector<8x128xf32> to vector<8x32xf32>
    %79 = vector.extract_strided_slice %3 {offsets = [0, 96], sizes = [8, 32], strides = [1, 1]} : vector<8x128xf32> to vector<8x32xf32>
    %cst_41 = arith.constant dense<0.000000e+00> : vector<8x8xf32>
    %80 = tpu.matmul %78, %79, %cst_41 {dimension_numbers = #tpu.dot_dimension_numbers<[1], [1], [0], [0], [0, 0, 1, 0], [], []>} : vector<8x32xf32>, vector<8x32xf32>, vector<8x8xf32> -> vector<8x8xf32>
    %cst_42 = arith.constant 0.176776692 : f32
    %81 = vector.broadcast %cst_42 : f32 to vector<8x8xf32>
    %82 = arith.mulf %80, %81 : vector<8x8xf32>
    %cst_43 = arith.constant -1.000000e+09 : f32
    %83 = vector.broadcast %cst_43 : f32 to vector<8x8xf32>
    %84 = arith.select %9, %83, %82 : vector<8x8xi1>, vector<8x8xf32>
    %cst_44 = arith.constant dense<0xFF800000> : vector<8xf32>
    %85 = vector.multi_reduction <maximumf>, %84, %cst_44 [1] : vector<8x8xf32> to vector<8xf32>
    %86 = vector.shape_cast %85 : vector<8xf32> to vector<8x1xf32>
    %87 = vector.broadcast %86 : vector<8x1xf32> to vector<8x8xf32>
    %88 = arith.subf %84, %87 : vector<8x8xf32>
    %89 = math.exp %88 : vector<8x8xf32>
    %cst_45 = arith.constant dense<0.000000e+00> : vector<8xf32>
    %90 = vector.multi_reduction <add>, %89, %cst_45 [1] : vector<8x8xf32> to vector<8xf32>
    %91 = vector.shape_cast %90 : vector<8xf32> to vector<8x1xf32>
    %92 = vector.extract_strided_slice %5 {offsets = [0, 96], sizes = [8, 32], strides = [1, 1]} : vector<8x128xf32> to vector<8x32xf32>
    %cst_46 = arith.constant dense<0.000000e+00> : vector<8x32xf32>
    %93 = tpu.matmul %89, %92, %cst_46 {dimension_numbers = #tpu.dot_dimension_numbers<[1], [0], [0], [1], [0, 0, 1, 1], [], []>} : vector<8x8xf32>, vector<8x32xf32>, vector<8x32xf32> -> vector<8x32xf32>
    %94 = vector.broadcast %91 : vector<8x1xf32> to vector<8x32xf32>
    %95 = arith.divf %93, %94 : vector<8x32xf32>
    %c96 = arith.constant 96 : index
    %c0_47 = arith.constant 0 : index
    %96 = vector.load %arg6[%c96, %c0_47] : memref<128x128xf32, #tpu.memory_space<vmem>>, vector<32x128xf32>
    %cst_48 = arith.constant dense<0.000000e+00> : vector<8x128xf32>
    %97 = tpu.matmul %95, %96, %cst_48 {dimension_numbers = #tpu.dot_dimension_numbers<[1], [0], [0], [1], [0, 0, 1, 1], [], []>} : vector<8x32xf32>, vector<32x128xf32>, vector<8x128xf32> -> vector<8x128xf32>
    %98 = arith.addf %77, %97 : vector<8x128xf32>
    %c0_49 = arith.constant 0 : index
    %c0_50 = arith.constant 0 : index
    %c0_51 = arith.constant 0 : index
    %99 = vector.load %arg8[%c0_49, %c0_50, %c0_51] : memref<1x8x128xf32, #tpu.memory_space<vmem>>, vector<1x8x128xf32>
    %100 = vector.shape_cast %99 : vector<1x8x128xf32> to vector<8x128xf32>
    %101 = vector.shape_cast %98 : vector<8x128xf32> to vector<1x8x128xf32>
    tpu.vector_store %arg8[%c0_49, %c0_50, %c0_51], %101 {strides = array<i32>} : memref<1x8x128xf32, #tpu.memory_space<vmem>>, vector<1x8x128xf32>,
    return
  }
  func.func @transform_0(%arg0: i32) -> (i32, i32, i32) {
    %c0_i32 = arith.constant 0 : i32
    %c0_i32_0 = arith.constant 0 : i32
    %c0_i32_1 = arith.constant 0 : i32
    return %arg0, %c0_i32, %c0_i32_0 : i32, i32, i32
  }
  func.func @transform_1(%arg0: i32) -> (i32, i32, i32) {
    %c0_i32 = arith.constant 0 : i32
    %c1_i32 = arith.constant 1 : i32
    %c0_i32_0 = arith.constant 0 : i32
    return %arg0, %c0_i32, %c1_i32 : i32, i32, i32
  }
  func.func @transform_2(%arg0: i32) -> (i32, i32, i32) {
    %c0_i32 = arith.constant 0 : i32
    %c2_i32 = arith.constant 2 : i32
    %c0_i32_0 = arith.constant 0 : i32
    return %arg0, %c0_i32, %c2_i32 : i32, i32, i32
  }
  func.func @transform_3(%arg0: i32) -> (i32, i32, i32, i32) {
    %c0_i32 = arith.constant 0 : i32
    %c0_i32_0 = arith.constant 0 : i32
    %c0_i32_1 = arith.constant 0 : i32
    %c0_i32_2 = arith.constant 0 : i32
    return %arg0, %c0_i32, %c0_i32_0, %c0_i32_1 : i32, i32, i32, i32
  }
  func.func @transform_4(%arg0: i32) -> (i32, i32, i32) {
    %c0_i32 = arith.constant 0 : i32
    %c0_i32_0 = arith.constant 0 : i32
    %c0_i32_1 = arith.constant 0 : i32
    return %arg0, %c0_i32, %c0_i32_0 : i32, i32, i32
  }
  func.func @transform_5(%arg0: i32) -> (i32, i32) {
    %c0_i32 = arith.constant 0 : i32
    %c0_i32_0 = arith.constant 0 : i32
    %c0_i32_1 = arith.constant 0 : i32
    return %c0_i32, %c0_i32_0 : i32, i32
  }
  func.func @transform_6(%arg0: i32) -> (i32, i32) {
    %c0_i32 = arith.constant 0 : i32
    %c0_i32_0 = arith.constant 0 : i32
    %c0_i32_1 = arith.constant 0 : i32
    return %c0_i32, %c0_i32_0 : i32, i32
  }
  func.func @transform_7(%arg0: i32) -> (i32, i32, i32) {
    %c0_i32 = arith.constant 0 : i32
    %c0_i32_0 = arith.constant 0 : i32
    %c0_i32_1 = arith.constant 0 : i32
    return %arg0, %c0_i32, %c0_i32_0 : i32, i32, i32
  }
}

module attributes {stable_mosaic.version = 11 : i64} {
  func.func @_ln_matmul_kernel(%arg0: i32, %arg1: i32, %arg2: memref<1xf32, #tpu.memory_space<smem>>, %arg3: memref<1xf32, #tpu.memory_space<smem>>, %arg4: memref<32x128xf32, #tpu.memory_space<vmem>>, %arg5: memref<128x256xf32, #tpu.memory_space<vmem>>, %arg6: memref<1x256xf32, #tpu.memory_space<vmem>>, %arg7: memref<32x256xf32, #tpu.memory_space<vmem>>) attributes {dimension_semantics = [#tpu.dimension_semantics<parallel>, #tpu.dimension_semantics<parallel>], iteration_bounds = array<i64: 1, 1>, scalar_prefetch = 0 : i64, scratch_operands = 0 : i64, tpu.core_type = #tpu.core_type<tc>, window_params = [{transform_indices = @transform_0, window_bounds = array<i64: 1>}, {transform_indices = @transform_1, window_bounds = array<i64: 1>}, {transform_indices = @transform_2, window_bounds = array<i64: 32, 128>}, {transform_indices = @transform_3, window_bounds = array<i64: 128, 256>}, {transform_indices = @transform_4, window_bounds = array<i64: 1, 256>}, {transform_indices = @transform_5, window_bounds = array<i64: 32, 256>}]} {
    %c0 = arith.constant 0 : index
    %c0_0 = arith.constant 0 : index
    %0 = vector.load %arg4[%c0, %c0_0] : memref<32x128xf32, #tpu.memory_space<vmem>>, vector<32x128xf32>
    %c0_1 = arith.constant 0 : index
    %c0_2 = arith.constant 0 : index
    %1 = vector.load %arg5[%c0_1, %c0_2] : memref<128x256xf32, #tpu.memory_space<vmem>>, vector<128x256xf32>
    %cst = arith.constant dense<0.000000e+00> : vector<32x256xf32>
    %2 = tpu.matmul %0, %1, %cst {dimension_numbers = #tpu.dot_dimension_numbers<[1], [0], [0], [1], [0, 0, 1, 1], [], []>} : vector<32x128xf32>, vector<128x256xf32>, vector<32x256xf32> -> vector<32x256xf32>
    %c0_3 = arith.constant 0 : index
    %c0_4 = arith.constant 0 : index
    %3 = vector.load %arg6[%c0_3, %c0_4] : memref<1x256xf32, #tpu.memory_space<vmem>>, vector<1x256xf32>
    %4 = vector.broadcast %3 : vector<1x256xf32> to vector<32x256xf32>
    %5 = arith.addf %2, %4 : vector<32x256xf32>
    %c0_5 = arith.constant 0 : index
    %c0_6 = arith.constant 0 : index
    %6 = vector.load %arg7[%c0_5, %c0_6] : memref<32x256xf32, #tpu.memory_space<vmem>>, vector<32x256xf32>
    tpu.vector_store %arg7[%c0_5, %c0_6], %5 {strides = array<i32>} : memref<32x256xf32, #tpu.memory_space<vmem>>, vector<32x256xf32>,
    return
  }
  func.func @transform_0(%arg0: i32, %arg1: i32) -> i32 {
    %c0_i32 = arith.constant 0 : i32
    %c0_i32_0 = arith.constant 0 : i32
    return %c0_i32 : i32
  }
  func.func @transform_1(%arg0: i32, %arg1: i32) -> i32 {
    %c0_i32 = arith.constant 0 : i32
    %c0_i32_0 = arith.constant 0 : i32
    return %c0_i32 : i32
  }
  func.func @transform_2(%arg0: i32, %arg1: i32) -> (i32, i32) {
    %c0_i32 = arith.constant 0 : i32
    %c0_i32_0 = arith.constant 0 : i32
    return %arg0, %c0_i32 : i32, i32
  }
  func.func @transform_3(%arg0: i32, %arg1: i32) -> (i32, i32) {
    %c0_i32 = arith.constant 0 : i32
    %c0_i32_0 = arith.constant 0 : i32
    return %c0_i32, %arg1 : i32, i32
  }
  func.func @transform_4(%arg0: i32, %arg1: i32) -> (i32, i32) {
    %c0_i32 = arith.constant 0 : i32
    %c0_i32_0 = arith.constant 0 : i32
    return %c0_i32, %arg1 : i32, i32
  }
  func.func @transform_5(%arg0: i32, %arg1: i32) -> (i32, i32) {
    %c0_i32 = arith.constant 0 : i32
    return %arg0, %arg1 : i32, i32
  }
}

module attributes {stable_mosaic.version = 11 : i64} {
  func.func @_ffn_kernel(%arg0: i32, %arg1: i32, %arg2: memref<1xf32, #tpu.memory_space<smem>>, %arg3: memref<1xf32, #tpu.memory_space<smem>>, %arg4: memref<16x128xf32, #tpu.memory_space<vmem>>, %arg5: memref<128x256xf32, #tpu.memory_space<vmem>>, %arg6: memref<1x256xf32, #tpu.memory_space<vmem>>, %arg7: memref<256x128xf32, #tpu.memory_space<vmem>>, %arg8: memref<1x128xf32, #tpu.memory_space<vmem>>, %arg9: memref<16x128xf32, #tpu.memory_space<vmem>>, %arg10: memref<16x128xf32, #tpu.memory_space<vmem>>, %arg11: memref<16x128xf32, #tpu.memory_space<vmem>>) attributes {dimension_semantics = [#tpu.dimension_semantics<parallel>, #tpu.dimension_semantics<arbitrary>], iteration_bounds = array<i64: 1, 1>, scalar_prefetch = 0 : i64, scratch_operands = 2 : i64, tpu.core_type = #tpu.core_type<tc>, window_params = [{transform_indices = @transform_0, window_bounds = array<i64: 1>}, {transform_indices = @transform_1, window_bounds = array<i64: 1>}, {transform_indices = @transform_2, window_bounds = array<i64: 16, 128>}, {transform_indices = @transform_3, window_bounds = array<i64: 128, 256>}, {transform_indices = @transform_4, window_bounds = array<i64: 1, 256>}, {transform_indices = @transform_5, window_bounds = array<i64: 256, 128>}, {pipeline_mode = #tpu.pipeline_mode<synchronous>, transform_indices = @transform_6, window_bounds = array<i64: 1, 128>}, {transform_indices = @transform_7, window_bounds = array<i64: 16, 128>}]} {
    %c0_i32 = arith.constant 0 : i32
    %0 = arith.cmpi eq, %arg1, %c0_i32 : i32
    %1 = arith.extui %0 : i1 to i32
    %c0_i32_0 = arith.constant 0 : i32
    %2 = arith.cmpi ne, %1, %c0_i32_0 : i32
    scf.if %2 {
      %c0_16 = arith.constant 0 : index
      %c0_17 = arith.constant 0 : index
      %19 = vector.load %arg4[%c0_16, %c0_17] : memref<16x128xf32, #tpu.memory_space<vmem>>, vector<16x128xf32>
      %cst_18 = arith.constant dense<0.000000e+00> : vector<16xf32>
      %20 = vector.multi_reduction <add>, %19, %cst_18 [1] : vector<16x128xf32> to vector<16xf32>
      %21 = vector.shape_cast %20 : vector<16xf32> to vector<16x1xf32>
      %cst_19 = arith.constant 7.812500e-03 : f32
      %22 = vector.broadcast %cst_19 : f32 to vector<16x1xf32>
      %23 = arith.mulf %21, %22 : vector<16x1xf32>
      %24 = vector.broadcast %23 : vector<16x1xf32> to vector<16x128xf32>
      %25 = arith.subf %19, %24 : vector<16x128xf32>
      %26 = arith.mulf %25, %25 : vector<16x128xf32>
      %cst_20 = arith.constant dense<0.000000e+00> : vector<16xf32>
      %27 = vector.multi_reduction <add>, %26, %cst_20 [1] : vector<16x128xf32> to vector<16xf32>
      %28 = vector.shape_cast %27 : vector<16xf32> to vector<16x1xf32>
      %cst_21 = arith.constant 0.00787401571 : f32
      %29 = vector.broadcast %cst_21 : f32 to vector<16x1xf32>
      %30 = arith.mulf %28, %29 : vector<16x1xf32>
      %c0_22 = arith.constant 0 : index
      %31 = memref.load %arg2[%c0_22] : memref<1xf32, #tpu.memory_space<smem>>
      %32 = math.sqrt %30 : vector<16x1xf32>
      %cst_23 = arith.constant 9.99999997E-7 : f32
      %33 = vector.broadcast %cst_23 : f32 to vector<16x1xf32>
      %34 = arith.addf %32, %33 : vector<16x1xf32>
      %35 = tpu.reciprocal %34 {approx = true} : vector<16x1xf32> -> vector<16x1xf32>
      %36 = vector.broadcast %31 : f32 to vector<16x1xf32>
      %37 = arith.mulf %36, %35 : vector<16x1xf32>
      %38 = vector.broadcast %37 : vector<16x1xf32> to vector<16x128xf32>
      %39 = arith.mulf %25, %38 : vector<16x128xf32>
      %c0_24 = arith.constant 0 : index
      %40 = memref.load %arg3[%c0_24] : memref<1xf32, #tpu.memory_space<smem>>
      %41 = vector.broadcast %40 : f32 to vector<16x128xf32>
      %42 = arith.addf %39, %41 : vector<16x128xf32>
      %c0_25 = arith.constant 0 : index
      %c0_26 = arith.constant 0 : index
      %43 = vector.load %arg10[%c0_25, %c0_26] : memref<16x128xf32, #tpu.memory_space<vmem>>, vector<16x128xf32>
      tpu.vector_store %arg10[%c0_25, %c0_26], %42 {strides = array<i32>} : memref<16x128xf32, #tpu.memory_space<vmem>>, vector<16x128xf32>,
      %cst_27 = arith.constant 0.000000e+00 : f32
      %44 = vector.broadcast %cst_27 : f32 to vector<16x128xf32>
      %c0_28 = arith.constant 0 : index
      %c0_29 = arith.constant 0 : index
      %45 = vector.load %arg11[%c0_28, %c0_29] : memref<16x128xf32, #tpu.memory_space<vmem>>, vector<16x128xf32>
      tpu.vector_store %arg11[%c0_28, %c0_29], %44 {strides = array<i32>} : memref<16x128xf32, #tpu.memory_space<vmem>>, vector<16x128xf32>,
    } else {
    }
    %c0 = arith.constant 0 : index
    %c0_1 = arith.constant 0 : index
    %3 = vector.load %arg10[%c0, %c0_1] : memref<16x128xf32, #tpu.memory_space<vmem>>, vector<16x128xf32>
    %c0_2 = arith.constant 0 : index
    %c0_3 = arith.constant 0 : index
    %4 = vector.load %arg5[%c0_2, %c0_3] : memref<128x256xf32, #tpu.memory_space<vmem>>, vector<128x256xf32>
    %cst = arith.constant dense<0.000000e+00> : vector<16x256xf32>
    %5 = tpu.matmul %3, %4, %cst {dimension_numbers = #tpu.dot_dimension_numbers<[1], [0], [0], [1], [0, 0, 1, 1], [], []>} : vector<16x128xf32>, vector<128x256xf32>, vector<16x256xf32> -> vector<16x256xf32>
    %c0_4 = arith.constant 0 : index
    %c0_5 = arith.constant 0 : index
    %6 = vector.load %arg6[%c0_4, %c0_5] : memref<1x256xf32, #tpu.memory_space<vmem>>, vector<1x256xf32>
    %7 = vector.broadcast %6 : vector<1x256xf32> to vector<16x256xf32>
    %8 = arith.addf %5, %7 : vector<16x256xf32>
    %cst_6 = arith.constant 0.000000e+00 : f32
    %9 = vector.broadcast %cst_6 : f32 to vector<16x256xf32>
    %10 = arith.maximumf %8, %9 : vector<16x256xf32>
    %c0_7 = arith.constant 0 : index
    %c0_8 = arith.constant 0 : index
    %11 = vector.load %arg11[%c0_7, %c0_8] : memref<16x128xf32, #tpu.memory_space<vmem>>, vector<16x128xf32>
    %c0_9 = arith.constant 0 : index
    %c0_10 = arith.constant 0 : index
    %12 = vector.load %arg7[%c0_9, %c0_10] : memref<256x128xf32, #tpu.memory_space<vmem>>, vector<256x128xf32>
    %cst_11 = arith.constant dense<0.000000e+00> : vector<16x128xf32>
    %13 = tpu.matmul %10, %12, %cst_11 {dimension_numbers = #tpu.dot_dimension_numbers<[1], [0], [0], [1], [0, 0, 1, 1], [], []>} : vector<16x256xf32>, vector<256x128xf32>, vector<16x128xf32> -> vector<16x128xf32>
    %14 = arith.addf %11, %13 : vector<16x128xf32>
    %c0_12 = arith.constant 0 : index
    %c0_13 = arith.constant 0 : index
    %15 = vector.load %arg11[%c0_12, %c0_13] : memref<16x128xf32, #tpu.memory_space<vmem>>, vector<16x128xf32>
    tpu.vector_store %arg11[%c0_12, %c0_13], %14 {strides = array<i32>} : memref<16x128xf32, #tpu.memory_space<vmem>>, vector<16x128xf32>,
    %c0_i32_14 = arith.constant 0 : i32
    %16 = arith.cmpi eq, %arg1, %c0_i32_14 : i32
    %17 = arith.extui %16 : i1 to i32
    %c0_i32_15 = arith.constant 0 : i32
    %18 = arith.cmpi ne, %17, %c0_i32_15 : i32
    scf.if %18 {
      %c0_16 = arith.constant 0 : index
      %c0_17 = arith.constant 0 : index
      %19 = vector.load %arg11[%c0_16, %c0_17] : memref<16x128xf32, #tpu.memory_space<vmem>>, vector<16x128xf32>
      %c0_18 = arith.constant 0 : index
      %c0_19 = arith.constant 0 : index
      %20 = vector.load %arg8[%c0_18, %c0_19] : memref<1x128xf32, #tpu.memory_space<vmem>>, vector<1x128xf32>
      %21 = vector.broadcast %20 : vector<1x128xf32> to vector<16x128xf32>
      %22 = arith.addf %19, %21 : vector<16x128xf32>
      %c0_20 = arith.constant 0 : index
      %c0_21 = arith.constant 0 : index
      %23 = vector.load %arg4[%c0_20, %c0_21] : memref<16x128xf32, #tpu.memory_space<vmem>>, vector<16x128xf32>
      %24 = arith.addf %22, %23 : vector<16x128xf32>
      %c0_22 = arith.constant 0 : index
      %c0_23 = arith.constant 0 : index
      %25 = vector.load %arg9[%c0_22, %c0_23] : memref<16x128xf32, #tpu.memory_space<vmem>>, vector<16x128xf32>
      tpu.vector_store %arg9[%c0_22, %c0_23], %24 {strides = array<i32>} : memref<16x128xf32, #tpu.memory_space<vmem>>, vector<16x128xf32>,
    } else {
    }
    return
  }
  func.func @transform_0(%arg0: i32, %arg1: i32) -> i32 {
    %c0_i32 = arith.constant 0 : i32
    %c0_i32_0 = arith.constant 0 : i32
    return %c0_i32 : i32
  }
  func.func @transform_1(%arg0: i32, %arg1: i32) -> i32 {
    %c0_i32 = arith.constant 0 : i32
    %c0_i32_0 = arith.constant 0 : i32
    return %c0_i32 : i32
  }
  func.func @transform_2(%arg0: i32, %arg1: i32) -> (i32, i32) {
    %c0_i32 = arith.constant 0 : i32
    %c0_i32_0 = arith.constant 0 : i32
    return %arg0, %c0_i32 : i32, i32
  }
  func.func @transform_3(%arg0: i32, %arg1: i32) -> (i32, i32) {
    %c0_i32 = arith.constant 0 : i32
    %c0_i32_0 = arith.constant 0 : i32
    return %c0_i32, %arg1 : i32, i32
  }
  func.func @transform_4(%arg0: i32, %arg1: i32) -> (i32, i32) {
    %c0_i32 = arith.constant 0 : i32
    %c0_i32_0 = arith.constant 0 : i32
    return %c0_i32, %arg1 : i32, i32
  }
  func.func @transform_5(%arg0: i32, %arg1: i32) -> (i32, i32) {
    %c0_i32 = arith.constant 0 : i32
    %c0_i32_0 = arith.constant 0 : i32
    return %arg1, %c0_i32 : i32, i32
  }
  func.func @transform_6(%arg0: i32, %arg1: i32) -> (i32, i32) {
    %c0_i32 = arith.constant 0 : i32
    %c0_i32_0 = arith.constant 0 : i32
    %c0_i32_1 = arith.constant 0 : i32
    return %c0_i32, %c0_i32_0 : i32, i32
  }
  func.func @transform_7(%arg0: i32, %arg1: i32) -> (i32, i32) {
    %c0_i32 = arith.constant 0 : i32
    %c0_i32_0 = arith.constant 0 : i32
    return %arg0, %c0_i32 : i32, i32
  }
}

module attributes {stable_mosaic.version = 11 : i64} {
  func.func @_attn_kernel(%arg0: i32, %arg1: memref<1x8x128xf32, #tpu.memory_space<vmem>>, %arg2: memref<1x16x128xf32, #tpu.memory_space<vmem>>, %arg3: memref<1x16x128xf32, #tpu.memory_space<vmem>>, %arg4: memref<1x1x8x16xi32, #tpu.memory_space<vmem>>, %arg5: memref<1x8x128xf32, #tpu.memory_space<vmem>>, %arg6: memref<128x128xf32, #tpu.memory_space<vmem>>, %arg7: memref<1x128xf32, #tpu.memory_space<vmem>>, %arg8: memref<1x8x128xf32, #tpu.memory_space<vmem>>) attributes {dimension_semantics = [#tpu.dimension_semantics<parallel>], iteration_bounds = array<i64: 2>, scalar_prefetch = 0 : i64, scratch_operands = 0 : i64, tpu.core_type = #tpu.core_type<tc>, window_params = [{transform_indices = @transform_0, window_bounds = array<i64: 1, 8, 128>}, {transform_indices = @transform_1, window_bounds = array<i64: 1, 16, 128>}, {transform_indices = @transform_2, window_bounds = array<i64: 1, 16, 128>}, {transform_indices = @transform_3, window_bounds = array<i64: 1, 1, 8, 16>}, {transform_indices = @transform_4, window_bounds = array<i64: 1, 8, 128>}, {pipeline_mode = #tpu.pipeline_mode<synchronous>, transform_indices = @transform_5, window_bounds = array<i64: 128, 128>}, {pipeline_mode = #tpu.pipeline_mode<synchronous>, transform_indices = @transform_6, window_bounds = array<i64: 1, 128>}, {transform_indices = @transform_7, window_bounds = array<i64: 1, 8, 128>}]} {
    %c0 = arith.constant 0 : index
    %c0_0 = arith.constant 0 : index
    %c0_1 = arith.constant 0 : index
    %0 = vector.load %arg1[%c0, %c0_0, %c0_1] : memref<1x8x128xf32, #tpu.memory_space<vmem>>, vector<1x8x128xf32>
    %1 = vector.shape_cast %0 : vector<1x8x128xf32> to vector<8x128xf32>
    %c0_2 = arith.constant 0 : index
    %c0_3 = arith.constant 0 : index
    %c0_4 = arith.constant 0 : index
    %2 = vector.load %arg2[%c0_2, %c0_3, %c0_4] : memref<1x16x128xf32, #tpu.memory_space<vmem>>, vector<1x16x128xf32>
    %3 = vector.shape_cast %2 : vector<1x16x128xf32> to vector<16x128xf32>
    %c0_5 = arith.constant 0 : index
    %c0_6 = arith.constant 0 : index
    %c0_7 = arith.constant 0 : index
    %4 = vector.load %arg3[%c0_5, %c0_6, %c0_7] : memref<1x16x128xf32, #tpu.memory_space<vmem>>, vector<1x16x128xf32>
    %5 = vector.shape_cast %4 : vector<1x16x128xf32> to vector<16x128xf32>
    %c0_8 = arith.constant 0 : index
    %c0_9 = arith.constant 0 : index
    %c0_10 = arith.constant 0 : index
    %c0_11 = arith.constant 0 : index
    %6 = vector.load %arg4[%c0_8, %c0_9, %c0_10, %c0_11] : memref<1x1x8x16xi32, #tpu.memory_space<vmem>>, vector<1x1x8x16xi32>
    %7 = vector.shape_cast %6 : vector<1x1x8x16xi32> to vector<8x16xi32>
    %c0_i32 = arith.constant 0 : i32
    %8 = vector.broadcast %c0_i32 : i32 to vector<8x16xi32>
    %9 = arith.cmpi eq, %7, %8 : vector<8x16xi32>
    %c0_12 = arith.constant 0 : index
    %c0_13 = arith.constant 0 : index
    %c0_14 = arith.constant 0 : index
    %10 = vector.load %arg5[%c0_12, %c0_13, %c0_14] : memref<1x8x128xf32, #tpu.memory_space<vmem>>, vector<1x8x128xf32>
    %11 = vector.shape_cast %10 : vector<1x8x128xf32> to vector<8x128xf32>
    %c0_15 = arith.constant 0 : index
    %c0_16 = arith.constant 0 : index
    %12 = vector.load %arg7[%c0_15, %c0_16] : memref<1x128xf32, #tpu.memory_space<vmem>>, vector<1x128xf32>
    %13 = vector.broadcast %12 : vector<1x128xf32> to vector<8x128xf32>
    %14 = arith.addf %11, %13 : vector<8x128xf32>
    %15 = vector.extract_strided_slice %1 {offsets = [0, 0], sizes = [8, 32], strides = [1, 1]} : vector<8x128xf32> to vector<8x32xf32>
    %16 = vector.extract_strided_slice %3 {offsets = [0, 0], sizes = [16, 32], strides = [1, 1]} : vector<16x128xf32> to vector<16x32xf32>
    %cst = arith.constant dense<0.000000e+00> : vector<8x16xf32>
    %17 = tpu.matmul %15, %16, %cst {dimension_numbers = #tpu.dot_dimension_numbers<[1], [1], [0], [0], [0, 0, 1, 0], [], []>} : vector<8x32xf32>, vector<16x32xf32>, vector<8x16xf32> -> vector<8x16xf32>
    %cst_17 = arith.constant 0.176776692 : f32
    %18 = vector.broadcast %cst_17 : f32 to vector<8x16xf32>
    %19 = arith.mulf %17, %18 : vector<8x16xf32>
    %cst_18 = arith.constant -1.000000e+09 : f32
    %20 = vector.broadcast %cst_18 : f32 to vector<8x16xf32>
    %21 = arith.select %9, %20, %19 : vector<8x16xi1>, vector<8x16xf32>
    %cst_19 = arith.constant dense<0xFF800000> : vector<8xf32>
    %22 = vector.multi_reduction <maximumf>, %21, %cst_19 [1] : vector<8x16xf32> to vector<8xf32>
    %23 = vector.shape_cast %22 : vector<8xf32> to vector<8x1xf32>
    %24 = vector.broadcast %23 : vector<8x1xf32> to vector<8x16xf32>
    %25 = arith.subf %21, %24 : vector<8x16xf32>
    %26 = math.exp %25 : vector<8x16xf32>
    %cst_20 = arith.constant dense<0.000000e+00> : vector<8xf32>
    %27 = vector.multi_reduction <add>, %26, %cst_20 [1] : vector<8x16xf32> to vector<8xf32>
    %28 = vector.shape_cast %27 : vector<8xf32> to vector<8x1xf32>
    %29 = vector.extract_strided_slice %5 {offsets = [0, 0], sizes = [16, 32], strides = [1, 1]} : vector<16x128xf32> to vector<16x32xf32>
    %cst_21 = arith.constant dense<0.000000e+00> : vector<8x32xf32>
    %30 = tpu.matmul %26, %29, %cst_21 {dimension_numbers = #tpu.dot_dimension_numbers<[1], [0], [0], [1], [0, 0, 1, 1], [], []>} : vector<8x16xf32>, vector<16x32xf32>, vector<8x32xf32> -> vector<8x32xf32>
    %31 = vector.broadcast %28 : vector<8x1xf32> to vector<8x32xf32>
    %32 = arith.divf %30, %31 : vector<8x32xf32>
    %c0_22 = arith.constant 0 : index
    %c0_23 = arith.constant 0 : index
    %33 = vector.load %arg6[%c0_22, %c0_23] : memref<128x128xf32, #tpu.memory_space<vmem>>, vector<32x128xf32>
    %cst_24 = arith.constant dense<0.000000e+00> : vector<8x128xf32>
    %34 = tpu.matmul %32, %33, %cst_24 {dimension_numbers = #tpu.dot_dimension_numbers<[1], [0], [0], [1], [0, 0, 1, 1], [], []>} : vector<8x32xf32>, vector<32x128xf32>, vector<8x128xf32> -> vector<8x128xf32>
    %35 = arith.addf %14, %34 : vector<8x128xf32>
    %36 = vector.extract_strided_slice %1 {offsets = [0, 32], sizes = [8, 32], strides = [1, 1]} : vector<8x128xf32> to vector<8x32xf32>
    %37 = vector.extract_strided_slice %3 {offsets = [0, 32], sizes = [16, 32], strides = [1, 1]} : vector<16x128xf32> to vector<16x32xf32>
    %cst_25 = arith.constant dense<0.000000e+00> : vector<8x16xf32>
    %38 = tpu.matmul %36, %37, %cst_25 {dimension_numbers = #tpu.dot_dimension_numbers<[1], [1], [0], [0], [0, 0, 1, 0], [], []>} : vector<8x32xf32>, vector<16x32xf32>, vector<8x16xf32> -> vector<8x16xf32>
    %cst_26 = arith.constant 0.176776692 : f32
    %39 = vector.broadcast %cst_26 : f32 to vector<8x16xf32>
    %40 = arith.mulf %38, %39 : vector<8x16xf32>
    %cst_27 = arith.constant -1.000000e+09 : f32
    %41 = vector.broadcast %cst_27 : f32 to vector<8x16xf32>
    %42 = arith.select %9, %41, %40 : vector<8x16xi1>, vector<8x16xf32>
    %cst_28 = arith.constant dense<0xFF800000> : vector<8xf32>
    %43 = vector.multi_reduction <maximumf>, %42, %cst_28 [1] : vector<8x16xf32> to vector<8xf32>
    %44 = vector.shape_cast %43 : vector<8xf32> to vector<8x1xf32>
    %45 = vector.broadcast %44 : vector<8x1xf32> to vector<8x16xf32>
    %46 = arith.subf %42, %45 : vector<8x16xf32>
    %47 = math.exp %46 : vector<8x16xf32>
    %cst_29 = arith.constant dense<0.000000e+00> : vector<8xf32>
    %48 = vector.multi_reduction <add>, %47, %cst_29 [1] : vector<8x16xf32> to vector<8xf32>
    %49 = vector.shape_cast %48 : vector<8xf32> to vector<8x1xf32>
    %50 = vector.extract_strided_slice %5 {offsets = [0, 32], sizes = [16, 32], strides = [1, 1]} : vector<16x128xf32> to vector<16x32xf32>
    %cst_30 = arith.constant dense<0.000000e+00> : vector<8x32xf32>
    %51 = tpu.matmul %47, %50, %cst_30 {dimension_numbers = #tpu.dot_dimension_numbers<[1], [0], [0], [1], [0, 0, 1, 1], [], []>} : vector<8x16xf32>, vector<16x32xf32>, vector<8x32xf32> -> vector<8x32xf32>
    %52 = vector.broadcast %49 : vector<8x1xf32> to vector<8x32xf32>
    %53 = arith.divf %51, %52 : vector<8x32xf32>
    %c32 = arith.constant 32 : index
    %c0_31 = arith.constant 0 : index
    %54 = vector.load %arg6[%c32, %c0_31] : memref<128x128xf32, #tpu.memory_space<vmem>>, vector<32x128xf32>
    %cst_32 = arith.constant dense<0.000000e+00> : vector<8x128xf32>
    %55 = tpu.matmul %53, %54, %cst_32 {dimension_numbers = #tpu.dot_dimension_numbers<[1], [0], [0], [1], [0, 0, 1, 1], [], []>} : vector<8x32xf32>, vector<32x128xf32>, vector<8x128xf32> -> vector<8x128xf32>
    %56 = arith.addf %35, %55 : vector<8x128xf32>
    %57 = vector.extract_strided_slice %1 {offsets = [0, 64], sizes = [8, 32], strides = [1, 1]} : vector<8x128xf32> to vector<8x32xf32>
    %58 = vector.extract_strided_slice %3 {offsets = [0, 64], sizes = [16, 32], strides = [1, 1]} : vector<16x128xf32> to vector<16x32xf32>
    %cst_33 = arith.constant dense<0.000000e+00> : vector<8x16xf32>
    %59 = tpu.matmul %57, %58, %cst_33 {dimension_numbers = #tpu.dot_dimension_numbers<[1], [1], [0], [0], [0, 0, 1, 0], [], []>} : vector<8x32xf32>, vector<16x32xf32>, vector<8x16xf32> -> vector<8x16xf32>
    %cst_34 = arith.constant 0.176776692 : f32
    %60 = vector.broadcast %cst_34 : f32 to vector<8x16xf32>
    %61 = arith.mulf %59, %60 : vector<8x16xf32>
    %cst_35 = arith.constant -1.000000e+09 : f32
    %62 = vector.broadcast %cst_35 : f32 to vector<8x16xf32>
    %63 = arith.select %9, %62, %61 : vector<8x16xi1>, vector<8x16xf32>
    %cst_36 = arith.constant dense<0xFF800000> : vector<8xf32>
    %64 = vector.multi_reduction <maximumf>, %63, %cst_36 [1] : vector<8x16xf32> to vector<8xf32>
    %65 = vector.shape_cast %64 : vector<8xf32> to vector<8x1xf32>
    %66 = vector.broadcast %65 : vector<8x1xf32> to vector<8x16xf32>
    %67 = arith.subf %63, %66 : vector<8x16xf32>
    %68 = math.exp %67 : vector<8x16xf32>
    %cst_37 = arith.constant dense<0.000000e+00> : vector<8xf32>
    %69 = vector.multi_reduction <add>, %68, %cst_37 [1] : vector<8x16xf32> to vector<8xf32>
    %70 = vector.shape_cast %69 : vector<8xf32> to vector<8x1xf32>
    %71 = vector.extract_strided_slice %5 {offsets = [0, 64], sizes = [16, 32], strides = [1, 1]} : vector<16x128xf32> to vector<16x32xf32>
    %cst_38 = arith.constant dense<0.000000e+00> : vector<8x32xf32>
    %72 = tpu.matmul %68, %71, %cst_38 {dimension_numbers = #tpu.dot_dimension_numbers<[1], [0], [0], [1], [0, 0, 1, 1], [], []>} : vector<8x16xf32>, vector<16x32xf32>, vector<8x32xf32> -> vector<8x32xf32>
    %73 = vector.broadcast %70 : vector<8x1xf32> to vector<8x32xf32>
    %74 = arith.divf %72, %73 : vector<8x32xf32>
    %c64 = arith.constant 64 : index
    %c0_39 = arith.constant 0 : index
    %75 = vector.load %arg6[%c64, %c0_39] : memref<128x128xf32, #tpu.memory_space<vmem>>, vector<32x128xf32>
    %cst_40 = arith.constant dense<0.000000e+00> : vector<8x128xf32>
    %76 = tpu.matmul %74, %75, %cst_40 {dimension_numbers = #tpu.dot_dimension_numbers<[1], [0], [0], [1], [0, 0, 1, 1], [], []>} : vector<8x32xf32>, vector<32x128xf32>, vector<8x128xf32> -> vector<8x128xf32>
    %77 = arith.addf %56, %76 : vector<8x128xf32>
    %78 = vector.extract_strided_slice %1 {offsets = [0, 96], sizes = [8, 32], strides = [1, 1]} : vector<8x128xf32> to vector<8x32xf32>
    %79 = vector.extract_strided_slice %3 {offsets = [0, 96], sizes = [16, 32], strides = [1, 1]} : vector<16x128xf32> to vector<16x32xf32>
    %cst_41 = arith.constant dense<0.000000e+00> : vector<8x16xf32>
    %80 = tpu.matmul %78, %79, %cst_41 {dimension_numbers = #tpu.dot_dimension_numbers<[1], [1], [0], [0], [0, 0, 1, 0], [], []>} : vector<8x32xf32>, vector<16x32xf32>, vector<8x16xf32> -> vector<8x16xf32>
    %cst_42 = arith.constant 0.176776692 : f32
    %81 = vector.broadcast %cst_42 : f32 to vector<8x16xf32>
    %82 = arith.mulf %80, %81 : vector<8x16xf32>
    %cst_43 = arith.constant -1.000000e+09 : f32
    %83 = vector.broadcast %cst_43 : f32 to vector<8x16xf32>
    %84 = arith.select %9, %83, %82 : vector<8x16xi1>, vector<8x16xf32>
    %cst_44 = arith.constant dense<0xFF800000> : vector<8xf32>
    %85 = vector.multi_reduction <maximumf>, %84, %cst_44 [1] : vector<8x16xf32> to vector<8xf32>
    %86 = vector.shape_cast %85 : vector<8xf32> to vector<8x1xf32>
    %87 = vector.broadcast %86 : vector<8x1xf32> to vector<8x16xf32>
    %88 = arith.subf %84, %87 : vector<8x16xf32>
    %89 = math.exp %88 : vector<8x16xf32>
    %cst_45 = arith.constant dense<0.000000e+00> : vector<8xf32>
    %90 = vector.multi_reduction <add>, %89, %cst_45 [1] : vector<8x16xf32> to vector<8xf32>
    %91 = vector.shape_cast %90 : vector<8xf32> to vector<8x1xf32>
    %92 = vector.extract_strided_slice %5 {offsets = [0, 96], sizes = [16, 32], strides = [1, 1]} : vector<16x128xf32> to vector<16x32xf32>
    %cst_46 = arith.constant dense<0.000000e+00> : vector<8x32xf32>
    %93 = tpu.matmul %89, %92, %cst_46 {dimension_numbers = #tpu.dot_dimension_numbers<[1], [0], [0], [1], [0, 0, 1, 1], [], []>} : vector<8x16xf32>, vector<16x32xf32>, vector<8x32xf32> -> vector<8x32xf32>
    %94 = vector.broadcast %91 : vector<8x1xf32> to vector<8x32xf32>
    %95 = arith.divf %93, %94 : vector<8x32xf32>
    %c96 = arith.constant 96 : index
    %c0_47 = arith.constant 0 : index
    %96 = vector.load %arg6[%c96, %c0_47] : memref<128x128xf32, #tpu.memory_space<vmem>>, vector<32x128xf32>
    %cst_48 = arith.constant dense<0.000000e+00> : vector<8x128xf32>
    %97 = tpu.matmul %95, %96, %cst_48 {dimension_numbers = #tpu.dot_dimension_numbers<[1], [0], [0], [1], [0, 0, 1, 1], [], []>} : vector<8x32xf32>, vector<32x128xf32>, vector<8x128xf32> -> vector<8x128xf32>
    %98 = arith.addf %77, %97 : vector<8x128xf32>
    %c0_49 = arith.constant 0 : index
    %c0_50 = arith.constant 0 : index
    %c0_51 = arith.constant 0 : index
    %99 = vector.load %arg8[%c0_49, %c0_50, %c0_51] : memref<1x8x128xf32, #tpu.memory_space<vmem>>, vector<1x8x128xf32>
    %100 = vector.shape_cast %99 : vector<1x8x128xf32> to vector<8x128xf32>
    %101 = vector.shape_cast %98 : vector<8x128xf32> to vector<1x8x128xf32>
    tpu.vector_store %arg8[%c0_49, %c0_50, %c0_51], %101 {strides = array<i32>} : memref<1x8x128xf32, #tpu.memory_space<vmem>>, vector<1x8x128xf32>,
    return
  }
  func.func @transform_0(%arg0: i32) -> (i32, i32, i32) {
    %c0_i32 = arith.constant 0 : i32
    %c0_i32_0 = arith.constant 0 : i32
    %c0_i32_1 = arith.constant 0 : i32
    return %arg0, %c0_i32, %c0_i32_0 : i32, i32, i32
  }
  func.func @transform_1(%arg0: i32) -> (i32, i32, i32) {
    %c0_i32 = arith.constant 0 : i32
    %c0_i32_0 = arith.constant 0 : i32
    %c0_i32_1 = arith.constant 0 : i32
    return %arg0, %c0_i32, %c0_i32_0 : i32, i32, i32
  }
  func.func @transform_2(%arg0: i32) -> (i32, i32, i32) {
    %c0_i32 = arith.constant 0 : i32
    %c1_i32 = arith.constant 1 : i32
    %c0_i32_0 = arith.constant 0 : i32
    return %arg0, %c0_i32, %c1_i32 : i32, i32, i32
  }
  func.func @transform_3(%arg0: i32) -> (i32, i32, i32, i32) {
    %c0_i32 = arith.constant 0 : i32
    %c0_i32_0 = arith.constant 0 : i32
    %c0_i32_1 = arith.constant 0 : i32
    %c0_i32_2 = arith.constant 0 : i32
    return %arg0, %c0_i32, %c0_i32_0, %c0_i32_1 : i32, i32, i32, i32
  }
  func.func @transform_4(%arg0: i32) -> (i32, i32, i32) {
    %c0_i32 = arith.constant 0 : i32
    %c0_i32_0 = arith.constant 0 : i32
    %c0_i32_1 = arith.constant 0 : i32
    return %arg0, %c0_i32, %c0_i32_0 : i32, i32, i32
  }
  func.func @transform_5(%arg0: i32) -> (i32, i32) {
    %c0_i32 = arith.constant 0 : i32
    %c0_i32_0 = arith.constant 0 : i32
    %c0_i32_1 = arith.constant 0 : i32
    return %c0_i32, %c0_i32_0 : i32, i32
  }
  func.func @transform_6(%arg0: i32) -> (i32, i32) {
    %c0_i32 = arith.constant 0 : i32
    %c0_i32_0 = arith.constant 0 : i32
    %c0_i32_1 = arith.constant 0 : i32
    return %c0_i32, %c0_i32_0 : i32, i32
  }
  func.func @transform_7(%arg0: i32) -> (i32, i32, i32) {
    %c0_i32 = arith.constant 0 : i32
    %c0_i32_0 = arith.constant 0 : i32
    %c0_i32_1 = arith.constant 0 : i32
    return %arg0, %c0_i32, %c0_i32_0 : i32, i32, i32
  }
}

</mosaic_0001>

<llo_original>
// kernel: decoder_block_forward.8
$region0: #{decoder_block_forward.8}
  #allocation0 [shape = 'u32[]', space=smem, size = 0x4, offset = 0x4, fixed_abs, tag = 'smem constant byte address 0x4 - core index']
  #allocation1 [shape = 'u32[144,128]{1,0:T(1,128)}', space=vmem, size = 0x12000, scoped, tag = 'internal scratch']
  #allocation2 [shape = 'f32[1]{0:T(128)S(6)}', space=smem, size = 0x200, scoped, tag = 'scoped memory for decoder_block_forward.8']
  #allocation3 [shape = 'f32[1]{0:T(128)S(6)}', space=smem, size = 0x200, scoped, tag = 'scoped memory for decoder_block_forward.8']
  %s0 = inlined_call_operand.<no memory space> [shape: f32[1], index: 0, kind: input, shape index: {}]
  %s1 = inlined_call_operand.<no memory space> [shape: f32[1], index: 1, kind: input, shape index: {}]
  %s2 = inlined_call_operand.vmem [shape: f32[16,128], index: 2, kind: input, shape index: {}]
  %s3 = inlined_call_operand.vmem [shape: f32[128,128], index: 3, kind: input, shape index: {}]
  %s4 = inlined_call_operand.vmem [shape: f32[1,128], index: 4, kind: input, shape index: {}]
  %s5 = inlined_call_operand.vmem [shape: f32[16,128], index: 5, kind: output, shape index: {}]
  %s6 = sld [smem:[#allocation0]]
  $region30: #{decoder_block_forward.8} parent=0
    _
  %s8 = ssub.s32 1, %s6
  %s9 = scalar_select 0, %s8, %s6
  %10 = sst [smem:[#allocation2]] %s0
  %11 = sst [smem:[#allocation3]] %s1
  // Predicated region
  $region2: #{decoder_block_forward.8} parent=0 // pred_check
    _
  $region3: #{decoder_block_forward.8} parent=0 // pred_check_branch
    %13 = sbr.rel (0) target = $region5
  $region4: #{decoder_block_forward.8} parent=0 // pred_region
    _
  $region5: #{decoder_block_forward.8} parent=0 // pred_fallthru
    _
  // Predicated region
  $region6: #{decoder_block_forward.8} parent=0 // pred_check
    _
  $region7: #{decoder_block_forward.8} parent=0 // pred_check_branch
    %15 = sbr.rel (0) target = $region9
  $region8: #{decoder_block_forward.8} parent=0 // pred_region
    _
  $region9: #{decoder_block_forward.8} parent=0 // pred_fallthru
    _
  // Predicated region
  $region10: #{decoder_block_forward.8} parent=0 // pred_check
    _
  $region11: #{decoder_block_forward.8} parent=0 // pred_check_branch
    %17 = sbr.rel (0) target = $region13
  $region12: #{decoder_block_forward.8} parent=0 // pred_region
    _
  $region13: #{decoder_block_forward.8} parent=0 // pred_fallthru
    _
  // Predicated region
  $region14: #{decoder_block_forward.8} parent=0 // pred_check
    _
  $region15: #{decoder_block_forward.8} parent=0 // pred_check_branch
    %19 = sbr.rel (0) target = $region17
  $region16: #{decoder_block_forward.8} parent=0 // pred_region
    _
  $region17: #{decoder_block_forward.8} parent=0 // pred_fallthru
    _
  // Predicated region
  $region18: #{decoder_block_forward.8} parent=0 // pred_check
    _
  $region19: #{decoder_block_forward.8} parent=0 // pred_check_branch
    %21 = sbr.rel (0) target = $region21
  $region20: #{decoder_block_forward.8} parent=0 // pred_region
    _
  $region21: #{decoder_block_forward.8} parent=0 // pred_fallthru
    _
  %v22 = vld [vmem:[%s2] sm:$0xff]
  %v23 = vld [vmem:[%s2 + $0x8] sm:$0xff]
  %24 = vadd.xlane.f32.xlu0 %v22
  %v25 = vpop.xlane.xlu0 %24
  %26 = vadd.xlane.f32.xlu0 %v23
  %v27 = vpop.xlane.xlu0 %26
  %v28 = vmul.f32 %v25, 0.0078125
  %v29 = vmul.f32 %v27, 0.0078125
  %v30 = vsub.f32 %v22, %v28
  %v31 = vsub.f32 %v23, %v29
  %v32 = vmul.f32 %v30, %v30
  %v33 = vmul.f32 %v31, %v31
  %34 = vadd.xlane.f32.xlu0 %v32
  %v35 = vpop.xlane.xlu0 %34
  %36 = vadd.xlane.f32.xlu0 %v33
  %v37 = vpop.xlane.xlu0 %36
  %v38 = vmul.f32 %v35, 0.007874016
  %v39 = vmul.f32 %v37, 0.007874016
  %s40 = sld [smem:[#allocation2]]
  %v41 = vrsqrt.pop %v38
  %v42 = vmul.f32 %v38, %v41
  %vm43 = vcmp.eq.f32.partialorder %v38, inf
  %v44 = vsel %vm43, %v38, %v42
  %vm45 = vcmp.eq.f32.partialorder %v38, 0.0
  %v46 = vand.u32 %v38, 2147483648
  %v47 = vsel %vm45, %v46, %v44
  %v48 = vrsqrt.pop %v39
  %v49 = vmul.f32 %v39, %v48
  %vm50 = vcmp.eq.f32.partialorder %v39, inf
  %v51 = vsel %vm50, %v39, %v49
  %vm52 = vcmp.eq.f32.partialorder %v39, 0.0
  %v53 = vand.u32 %v39, 2147483648
  %v54 = vsel %vm52, %v53, %v51
  %v55 = vadd.f32 %v47, 1e-06
  %v56 = vadd.f32 %v54, 1e-06
  %v57 = vrcp.pop %v55
  %v58 = vrcp.pop %v56
  %v59 = vstv %s40
  %v60 = vmul.f32 %v59, %v57
  %v61 = vmul.f32 %v59, %v58
  %v62 = vmul.f32 %v30, %v60
  %v63 = vmul.f32 %v31, %v61
  %s64 = sld [smem:[#allocation3]]
  %v65 = vstv %s64
  %v66 = vadd.f32 %v62, %v65
  %v67 = vadd.f32 %v63, %v65
  %v68 = vld [vmem:[%s3] sm:$0xff]
  %v69 = vld [vmem:[%s3 + $0x8] sm:$0xff]
  %v70 = vld [vmem:[%s3 + $0x10] sm:$0xff]
  %v71 = vld [vmem:[%s3 + $0x18] sm:$0xff]
  %v72 = vld [vmem:[%s3 + $0x20] sm:$0xff]
  %v73 = vld [vmem:[%s3 + $0x28] sm:$0xff]
  %v74 = vld [vmem:[%s3 + $0x30] sm:$0xff]
  %v75 = vld [vmem:[%s3 + $0x38] sm:$0xff]
  %v76 = vld [vmem:[%s3 + $0x40] sm:$0xff]
  %v77 = vld [vmem:[%s3 + $0x48] sm:$0xff]
  %v78 = vld [vmem:[%s3 + $0x50] sm:$0xff]
  %v79 = vld [vmem:[%s3 + $0x58] sm:$0xff]
  %v80 = vld [vmem:[%s3 + $0x60] sm:$0xff]
  %v81 = vld [vmem:[%s3 + $0x68] sm:$0xff]
  %v82 = vld [vmem:[%s3 + $0x70] sm:$0xff]
  %v83 = vld [vmem:[%s3 + $0x78] sm:$0xff]
  %v84 = vld [vmem:[%s4] sm:$0x1]
  %v86 = vlaneseq
  %v87 = vshrl.u32 %v86, 7
  %v88 = vsub.s32 0, %v87
  %v89 = vrot.slane %v84, %v88
  %91 = vmatprep.subr.mxu0 0.0
  %92 = vmatpush1.msra.mxu0 %v83
  %93 = vmatprep.subr.mxu0 0.0
  %94 = vmatpush1.msra.mxu0 %v82
  %95 = vmatprep.subr.mxu0 0.0
  %96 = vmatpush1.msra.mxu0 %v81
  %97 = vmatprep.subr.mxu0 0.0
  %98 = vmatpush1.msra.mxu0 %v80
  %99 = vmatprep.subr.mxu0 0.0
  %100 = vmatpush1.msra.mxu0 %v79
  %101 = vmatprep.subr.mxu0 0.0
  %102 = vmatpush1.msra.mxu0 %v78
  %103 = vmatprep.subr.mxu0 0.0
  %104 = vmatpush1.msra.mxu0 %v77
  %105 = vmatprep.subr.mxu0 0.0
  %106 = vmatpush1.msra.mxu0 %v76
  %107 = vmatprep.subr.mxu0 0.0
  %108 = vmatpush1.msra.mxu0 %v75
  %109 = vmatprep.subr.mxu0 0.0
  %110 = vmatpush1.msra.mxu0 %v74
  %111 = vmatprep.subr.mxu0 0.0
  %112 = vmatpush1.msra.mxu0 %v73
  %113 = vmatprep.subr.mxu0 0.0
  %114 = vmatpush1.msra.mxu0 %v72
  %115 = vmatprep.subr.mxu0 0.0
  %116 = vmatpush1.msra.mxu0 %v71
  %117 = vmatprep.subr.mxu0 0.0
  %118 = vmatpush1.msra.mxu0 %v70
  %119 = vmatprep.subr.mxu0 0.0
  %120 = vmatpush1.msra.mxu0 %v69
  %121 = vmatprep.subr.mxu0 0.0
  %122 = vmatpush1.msra.mxu0 %v68
  %123 = vmatprep.subr.mxu0 0.0
  %124 = vmatpush2.msra.mxu0 0.0
  %125 = vmatprep.subr.mxu0 0.0
  %126 = vmatpush2.msra.mxu0 0.0
  %127 = vmatprep.subr.mxu0 0.0
  %128 = vmatpush2.msra.mxu0 0.0
  %129 = vmatprep.subr.mxu0 0.0
  %130 = vmatpush2.msra.mxu0 0.0
  %131 = vmatprep.subr.mxu0 0.0
  %132 = vmatpush2.msra.mxu0 0.0
  %133 = vmatprep.subr.mxu0 0.0
  %134 = vmatpush2.msra.mxu0 0.0
  %135 = vmatprep.subr.mxu0 0.0
  %136 = vmatpush2.msra.mxu0 0.0
  %137 = vmatprep.subr.mxu0 0.0
  %138 = vmatpush2.msra.mxu0 0.0
  %139 = vmatprep.subr.mxu0 0.0
  %140 = vmatpush2.msra.mxu0 0.0
  %141 = vmatprep.subr.mxu0 0.0
  %142 = vmatpush2.msra.mxu0 0.0
  %143 = vmatprep.subr.mxu0 0.0
  %144 = vmatpush2.msra.mxu0 0.0
  %145 = vmatprep.subr.mxu0 0.0
  %146 = vmatpush2.msra.mxu0 0.0
  %147 = vmatprep.subr.mxu0 0.0
  %148 = vmatpush2.msra.mxu0 0.0
  %149 = vmatprep.subr.mxu0 0.0
  %150 = vmatpush2.msra.mxu0 0.0
  %151 = vmatprep.subr.mxu0 0.0
  %152 = vmatpush2.msra.mxu0 0.0
  %153 = vmatprep.subr.mxu0 0.0
  %154 = vmatpush2.msra.mxu0 0.0
  %155 = vmatprep.mubr.f32.mxu0 0.0
  %156 = vmatmul.mubr.f32.gmra.mxu0 %v66
  %v157 = vpop.f32.mrf.mxu0
  %v158 = vadd.f32 %v89, %v157
  %v159 = vpop.f32.mrf.mxu0
  %160 = vmatprep.mubr.f32.mxu0 0.0
  %161 = vmatmul.mubr.f32.gmra.mxu0 %v67
  %v162 = vpop.f32.mrf.mxu0
  %v163 = vadd.f32 %v89, %v162
  %v164 = vpop.f32.mrf.mxu0
  %165 = vdwg.mxu0
  %166 = vst [vmem:[%s5] sm:$0xff] %v158
  %167 = vst [vmem:[%s5 + $0x8] sm:$0xff] %v163
  // Predicated region
  $region22: #{decoder_block_forward.8} parent=0 // pred_check
    _
  $region23: #{decoder_block_forward.8} parent=0 // pred_check_branch
    %169 = sbr.rel (0) target = $region25
  $region24: #{decoder_block_forward.8} parent=0 // pred_region
    _
  $region25: #{decoder_block_forward.8} parent=0 // pred_fallthru
    _
  // Predicated region
  $region26: #{decoder_block_forward.8} parent=0 // pred_check
    _
  $region27: #{decoder_block_forward.8} parent=0 // pred_check_branch
    %171 = sbr.rel (0) target = $region29
  $region28: #{decoder_block_forward.8} parent=0 // pred_region
    _
  $region29: #{decoder_block_forward.8} parent=0 // pred_fallthru
    _

// kernel: decoder_block_forward.6
$region0: #{decoder_block_forward.6}
  #allocation0 [shape = 'u32[]', space=smem, size = 0x4, offset = 0x4, fixed_abs, tag = 'smem constant byte address 0x4 - core index']
  #allocation1 [shape = 'u32[144,128]{1,0:T(1,128)}', space=vmem, size = 0x12000, scoped, tag = 'internal scratch']
  #allocation2 [shape = 'f32[1]{0:T(128)S(6)}', space=smem, size = 0x200, scoped, tag = 'scoped memory for decoder_block_forward.6']
  #allocation3 [shape = 'f32[1]{0:T(128)S(6)}', space=smem, size = 0x200, scoped, tag = 'scoped memory for decoder_block_forward.6']
  %s0 = inlined_call_operand.<no memory space> [shape: f32[1], index: 0, kind: input, shape index: {}]
  %s1 = inlined_call_operand.<no memory space> [shape: f32[1], index: 1, kind: input, shape index: {}]
  %s2 = inlined_call_operand.vmem [shape: f32[16,128], index: 2, kind: input, shape index: {}]
  %s3 = inlined_call_operand.hbm [shape: f32[128,384], index: 3, kind: input, shape index: {}]
  %s4 = inlined_call_operand.vmem [shape: f32[1,384], index: 4, kind: input, shape index: {}]
  %s5 = inlined_call_operand.vmem [shape: f32[16,384], index: 5, kind: output, shape index: {}]
  %s6 = sld [smem:[#allocation0]]
  $region34: #{decoder_block_forward.6} parent=0
    _
  %s8 = ssub.s32 1, %s6
  %s9 = scalar_select 0, %s8, %s6
  %10 = sst [smem:[#allocation2]] %s0
  %11 = sst [smem:[#allocation3]] %s1
  $region1: #{decoder_block_forward.6} parent=0
    #allocation4 [shape = 'u8[196608]{0}', space=vmem, size = 0x30000, scoped, tag = 'input window, operand 3, single buffered']
    #allocation5 [shape = 's32[1]{0}', space=sflag, size = 0x4, scoped, tag = 'scoped memory for decoder_block_forward.6']
    %12 = vsyncpa [#allocation5], 0
    // Predicated region
    $region2: #{decoder_block_forward.6} parent=1 // pred_check
      _
    $region3: #{decoder_block_forward.6} parent=1 // pred_check_branch
      %14 = sbr.rel (0) target = $region5
    $region4: #{decoder_block_forward.6} parent=1 // pred_region
      _
    $region5: #{decoder_block_forward.6} parent=1 // pred_fallthru
      _
    // Predicated region
    $region6: #{decoder_block_forward.6} parent=1 // pred_check
      _
    $region7: #{decoder_block_forward.6} parent=1 // pred_check_branch
      %16 = sbr.rel (0) target = $region9
    $region8: #{decoder_block_forward.6} parent=1 // pred_region
      _
    $region9: #{decoder_block_forward.6} parent=1 // pred_fallthru
      _
    // Predicated region
    $region10: #{decoder_block_forward.6} parent=1 // pred_check
      _
    $region11: #{decoder_block_forward.6} parent=1 // pred_check_branch
      %18 = sbr.rel (0) target = $region13
    $region12: #{decoder_block_forward.6} parent=1 // pred_region
      _
    $region13: #{decoder_block_forward.6} parent=1 // pred_fallthru
      _
    // Predicated region
    $region14: #{decoder_block_forward.6} parent=1 // pred_check
      _
    $region15: #{decoder_block_forward.6} parent=1 // pred_check_branch
      %20 = sbr.rel (0) target = $region17
    $region16: #{decoder_block_forward.6} parent=1 // pred_region
      %s22 = ssub.s32 6144, 6144
      %23 = vsyncadd [#allocation5], %s22
      %s24 = sshll.u32 [#allocation4], 4
      %s25 = int_to_ptr.vmem [resolvable:$true] %s24
      %30 = dma.hbm_to_vmem [thread:$0]  %s3, 6144, %s25, [#allocation5], 384, 384, 24
    $region17: #{decoder_block_forward.6} parent=1 // pred_fallthru
      _
    // Predicated region
    $region18: #{decoder_block_forward.6} parent=1 // pred_check
      _
    $region19: #{decoder_block_forward.6} parent=1 // pred_check_branch
      %32 = sbr.rel (0) target = $region21
    $region20: #{decoder_block_forward.6} parent=1 // pred_region
      _
    $region21: #{decoder_block_forward.6} parent=1 // pred_fallthru
      _
    // Predicated region
    $region22: #{decoder_block_forward.6} parent=1 // pred_check
      _
    $region23: #{decoder_block_forward.6} parent=1 // pred_check_branch
      %34 = sbr.rel (0) target = $region25
    $region24: #{decoder_block_forward.6} parent=1 // pred_region
      %35 = dma.done [#allocation5], 6144
    $region25: #{decoder_block_forward.6} parent=1 // pred_fallthru
      _
    %v36 = vld [vmem:[%s2] sm:$0xff]
    %v37 = vld [vmem:[%s2 + $0x8] sm:$0xff]
    %38 = vadd.xlane.f32.xlu0 %v36
    %v39 = vpop.xlane.xlu0 %38
    %40 = vadd.xlane.f32.xlu0 %v37
    %v41 = vpop.xlane.xlu0 %40
    %v42 = vmul.f32 %v39, 0.0078125
    %v43 = vmul.f32 %v41, 0.0078125
    %v44 = vsub.f32 %v36, %v42
    %v45 = vsub.f32 %v37, %v43
    %v46 = vmul.f32 %v44, %v44
    %v47 = vmul.f32 %v45, %v45
    %48 = vadd.xlane.f32.xlu0 %v46
    %v49 = vpop.xlane.xlu0 %48
    %50 = vadd.xlane.f32.xlu0 %v47
    %v51 = vpop.xlane.xlu0 %50
    %v52 = vmul.f32 %v49, 0.007874016
    %v53 = vmul.f32 %v51, 0.007874016
    %s54 = sld [smem:[#allocation2]]
    %v55 = vrsqrt.pop %v52
    %v56 = vmul.f32 %v52, %v55
    %vm57 = vcmp.eq.f32.partialorder %v52, inf
    %v58 = vsel %vm57, %v52, %v56
    %vm59 = vcmp.eq.f32.partialorder %v52, 0.0
    %v60 = vand.u32 %v52, 2147483648
    %v61 = vsel %vm59, %v60, %v58
    %v62 = vrsqrt.pop %v53
    %v63 = vmul.f32 %v53, %v62
    %vm64 = vcmp.eq.f32.partialorder %v53, inf
    %v65 = vsel %vm64, %v53, %v63
    %vm66 = vcmp.eq.f32.partialorder %v53, 0.0
    %v67 = vand.u32 %v53, 2147483648
    %v68 = vsel %vm66, %v67, %v65
    %v69 = vadd.f32 %v61, 1e-06
    %v70 = vadd.f32 %v68, 1e-06
    %v71 = vrcp.pop %v69
    %v72 = vrcp.pop %v70
    %v73 = vstv %s54
    %v74 = vmul.f32 %v73, %v71
    %v75 = vmul.f32 %v73, %v72
    %v76 = vmul.f32 %v44, %v74
    %v77 = vmul.f32 %v45, %v75
    %s78 = sld [smem:[#allocation3]]
    %v79 = vstv %s78
    %v80 = vadd.f32 %v76, %v79
    %v81 = vadd.f32 %v77, %v79
    %v82 = vld [vmem:[#allocation4] sm:$0xff]
    %v83 = vld [vmem:[#allocation4 + $0x8] sm:$0xff]
    %v84 = vld [vmem:[#allocation4 + $0x10] sm:$0xff]
    %v85 = vld [vmem:[#allocation4 + $0x18] sm:$0xff]
    %v86 = vld [vmem:[#allocation4 + $0x20] sm:$0xff]
    %v87 = vld [vmem:[#allocation4 + $0x28] sm:$0xff]
    %v88 = vld [vmem:[#allocation4 + $0x30] sm:$0xff]
    %v89 = vld [vmem:[#allocation4 + $0x38] sm:$0xff]
    %v90 = vld [vmem:[#allocation4 + $0x40] sm:$0xff]
    %v91 = vld [vmem:[#allocation4 + $0x48] sm:$0xff]
    %v92 = vld [vmem:[#allocation4 + $0x50] sm:$0xff]
    %v93 = vld [vmem:[#allocation4 + $0x58] sm:$0xff]
    %v94 = vld [vmem:[#allocation4 + $0x60] sm:$0xff]
    %v95 = vld [vmem:[#allocation4 + $0x68] sm:$0xff]
    %v96 = vld [vmem:[#allocation4 + $0x70] sm:$0xff]
    %v97 = vld [vmem:[#allocation4 + $0x78] sm:$0xff]
    %v98 = vld [vmem:[#allocation4 + $0x80] sm:$0xff]
    %v99 = vld [vmem:[#allocation4 + $0x88] sm:$0xff]
    %v100 = vld [vmem:[#allocation4 + $0x90] sm:$0xff]
    %v101 = vld [vmem:[#allocation4 + $0x98] sm:$0xff]
    %v102 = vld [vmem:[#allocation4 + $0xa0] sm:$0xff]
    %v103 = vld [vmem:[#allocation4 + $0xa8] sm:$0xff]
    %v104 = vld [vmem:[#allocation4 + $0xb0] sm:$0xff]
    %v105 = vld [vmem:[#allocation4 + $0xb8] sm:$0xff]
    %v106 = vld [vmem:[#allocation4 + $0xc0] sm:$0xff]
    %v107 = vld [vmem:[#allocation4 + $0xc8] sm:$0xff]
    %v108 = vld [vmem:[#allocation4 + $0xd0] sm:$0xff]
    %v109 = vld [vmem:[#allocation4 + $0xd8] sm:$0xff]
    %v110 = vld [vmem:[#allocation4 + $0xe0] sm:$0xff]
    %v111 = vld [vmem:[#allocation4 + $0xe8] sm:$0xff]
    %v112 = vld [vmem:[#allocation4 + $0xf0] sm:$0xff]
    %v113 = vld [vmem:[#allocation4 + $0xf8] sm:$0xff]
    %v114 = vld [vmem:[#allocation4 + $0x100] sm:$0xff]
    %v115 = vld [vmem:[#allocation4 + $0x108] sm:$0xff]
    %v116 = vld [vmem:[#allocation4 + $0x110] sm:$0xff]
    %v117 = vld [vmem:[#allocation4 + $0x118] sm:$0xff]
    %v118 = vld [vmem:[#allocation4 + $0x120] sm:$0xff]
    %v119 = vld [vmem:[#allocation4 + $0x128] sm:$0xff]
    %v120 = vld [vmem:[#allocation4 + $0x130] sm:$0xff]
    %v121 = vld [vmem:[#allocation4 + $0x138] sm:$0xff]
    %v122 = vld [vmem:[#allocation4 + $0x140] sm:$0xff]
    %v123 = vld [vmem:[#allocation4 + $0x148] sm:$0xff]
    %v124 = vld [vmem:[#allocation4 + $0x150] sm:$0xff]
    %v125 = vld [vmem:[#allocation4 + $0x158] sm:$0xff]
    %v126 = vld [vmem:[#allocation4 + $0x160] sm:$0xff]
    %v127 = vld [vmem:[#allocation4 + $0x168] sm:$0xff]
    %v128 = vld [vmem:[#allocation4 + $0x170] sm:$0xff]
    %v129 = vld [vmem:[#allocation4 + $0x178] sm:$0xff]
    %v130 = vld [vmem:[%s4] sm:$0x7]
    %v132 = vlaneseq
    %v133 = vshrl.u32 %v132, 7
    %v134 = vsub.s32 0, %v133
    %v135 = vrot.slane %v130, %v134
    %v136 = vlaneseq
    %v137 = vshrl.u32 %v136, 7
    %v138 = vsub.s32 1, %v137
    %v139 = vrot.slane %v130, %v138
    %v140 = vlaneseq
    %v141 = vshrl.u32 %v140, 7
    %v142 = vsub.s32 2, %v141
    %v143 = vrot.slane %v130, %v142
    %147 = vmatprep.subr.mxu0 %v128
    %148 = vmatpush1.msra.mxu0 %v127
    %149 = vmatprep.subr.mxu0 %v125
    %150 = vmatpush1.msra.mxu0 %v124
    %151 = vmatprep.subr.mxu0 %v122
    %152 = vmatpush1.msra.mxu0 %v121
    %153 = vmatprep.subr.mxu0 %v119
    %154 = vmatpush1.msra.mxu0 %v118
    %155 = vmatprep.subr.mxu0 %v116
    %156 = vmatpush1.msra.mxu0 %v115
    %157 = vmatprep.subr.mxu0 %v113
    %158 = vmatpush1.msra.mxu0 %v112
    %159 = vmatprep.subr.mxu0 %v110
    %160 = vmatpush1.msra.mxu0 %v109
    %161 = vmatprep.subr.mxu0 %v107
    %162 = vmatpush1.msra.mxu0 %v106
    %163 = vmatprep.subr.mxu0 %v104
    %164 = vmatpush1.msra.mxu0 %v103
    %165 = vmatprep.subr.mxu0 %v101
    %166 = vmatpush1.msra.mxu0 %v100
    %167 = vmatprep.subr.mxu0 %v98
    %168 = vmatpush1.msra.mxu0 %v97
    %169 = vmatprep.subr.mxu0 %v95
    %170 = vmatpush1.msra.mxu0 %v94
    %171 = vmatprep.subr.mxu0 %v92
    %172 = vmatpush1.msra.mxu0 %v91
    %173 = vmatprep.subr.mxu0 %v89
    %174 = vmatpush1.msra.mxu0 %v88
    %175 = vmatprep.subr.mxu0 %v86
    %176 = vmatpush1.msra.mxu0 %v85
    %177 = vmatprep.subr.mxu0 %v83
    %178 = vmatpush1.msra.mxu0 %v82
    %179 = vmatprep.subr.mxu0 0.0
    %180 = vmatpush2.msra.mxu0 0.0
    %181 = vmatprep.subr.mxu0 0.0
    %182 = vmatpush2.msra.mxu0 0.0
    %183 = vmatprep.subr.mxu0 0.0
    %184 = vmatpush2.msra.mxu0 0.0
    %185 = vmatprep.subr.mxu0 0.0
    %186 = vmatpush2.msra.mxu0 0.0
    %187 = vmatprep.subr.mxu0 0.0
    %188 = vmatpush2.msra.mxu0 0.0
    %189 = vmatprep.subr.mxu0 0.0
    %190 = vmatpush2.msra.mxu0 0.0
    %191 = vmatprep.subr.mxu0 0.0
    %192 = vmatpush2.msra.mxu0 0.0
    %193 = vmatprep.subr.mxu0 0.0
    %194 = vmatpush2.msra.mxu0 0.0
    %195 = vmatprep.subr.mxu0 0.0
    %196 = vmatpush2.msra.mxu0 0.0
    %197 = vmatprep.subr.mxu0 0.0
    %198 = vmatpush2.msra.mxu0 0.0
    %199 = vmatprep.subr.mxu0 0.0
    %200 = vmatpush2.msra.mxu0 0.0
    %201 = vmatprep.subr.mxu0 0.0
    %202 = vmatpush2.msra.mxu0 0.0
    %203 = vmatprep.subr.mxu0 0.0
    %204 = vmatpush2.msra.mxu0 0.0
    %205 = vmatprep.subr.mxu0 0.0
    %206 = vmatpush2.msra.mxu0 0.0
    %207 = vmatprep.subr.mxu0 0.0
    %208 = vmatpush2.msra.mxu0 0.0
    %209 = vmatprep.subr.mxu0 0.0
    %210 = vmatpush2.msra.mxu0 0.0
    %211 = vmatprep.mubr.f32.mxu0 0.0
    %212 = vmatmul.mubr.f32.gmra.mxu0 %v80
    %v213 = vpop.f32.mrf.mxu0
    %v214 = vadd.f32 %v135, %v213
    %v215 = vpop.f32.mrf.mxu0
    %v216 = vadd.f32 %v139, %v215
    %217 = vmatprep.mubr.f32.mxu0 0.0
    %218 = vmatmul.mubr.f32.gmra.mxu0 %v81
    %v219 = vpop.f32.mrf.mxu0
    %v220 = vadd.f32 %v135, %v219
    %v221 = vpop.f32.mrf.mxu0
    %v222 = vadd.f32 %v139, %v221
    %223 = vdwg.mxu0
    %224 = vmatprep.subr.mxu0 0.0
    %225 = vmatpush1.msra.mxu0 %v129
    %226 = vmatprep.subr.mxu0 0.0
    %227 = vmatpush1.msra.mxu0 %v126
    %228 = vmatprep.subr.mxu0 0.0
    %229 = vmatpush1.msra.mxu0 %v123
    %230 = vmatprep.subr.mxu0 0.0
    %231 = vmatpush1.msra.mxu0 %v120
    %232 = vmatprep.subr.mxu0 0.0
    %233 = vmatpush1.msra.mxu0 %v117
    %234 = vmatprep.subr.mxu0 0.0
    %235 = vmatpush1.msra.mxu0 %v114
    %236 = vmatprep.subr.mxu0 0.0
    %237 = vmatpush1.msra.mxu0 %v111
    %238 = vmatprep.subr.mxu0 0.0
    %239 = vmatpush1.msra.mxu0 %v108
    %240 = vmatprep.subr.mxu0 0.0
    %241 = vmatpush1.msra.mxu0 %v105
    %242 = vmatprep.subr.mxu0 0.0
    %243 = vmatpush1.msra.mxu0 %v102
    %244 = vmatprep.subr.mxu0 0.0
    %245 = vmatpush1.msra.mxu0 %v99
    %246 = vmatprep.subr.mxu0 0.0
    %247 = vmatpush1.msra.mxu0 %v96
    %248 = vmatprep.subr.mxu0 0.0
    %249 = vmatpush1.msra.mxu0 %v93
    %250 = vmatprep.subr.mxu0 0.0
    %251 = vmatpush1.msra.mxu0 %v90
    %252 = vmatprep.subr.mxu0 0.0
    %253 = vmatpush1.msra.mxu0 %v87
    %254 = vmatprep.subr.mxu0 0.0
    %255 = vmatpush1.msra.mxu0 %v84
    %256 = vmatprep.subr.mxu0 0.0
    %257 = vmatpush2.msra.mxu0 0.0
    %258 = vmatprep.subr.mxu0 0.0
    %259 = vmatpush2.msra.mxu0 0.0
    %260 = vmatprep.subr.mxu0 0.0
    %261 = vmatpush2.msra.mxu0 0.0
    %262 = vmatprep.subr.mxu0 0.0
    %263 = vmatpush2.msra.mxu0 0.0
    %264 = vmatprep.subr.mxu0 0.0
    %265 = vmatpush2.msra.mxu0 0.0
    %266 = vmatprep.subr.mxu0 0.0
    %267 = vmatpush2.msra.mxu0 0.0
    %268 = vmatprep.subr.mxu0 0.0
    %269 = vmatpush2.msra.mxu0 0.0
    %270 = vmatprep.subr.mxu0 0.0
    %271 = vmatpush2.msra.mxu0 0.0
    %272 = vmatprep.subr.mxu0 0.0
    %273 = vmatpush2.msra.mxu0 0.0
    %274 = vmatprep.subr.mxu0 0.0
    %275 = vmatpush2.msra.mxu0 0.0
    %276 = vmatprep.subr.mxu0 0.0
    %277 = vmatpush2.msra.mxu0 0.0
    %278 = vmatprep.subr.mxu0 0.0
    %279 = vmatpush2.msra.mxu0 0.0
    %280 = vmatprep.subr.mxu0 0.0
    %281 = vmatpush2.msra.mxu0 0.0
    %282 = vmatprep.subr.mxu0 0.0
    %283 = vmatpush2.msra.mxu0 0.0
    %284 = vmatprep.subr.mxu0 0.0
    %285 = vmatpush2.msra.mxu0 0.0
    %286 = vmatprep.subr.mxu0 0.0
    %287 = vmatpush2.msra.mxu0 0.0
    %288 = vmatprep.mubr.f32.mxu0 0.0
    %289 = vmatmul.mubr.f32.gmra.mxu0 %v80
    %v290 = vpop.f32.mrf.mxu0
    %v291 = vadd.f32 %v143, %v290
    %v292 = vpop.f32.mrf.mxu0
    %293 = vmatprep.mubr.f32.mxu0 0.0
    %294 = vmatmul.mubr.f32.gmra.mxu0 %v81
    %v295 = vpop.f32.mrf.mxu0
    %v296 = vadd.f32 %v143, %v295
    %v297 = vpop.f32.mrf.mxu0
    %298 = vdwg.mxu0
    %299 = vst [vmem:[%s5] sm:$0xff] %v214
    %300 = vst [vmem:[%s5 + $0x8] sm:$0xff] %v216
    %301 = vst [vmem:[%s5 + $0x10] sm:$0xff] %v291
    %302 = vst [vmem:[%s5 + $0x18] sm:$0xff] %v220
    %303 = vst [vmem:[%s5 + $0x20] sm:$0xff] %v222
    %304 = vst [vmem:[%s5 + $0x28] sm:$0xff] %v296
    // Predicated region
    $region26: #{decoder_block_forward.6} parent=1 // pred_check
      _
    $region27: #{decoder_block_forward.6} parent=1 // pred_check_branch
      %306 = sbr.rel (0) target = $region29
    $region28: #{decoder_block_forward.6} parent=1 // pred_region
      _
    $region29: #{decoder_block_forward.6} parent=1 // pred_fallthru
      _
    // Predicated region
    $region30: #{decoder_block_forward.6} parent=1 // pred_check
      _
    $region31: #{decoder_block_forward.6} parent=1 // pred_check_branch
      %308 = sbr.rel (0) target = $region33
    $region32: #{decoder_block_forward.6} parent=1 // pred_region
      _
    $region33: #{decoder_block_forward.6} parent=1 // pred_fallthru
      _
    %309 = vsyncpa [#allocation5], 1

// kernel: decoder_block_forward.7
$region0: #{decoder_block_forward.7}
  #allocation0 [shape = 'u32[]', space=smem, size = 0x4, offset = 0x4, fixed_abs, tag = 'smem constant byte address 0x4 - core index']
  #allocation1 [shape = 'u32[144,128]{1,0:T(1,128)}', space=vmem, size = 0x12000, scoped, tag = 'internal scratch']
  %s0 = inlined_call_operand.vmem [shape: f32[2,8,384], index: 0, kind: input, shape index: {}, may-alias: {0,1,2}]
  %s1 = inlined_call_operand.vmem [shape: f32[2,8,384], index: 1, kind: input, shape index: {}, may-alias: {0,1,2}]
  %s2 = inlined_call_operand.vmem [shape: f32[2,8,384], index: 2, kind: input, shape index: {}, may-alias: {0,1,2}]
  %s3 = inlined_call_operand.vmem [shape: s32[2,1,8,8], index: 3, kind: input, shape index: {}]
  %s4 = inlined_call_operand.vmem [shape: f32[2,8,128], index: 4, kind: input, shape index: {}]
  %s5 = inlined_call_operand.vmem [shape: f32[128,128], index: 5, kind: input, shape index: {}]
  %s6 = inlined_call_operand.vmem [shape: f32[1,128], index: 6, kind: input, shape index: {}]
  %s7 = inlined_call_operand.vmem [shape: f32[2,8,128], index: 7, kind: output, shape index: {}]
  %s8 = sld [smem:[#allocation0]]
  $region61: #{decoder_block_forward.7} parent=0
    _
  %s10 = ssub.s32 1, %s8
  %s11 = scalar_select 0, %s10, %s8
  loop: start=0, step=1, limit=4
  $region2: #{decoder_block_forward.7} parent=0 // loop_pre_header
    _
  $region3: #{decoder_block_forward.7} parent=0 // loop_header
    %s13 = sphi 0, %s17
    %p14 = scmp.ge.s32.totalorder %s13, 4
    %s23 = sphi 0, %s25
    %s26 = sphi 0, %s23
    %s27 = sphi 0, %s26
    %s43 = sphi 0, %s27
    %s49 = sphi 0, %s51
    %s52 = sphi 0, %s49
    %s53 = sphi 0, %s52
    %s69 = sphi 0, %s53
    %s75 = sphi 0, %s77
    %s78 = sphi 0, %s75
    %s79 = sphi 0, %s78
    %s95 = sphi 0, %s79
    %s101 = sphi 0, %s103
    %s104 = sphi 0, %s101
    %s105 = sphi 0, %s104
    %s121 = sphi 0, %s105
    %s127 = sphi 0, %s129
    %s130 = sphi 0, %s127
    %s131 = sphi 0, %s130
    %s147 = sphi 0, %s131
    %s151 = sphi 0, %s151
    %s153 = sphi 0, %s151
    %s154 = sphi 0, %s153
    %s168 = sphi 0, %s154
    %s172 = sphi 0, %s172
    %s174 = sphi 0, %s172
    %s175 = sphi 0, %s174
    %s189 = sphi 0, %s175
    %s195 = sphi 0, %s197
    %s198 = sphi 0, %s195
    %s199 = sphi 0, %s198
    %s215 = sphi 0, %s199
  $region4: #{decoder_block_forward.7} parent=0 // loop_header_branch
    %16 = sbr.rel (%p14) target = $region8
  $region5: #{decoder_block_forward.7} parent=0 // loop_body
    %s18 = ssub.s32 %s13, 1
    %s19 = ssub.s32 %s13, 2
    %s20 = sadd.s32 %s13, 1
    %s21 = ssub.s32 %s13, %s20
    %p22 = scmp.eq.s32.totalorder %s21, 0
    %s24 = sadd.s32 %s23, 1
    %s25 = scalar_select %p22, %s23, %s24
    %p28 = pneg %p22
    %p29 = scmp.eq.s32.totalorder %s13, 1
    %p30 = por %p28, %p29
    %p31 = scmp.ne.s32.totalorder %s23, %s26
    %p32 = scmp.eq.s32.totalorder %s13, 0
    %p33 = por %p31, %p32
    %p34 = scmp.ne.s32.totalorder %s23, %s26
    %p35 = scmp.eq.s32.totalorder %s18, 1
    %p36 = por %p34, %p35
    %p37 = scmp.ne.s32.totalorder %s26, %s27
    %p38 = scmp.eq.s32.totalorder %s18, 0
    %p39 = por %p37, %p38
    %p40 = scmp.ne.s32.totalorder %s26, %s27
    %p41 = scmp.eq.s32.totalorder %s19, 1
    %p42 = por %p40, %p41
    %p44 = scmp.ne.s32.totalorder %s27, %s43
    %p45 = scmp.eq.s32.totalorder %s19, 0
    %p46 = por %p44, %p45
    %s47 = ssub.s32 %s13, %s20
    %p48 = scmp.eq.s32.totalorder %s47, 0
    %s50 = sadd.s32 %s49, 1
    %s51 = scalar_select %p48, %s49, %s50
    %p54 = pneg %p48
    %p55 = scmp.eq.s32.totalorder %s13, 1
    %p56 = por %p54, %p55
    %p57 = scmp.ne.s32.totalorder %s49, %s52
    %p58 = scmp.eq.s32.totalorder %s13, 0
    %p59 = por %p57, %p58
    %p60 = scmp.ne.s32.totalorder %s49, %s52
    %p61 = scmp.eq.s32.totalorder %s18, 1
    %p62 = por %p60, %p61
    %p63 = scmp.ne.s32.totalorder %s52, %s53
    %p64 = scmp.eq.s32.totalorder %s18, 0
    %p65 = por %p63, %p64
    %p66 = scmp.ne.s32.totalorder %s52, %s53
    %p67 = scmp.eq.s32.totalorder %s19, 1
    %p68 = por %p66, %p67
    %p70 = scmp.ne.s32.totalorder %s53, %s69
    %p71 = scmp.eq.s32.totalorder %s19, 0
    %p72 = por %p70, %p71
    %s73 = ssub.s32 %s13, %s20
    %p74 = scmp.eq.s32.totalorder %s73, 0
    %s76 = sadd.s32 %s75, 1
    %s77 = scalar_select %p74, %s75, %s76
    %p80 = pneg %p74
    %p81 = scmp.eq.s32.totalorder %s13, 1
    %p82 = por %p80, %p81
    %p83 = scmp.ne.s32.totalorder %s75, %s78
    %p84 = scmp.eq.s32.totalorder %s13, 0
    %p85 = por %p83, %p84
    %p86 = scmp.ne.s32.totalorder %s75, %s78
    %p87 = scmp.eq.s32.totalorder %s18, 1
    %p88 = por %p86, %p87
    %p89 = scmp.ne.s32.totalorder %s78, %s79
    %p90 = scmp.eq.s32.totalorder %s18, 0
    %p91 = por %p89, %p90
    %p92 = scmp.ne.s32.totalorder %s78, %s79
    %p93 = scmp.eq.s32.totalorder %s19, 1
    %p94 = por %p92, %p93
    %p96 = scmp.ne.s32.totalorder %s79, %s95
    %p97 = scmp.eq.s32.totalorder %s19, 0
    %p98 = por %p96, %p97
    %s99 = ssub.s32 %s13, %s20
    %p100 = scmp.eq.s32.totalorder %s99, 0
    %s102 = sadd.s32 %s101, 1
    %s103 = scalar_select %p100, %s101, %s102
    %p106 = pneg %p100
    %p107 = scmp.eq.s32.totalorder %s13, 1
    %p108 = por %p106, %p107
    %p109 = scmp.ne.s32.totalorder %s101, %s104
    %p110 = scmp.eq.s32.totalorder %s13, 0
    %p111 = por %p109, %p110
    %p112 = scmp.ne.s32.totalorder %s101, %s104
    %p113 = scmp.eq.s32.totalorder %s18, 1
    %p114 = por %p112, %p113
    %p115 = scmp.ne.s32.totalorder %s104, %s105
    %p116 = scmp.eq.s32.totalorder %s18, 0
    %p117 = por %p115, %p116
    %p118 = scmp.ne.s32.totalorder %s104, %s105
    %p119 = scmp.eq.s32.totalorder %s19, 1
    %p120 = por %p118, %p119
    %p122 = scmp.ne.s32.totalorder %s105, %s121
    %p123 = scmp.eq.s32.totalorder %s19, 0
    %p124 = por %p122, %p123
    %s125 = ssub.s32 %s13, %s20
    %p126 = scmp.eq.s32.totalorder %s125, 0
    %s128 = sadd.s32 %s127, 1
    %s129 = scalar_select %p126, %s127, %s128
    %p132 = pneg %p126
    %p133 = scmp.eq.s32.totalorder %s13, 1
    %p134 = por %p132, %p133
    %p135 = scmp.ne.s32.totalorder %s127, %s130
    %p136 = scmp.eq.s32.totalorder %s13, 0
    %p137 = por %p135, %p136
    %p138 = scmp.ne.s32.totalorder %s127, %s130
    %p139 = scmp.eq.s32.totalorder %s18, 1
    %p140 = por %p138, %p139
    %p141 = scmp.ne.s32.totalorder %s130, %s131
    %p142 = scmp.eq.s32.totalorder %s18, 0
    %p143 = por %p141, %p142
    %p144 = scmp.ne.s32.totalorder %s130, %s131
    %p145 = scmp.eq.s32.totalorder %s19, 1
    %p146 = por %p144, %p145
    %p148 = scmp.ne.s32.totalorder %s131, %s147
    %p149 = scmp.eq.s32.totalorder %s19, 0
    %p150 = por %p148, %p149
    %s152 = sadd.s32 %s151, 1
    %p155 = scmp.eq.s32.totalorder %s13, 1
    %p156 = scmp.ne.s32.totalorder %s151, %s153
    %p157 = scmp.eq.s32.totalorder %s13, 0
    %p158 = por %p156, %p157
    %p159 = scmp.ne.s32.totalorder %s151, %s153
    %p160 = scmp.eq.s32.totalorder %s18, 1
    %p161 = por %p159, %p160
    %p162 = scmp.ne.s32.totalorder %s153, %s154
    %p163 = scmp.eq.s32.totalorder %s18, 0
    %p164 = por %p162, %p163
    %p165 = scmp.ne.s32.totalorder %s153, %s154
    %p166 = scmp.eq.s32.totalorder %s19, 1
    %p167 = por %p165, %p166
    %p169 = scmp.ne.s32.totalorder %s154, %s168
    %p170 = scmp.eq.s32.totalorder %s19, 0
    %p171 = por %p169, %p170
    %s173 = sadd.s32 %s172, 1
    %p176 = scmp.eq.s32.totalorder %s13, 1
    %p177 = scmp.ne.s32.totalorder %s172, %s174
    %p178 = scmp.eq.s32.totalorder %s13, 0
    %p179 = por %p177, %p178
    %p180 = scmp.ne.s32.totalorder %s172, %s174
    %p181 = scmp.eq.s32.totalorder %s18, 1
    %p182 = por %p180, %p181
    %p183 = scmp.ne.s32.totalorder %s174, %s175
    %p184 = scmp.eq.s32.totalorder %s18, 0
    %p185 = por %p183, %p184
    %p186 = scmp.ne.s32.totalorder %s174, %s175
    %p187 = scmp.eq.s32.totalorder %s19, 1
    %p188 = por %p186, %p187
    %p190 = scmp.ne.s32.totalorder %s175, %s189
    %p191 = scmp.eq.s32.totalorder %s19, 0
    %p192 = por %p190, %p191
    %s193 = ssub.s32 %s13, %s20
    %p194 = scmp.eq.s32.totalorder %s193, 0
    %s196 = sadd.s32 %s195, 1
    %s197 = scalar_select %p194, %s195, %s196
    %p200 = pneg %p194
    %p201 = scmp.eq.s32.totalorder %s13, 1
    %p202 = por %p200, %p201
    %p203 = scmp.ne.s32.totalorder %s195, %s198
    %p204 = scmp.eq.s32.totalorder %s13, 0
    %p205 = por %p203, %p204
    %p206 = scmp.ne.s32.totalorder %s195, %s198
    %p207 = scmp.eq.s32.totalorder %s18, 1
    %p208 = por %p206, %p207
    %p209 = scmp.ne.s32.totalorder %s198, %s199
    %p210 = scmp.eq.s32.totalorder %s18, 0
    %p211 = por %p209, %p210
    %p212 = scmp.ne.s32.totalorder %s198, %s199
    %p213 = scmp.eq.s32.totalorder %s19, 1
    %p214 = por %p212, %p213
    %p216 = scmp.ne.s32.totalorder %s199, %s215
    %p217 = scmp.eq.s32.totalorder %s19, 0
    %p218 = por %p216, %p217
    %p219 = scmp.le.s32.totalorder 1, %s13
    %p220 = scmp.lt.s32.totalorder %s13, 3
    %p221 = pnand %p219, %p220
    %p222 = pneg %p221
    // Predicated region
    $region9: #{decoder_block_forward.7} parent=5 // pred_check
      _
    $region10: #{decoder_block_forward.7} parent=5 // pred_check_branch
      %224 = sbr.rel (%p221) target = $region12
    $region11: #{decoder_block_forward.7} parent=5 // pred_region
      %s225 = ssub.s32 %s13, 1
      // Predicated region
      $region13: #{decoder_block_forward.7} parent=11 // pred_check
        %p226 = pneg %p164
      $region14: #{decoder_block_forward.7} parent=11 // pred_check_branch
        %228 = sbr.rel (%p226) target = $region16
      $region15: #{decoder_block_forward.7} parent=11 // pred_region
        _
      $region16: #{decoder_block_forward.7} parent=11 // pred_fallthru
        _
      // Predicated region
      $region17: #{decoder_block_forward.7} parent=11 // pred_check
        %p229 = pneg %p185
      $region18: #{decoder_block_forward.7} parent=11 // pred_check_branch
        %231 = sbr.rel (%p229) target = $region20
      $region19: #{decoder_block_forward.7} parent=11 // pred_region
        _
      $region20: #{decoder_block_forward.7} parent=11 // pred_fallthru
        _
    $region12: #{decoder_block_forward.7} parent=5 // pred_fallthru
      _
    %p232 = scmp.lt.s32.totalorder %s13, 2
    // Predicated region
    $region21: #{decoder_block_forward.7} parent=5 // pred_check
      %p233 = pneg %p232
    $region22: #{decoder_block_forward.7} parent=5 // pred_check_branch
      %235 = sbr.rel (%p233) target = $region24
    $region23: #{decoder_block_forward.7} parent=5 // pred_region
      // Predicated region
      $region25: #{decoder_block_forward.7} parent=23 // pred_check
        %p236 = pneg %p33
      $region26: #{decoder_block_forward.7} parent=23 // pred_check_branch
        %238 = sbr.rel (%p236) target = $region28
      $region27: #{decoder_block_forward.7} parent=23 // pred_region
        %p239 = scmp.lt.s32.totalorder %s13, 1
        %s240 = scalar_select %p239, %s13, 1
        %s241 = smul.addr %s240, 3
        %s242 = smul.addr %s241, 8
        %s243 = scalar_lea.vmem %s0, %s242
      $region28: #{decoder_block_forward.7} parent=23 // pred_fallthru
        _
      // Predicated region
      $region29: #{decoder_block_forward.7} parent=23 // pred_check
        %p244 = pneg %p59
      $region30: #{decoder_block_forward.7} parent=23 // pred_check_branch
        %246 = sbr.rel (%p244) target = $region32
      $region31: #{decoder_block_forward.7} parent=23 // pred_region
        %p247 = scmp.lt.s32.totalorder %s13, 1
        %s248 = scalar_select %p247, %s13, 1
        %s249 = smul.addr %s248, 3
        %s250 = sadd.s32 1, %s249
        %s251 = smul.addr %s250, 8
        %s252 = scalar_lea.vmem %s1, %s251
      $region32: #{decoder_block_forward.7} parent=23 // pred_fallthru
        _
      // Predicated region
      $region33: #{decoder_block_forward.7} parent=23 // pred_check
        %p253 = pneg %p85
      $region34: #{decoder_block_forward.7} parent=23 // pred_check_branch
        %255 = sbr.rel (%p253) target = $region36
      $region35: #{decoder_block_forward.7} parent=23 // pred_region
        %p256 = scmp.lt.s32.totalorder %s13, 1
        %s257 = scalar_select %p256, %s13, 1
        %s258 = smul.addr %s257, 3
        %s259 = sadd.s32 2, %s258
        %s260 = smul.addr %s259, 8
        %s261 = scalar_lea.vmem %s2, %s260
      $region36: #{decoder_block_forward.7} parent=23 // pred_fallthru
        _
      // Predicated region
      $region37: #{decoder_block_forward.7} parent=23 // pred_check
        %p262 = pneg %p111
      $region38: #{decoder_block_forward.7} parent=23 // pred_check_branch
        %264 = sbr.rel (%p262) target = $region40
      $region39: #{decoder_block_forward.7} parent=23 // pred_region
        %p265 = scmp.lt.s32.totalorder %s13, 1
        %s266 = scalar_select %p265, %s13, 1
        %s267 = smul.addr %s266, 8
        %s268 = scalar_lea.vmem %s3, %s267
      $region40: #{decoder_block_forward.7} parent=23 // pred_fallthru
        _
      // Predicated region
      $region41: #{decoder_block_forward.7} parent=23 // pred_check
        %p269 = pneg %p137
      $region42: #{decoder_block_forward.7} parent=23 // pred_check_branch
        %271 = sbr.rel (%p269) target = $region44
      $region43: #{decoder_block_forward.7} parent=23 // pred_region
        %p272 = scmp.lt.s32.totalorder %s13, 1
        %s273 = scalar_select %p272, %s13, 1
        %s274 = smul.addr %s273, 8
        %s275 = scalar_lea.vmem %s4, %s274
      $region44: #{decoder_block_forward.7} parent=23 // pred_fallthru
        _
    $region24: #{decoder_block_forward.7} parent=5 // pred_fallthru
      _
    %p276 = scmp.le.s32.totalorder 1, %s13
    %p277 = scmp.lt.s32.totalorder %s13, 3
    %p278 = pnand %p276, %p277
    %p279 = pneg %p278
    // Predicated region
    $region45: #{decoder_block_forward.7} parent=5 // pred_check
      _
    $region46: #{decoder_block_forward.7} parent=5 // pred_check_branch
      %281 = sbr.rel (%p278) target = $region48
    $region47: #{decoder_block_forward.7} parent=5 // pred_region
      %s282 = ssub.s32 %s13, 1
      %p283 = scmp.lt.s32.totalorder %s18, 1
      %s284 = scalar_select %p283, %s18, 1
      %s285 = smul.addr %s284, 3
      %s286 = smul.addr %s285, 8
      %s287 = scalar_lea.vmem %s0, %s286
      %p288 = pneg %p39
      %p289 = pneg %p36
      %p290 = scmp.lt.s32.totalorder %s18, 1
      %s291 = scalar_select %p290, %s18, 1
      %s292 = smul.addr %s291, 3
      %s293 = sadd.s32 1, %s292
      %s294 = smul.addr %s293, 8
      %s295 = scalar_lea.vmem %s1, %s294
      %p296 = pneg %p65
      %p297 = pneg %p62
      %p298 = scmp.lt.s32.totalorder %s18, 1
      %s299 = scalar_select %p298, %s18, 1
      %s300 = smul.addr %s299, 3
      %s301 = sadd.s32 2, %s300
      %s302 = smul.addr %s301, 8
      %s303 = scalar_lea.vmem %s2, %s302
      %p304 = pneg %p91
      %p305 = pneg %p88
      %p306 = scmp.lt.s32.totalorder %s18, 1
      %s307 = scalar_select %p306, %s18, 1
      %s308 = smul.addr %s307, 8
      %s309 = scalar_lea.vmem %s3, %s308
      %p310 = pneg %p117
      %p311 = pneg %p114
      %p312 = scmp.lt.s32.totalorder %s18, 1
      %s313 = scalar_select %p312, %s18, 1
      %s314 = smul.addr %s313, 8
      %s315 = scalar_lea.vmem %s4, %s314
      %p316 = pneg %p143
      %p317 = pneg %p140
      %p318 = pneg %p164
      %p319 = pneg %p161
      %p320 = pneg %p185
      %p321 = pneg %p182
      %p322 = pneg %p211
      %p323 = pneg %p208
      %p324 = scmp.lt.s32.totalorder %s18, 1
      %s325 = scalar_select %p324, %s18, 1
      %s326 = smul.addr %s325, 8
      %s327 = scalar_lea.vmem %s7, %s326
      %p328 = scmp.lt.s32.totalorder %s18, 1
      %s329 = scalar_select %p328, %s18, 1
      %s330 = smul.addr %s329, 3
      %s331 = smul.addr %s330, 8
      %s332 = scalar_lea.vmem %s0, %s331
      %p333 = scmp.lt.s32.totalorder %s18, 1
      %s334 = scalar_select %p333, %s18, 1
      %s335 = smul.addr %s334, 3
      %s336 = sadd.s32 1, %s335
      %s337 = smul.addr %s336, 8
      %s338 = scalar_lea.vmem %s1, %s337
      %p339 = scmp.lt.s32.totalorder %s18, 1
      %s340 = scalar_select %p339, %s18, 1
      %s341 = smul.addr %s340, 3
      %s342 = sadd.s32 2, %s341
      %s343 = smul.addr %s342, 8
      %s344 = scalar_lea.vmem %s2, %s343
      %p345 = scmp.lt.s32.totalorder %s18, 1
      %s346 = scalar_select %p345, %s18, 1
      %s347 = smul.addr %s346, 8
      %s348 = scalar_lea.vmem %s3, %s347
      %p349 = scmp.lt.s32.totalorder %s18, 1
      %s350 = scalar_select %p349, %s18, 1
      %s351 = smul.addr %s350, 8
      %s352 = scalar_lea.vmem %s4, %s351
      %p353 = scmp.lt.s32.totalorder %s18, 1
      %s354 = scalar_select %p353, %s18, 1
      %s355 = smul.addr %s354, 8
      %s356 = scalar_lea.vmem %s7, %s355
      %v357 = vld [vmem:[%s332] sm:$0xff]
      %v358 = vld [vmem:[%s338] sm:$0xff]
      %v359 = vld [vmem:[%s344] sm:$0xff]
      %v360 = vld [vmem:[%s348] sm:$0xff]
      %vm361 = vcmp.eq.s32.totalorder %v360, 0
      %v362 = vld [vmem:[%s352] sm:$0xff]
      %v363 = vld [vmem:[%s6] sm:$0x1]
      %v365 = vlaneseq
      %v366 = vshrl.u32 %v365, 7
      %v367 = vsub.s32 0, %v366
      %v368 = vrot.slane %v363, %v367
      %v370 = vadd.f32 %v362, %v368
      %vm371 = vcmask 261120
      %v373 = vsel %vm371, %v357, 0
      %v376 = vsel %vm371, %v358, 0
      %378 = vmatprep.subr.mxu0 0.0
      %379 = vmatpush1.xpose.msra.mxu0 0.0
      %380 = vmatprep.subr.mxu0 0.0
      %381 = vmatpush1.xpose.msra.mxu0 0.0
      %382 = vmatprep.subr.mxu0 0.0
      %383 = vmatpush1.xpose.msra.mxu0 0.0
      %384 = vmatprep.subr.mxu0 0.0
      %385 = vmatpush1.xpose.msra.mxu0 0.0
      %386 = vmatprep.subr.mxu0 0.0
      %387 = vmatpush1.xpose.msra.mxu0 0.0
      %388 = vmatprep.subr.mxu0 0.0
      %389 = vmatpush1.xpose.msra.mxu0 0.0
      %390 = vmatprep.subr.mxu0 0.0
      %391 = vmatpush1.xpose.msra.mxu0 0.0
      %392 = vmatprep.subr.mxu0 0.0
      %393 = vmatpush1.xpose.msra.mxu0 0.0
      %394 = vmatprep.subr.mxu0 0.0
      %395 = vmatpush1.xpose.msra.mxu0 0.0
      %396 = vmatprep.subr.mxu0 0.0
      %397 = vmatpush1.xpose.msra.mxu0 0.0
      %398 = vmatprep.subr.mxu0 0.0
      %399 = vmatpush1.xpose.msra.mxu0 0.0
      %400 = vmatprep.subr.mxu0 0.0
      %401 = vmatpush1.xpose.msra.mxu0 0.0
      %402 = vmatprep.subr.mxu0 0.0
      %403 = vmatpush1.xpose.msra.mxu0 0.0
      %404 = vmatprep.subr.mxu0 0.0
      %405 = vmatpush1.xpose.msra.mxu0 0.0
      %406 = vmatprep.subr.mxu0 0.0
      %407 = vmatpush1.xpose.msra.mxu0 0.0
      %408 = vmatprep.subr.mxu0 0.0
      %409 = vmatpush1.xpose.msra.mxu0 %v376
      %410 = vmatprep.subr.mxu0 0.0
      %411 = vmatpush2.xpose.msra.mxu0 0.0
      %412 = vmatprep.subr.mxu0 0.0
      %413 = vmatpush2.xpose.msra.mxu0 0.0
      %414 = vmatprep.subr.mxu0 0.0
      %415 = vmatpush2.xpose.msra.mxu0 0.0
      %416 = vmatprep.subr.mxu0 0.0
      %417 = vmatpush2.xpose.msra.mxu0 0.0
      %418 = vmatprep.subr.mxu0 0.0
      %419 = vmatpush2.xpose.msra.mxu0 0.0
      %420 = vmatprep.subr.mxu0 0.0
      %421 = vmatpush2.xpose.msra.mxu0 0.0
      %422 = vmatprep.subr.mxu0 0.0
      %423 = vmatpush2.xpose.msra.mxu0 0.0
      %424 = vmatprep.subr.mxu0 0.0
      %425 = vmatpush2.xpose.msra.mxu0 0.0
      %426 = vmatprep.subr.mxu0 0.0
      %427 = vmatpush2.xpose.msra.mxu0 0.0
      %428 = vmatprep.subr.mxu0 0.0
      %429 = vmatpush2.xpose.msra.mxu0 0.0
      %430 = vmatprep.subr.mxu0 0.0
      %431 = vmatpush2.xpose.msra.mxu0 0.0
      %432 = vmatprep.subr.mxu0 0.0
      %433 = vmatpush2.xpose.msra.mxu0 0.0
      %434 = vmatprep.subr.mxu0 0.0
      %435 = vmatpush2.xpose.msra.mxu0 0.0
      %436 = vmatprep.subr.mxu0 0.0
      %437 = vmatpush2.xpose.msra.mxu0 0.0
      %438 = vmatprep.subr.mxu0 0.0
      %439 = vmatpush2.xpose.msra.mxu0 0.0
      %440 = vmatprep.subr.mxu0 0.0
      %441 = vmatpush2.xpose.msra.mxu0 0.0
      %442 = vmatprep.mubr.f32.mxu0 0.0
      %443 = vmatmul.mubr.f32.gmra.mxu0 %v373
      %v444 = vpop.f32.mrf.mxu0
      %v445 = vadd.f32 0.0, %v444
      %v446 = vpop.f32.mrf.mxu0
      %447 = vdwg.mxu0
      %v448 = vmul.f32 %v445, 0.17677669
      %v449 = vsel %vm361, -1e+09, %v448
      %vm450 = vcmask 64512
      %v451 = vsel %vm450, %v449, -inf
      %452 = vmax.xlane.f32.xlu0 %v451
      %v453 = vpop.xlane.xlu0 %452
      %v454 = vsub.f32 %v449, %v453
      %v455 = vmul.f32 %v454, 1.442695
      %v456 = vpow.pop %v455
      %v457 = vsel %vm450, %v456, 0.0
      %458 = vadd.xlane.f32.xlu0 %v457
      %v459 = vpop.xlane.xlu0 %458
      %v461 = vsel %vm450, %v456, 0
      %463 = vmatprep.subr.mxu0 0.0
      %464 = vmatpush1.msra.mxu0 0.0
      %465 = vmatprep.subr.mxu0 0.0
      %466 = vmatpush1.msra.mxu0 0.0
      %467 = vmatprep.subr.mxu0 0.0
      %468 = vmatpush1.msra.mxu0 0.0
      %469 = vmatprep.subr.mxu0 0.0
      %470 = vmatpush1.msra.mxu0 0.0
      %471 = vmatprep.subr.mxu0 0.0
      %472 = vmatpush1.msra.mxu0 0.0
      %473 = vmatprep.subr.mxu0 0.0
      %474 = vmatpush1.msra.mxu0 0.0
      %475 = vmatprep.subr.mxu0 0.0
      %476 = vmatpush1.msra.mxu0 0.0
      %477 = vmatprep.subr.mxu0 0.0
      %478 = vmatpush1.msra.mxu0 0.0
      %479 = vmatprep.subr.mxu0 0.0
      %480 = vmatpush1.msra.mxu0 0.0
      %481 = vmatprep.subr.mxu0 0.0
      %482 = vmatpush1.msra.mxu0 0.0
      %483 = vmatprep.subr.mxu0 0.0
      %484 = vmatpush1.msra.mxu0 0.0
      %485 = vmatprep.subr.mxu0 0.0
      %486 = vmatpush1.msra.mxu0 0.0
      %487 = vmatprep.subr.mxu0 0.0
      %488 = vmatpush1.msra.mxu0 0.0
      %489 = vmatprep.subr.mxu0 0.0
      %490 = vmatpush1.msra.mxu0 0.0
      %491 = vmatprep.subr.mxu0 0.0
      %492 = vmatpush1.msra.mxu0 0.0
      %493 = vmatprep.subr.mxu0 0.0
      %494 = vmatpush1.msra.mxu0 %v359
      %495 = vmatprep.subr.mxu0 0.0
      %496 = vmatpush2.msra.mxu0 0.0
      %497 = vmatprep.subr.mxu0 0.0
      %498 = vmatpush2.msra.mxu0 0.0
      %499 = vmatprep.subr.mxu0 0.0
      %500 = vmatpush2.msra.mxu0 0.0
      %501 = vmatprep.subr.mxu0 0.0
      %502 = vmatpush2.msra.mxu0 0.0
      %503 = vmatprep.subr.mxu0 0.0
      %504 = vmatpush2.msra.mxu0 0.0
      %505 = vmatprep.subr.mxu0 0.0
      %506 = vmatpush2.msra.mxu0 0.0
      %507 = vmatprep.subr.mxu0 0.0
      %508 = vmatpush2.msra.mxu0 0.0
      %509 = vmatprep.subr.mxu0 0.0
      %510 = vmatpush2.msra.mxu0 0.0
      %511 = vmatprep.subr.mxu0 0.0
      %512 = vmatpush2.msra.mxu0 0.0
      %513 = vmatprep.subr.mxu0 0.0
      %514 = vmatpush2.msra.mxu0 0.0
      %515 = vmatprep.subr.mxu0 0.0
      %516 = vmatpush2.msra.mxu0 0.0
      %517 = vmatprep.subr.mxu0 0.0
      %518 = vmatpush2.msra.mxu0 0.0
      %519 = vmatprep.subr.mxu0 0.0
      %520 = vmatpush2.msra.mxu0 0.0
      %521 = vmatprep.subr.mxu0 0.0
      %522 = vmatpush2.msra.mxu0 0.0
      %523 = vmatprep.subr.mxu0 0.0
      %524 = vmatpush2.msra.mxu0 0.0
      %525 = vmatprep.subr.mxu0 0.0
      %526 = vmatpush2.msra.mxu0 0.0
      %527 = vmatprep.mubr.f32.mxu0 0.0
      %528 = vmatmul.mubr.f32.gmra.mxu0 %v461
      %v529 = vpop.f32.mrf.mxu0
      %v530 = vadd.f32 0.0, %v529
      %v531 = vpop.f32.mrf.mxu0
      %532 = vdwg.mxu0
      %v533 = vrcp.pop %v459
      %v534 = vmul.f32 %v530, %v533
      %v535 = vld [vmem:[%s5] sm:$0xff]
      %v536 = vld [vmem:[%s5 + $0x8] sm:$0xff]
      %v537 = vld [vmem:[%s5 + $0x10] sm:$0xff]
      %v538 = vld [vmem:[%s5 + $0x18] sm:$0xff]
      %v540 = vsel %vm371, %v534, 0
      %542 = vmatprep.subr.mxu0 0.0
      %543 = vmatpush1.msra.mxu0 0.0
      %544 = vmatprep.subr.mxu0 0.0
      %545 = vmatpush1.msra.mxu0 0.0
      %546 = vmatprep.subr.mxu0 0.0
      %547 = vmatpush1.msra.mxu0 0.0
      %548 = vmatprep.subr.mxu0 0.0
      %549 = vmatpush1.msra.mxu0 0.0
      %550 = vmatprep.subr.mxu0 0.0
      %551 = vmatpush1.msra.mxu0 0.0
      %552 = vmatprep.subr.mxu0 0.0
      %553 = vmatpush1.msra.mxu0 0.0
      %554 = vmatprep.subr.mxu0 0.0
      %555 = vmatpush1.msra.mxu0 0.0
      %556 = vmatprep.subr.mxu0 0.0
      %557 = vmatpush1.msra.mxu0 0.0
      %558 = vmatprep.subr.mxu0 0.0
      %559 = vmatpush1.msra.mxu0 0.0
      %560 = vmatprep.subr.mxu0 0.0
      %561 = vmatpush1.msra.mxu0 0.0
      %562 = vmatprep.subr.mxu0 0.0
      %563 = vmatpush1.msra.mxu0 0.0
      %564 = vmatprep.subr.mxu0 0.0
      %565 = vmatpush1.msra.mxu0 0.0
      %566 = vmatprep.subr.mxu0 0.0
      %567 = vmatpush1.msra.mxu0 %v538
      %568 = vmatprep.subr.mxu0 0.0
      %569 = vmatpush1.msra.mxu0 %v537
      %570 = vmatprep.subr.mxu0 0.0
      %571 = vmatpush1.msra.mxu0 %v536
      %572 = vmatprep.subr.mxu0 0.0
      %573 = vmatpush1.msra.mxu0 %v535
      %574 = vmatprep.subr.mxu0 0.0
      %575 = vmatpush2.msra.mxu0 0.0
      %576 = vmatprep.subr.mxu0 0.0
      %577 = vmatpush2.msra.mxu0 0.0
      %578 = vmatprep.subr.mxu0 0.0
      %579 = vmatpush2.msra.mxu0 0.0
      %580 = vmatprep.subr.mxu0 0.0
      %581 = vmatpush2.msra.mxu0 0.0
      %582 = vmatprep.subr.mxu0 0.0
      %583 = vmatpush2.msra.mxu0 0.0
      %584 = vmatprep.subr.mxu0 0.0
      %585 = vmatpush2.msra.mxu0 0.0
      %586 = vmatprep.subr.mxu0 0.0
      %587 = vmatpush2.msra.mxu0 0.0
      %588 = vmatprep.subr.mxu0 0.0
      %589 = vmatpush2.msra.mxu0 0.0
      %590 = vmatprep.subr.mxu0 0.0
      %591 = vmatpush2.msra.mxu0 0.0
      %592 = vmatprep.subr.mxu0 0.0
      %593 = vmatpush2.msra.mxu0 0.0
      %594 = vmatprep.subr.mxu0 0.0
      %595 = vmatpush2.msra.mxu0 0.0
      %596 = vmatprep.subr.mxu0 0.0
      %597 = vmatpush2.msra.mxu0 0.0
      %598 = vmatprep.subr.mxu0 0.0
      %599 = vmatpush2.msra.mxu0 0.0
      %600 = vmatprep.subr.mxu0 0.0
      %601 = vmatpush2.msra.mxu0 0.0
      %602 = vmatprep.subr.mxu0 0.0
      %603 = vmatpush2.msra.mxu0 0.0
      %604 = vmatprep.subr.mxu0 0.0
      %605 = vmatpush2.msra.mxu0 0.0
      %606 = vmatprep.mubr.f32.mxu0 0.0
      %607 = vmatmul.mubr.f32.gmra.mxu0 %v540
      %v608 = vpop.f32.mrf.mxu0
      %v609 = vadd.f32 0.0, %v608
      %v610 = vpop.f32.mrf.mxu0
      %611 = vdwg.mxu0
      %v612 = vadd.f32 %v370, %v609
      %613 = vrot.lane.b32.xlu0 %v357, 96
      %v614 = vpop.permute.xlu0 %613
      %615 = vrot.lane.b32.xlu0 %v358, 96
      %v616 = vpop.permute.xlu0 %615
      %v617 = vsel %vm371, %v614, 0
      %v619 = vsel %vm371, %v616, 0
      %621 = vmatprep.subr.mxu0 0.0
      %622 = vmatpush1.xpose.msra.mxu0 0.0
      %623 = vmatprep.subr.mxu0 0.0
      %624 = vmatpush1.xpose.msra.mxu0 0.0
      %625 = vmatprep.subr.mxu0 0.0
      %626 = vmatpush1.xpose.msra.mxu0 0.0
      %627 = vmatprep.subr.mxu0 0.0
      %628 = vmatpush1.xpose.msra.mxu0 0.0
      %629 = vmatprep.subr.mxu0 0.0
      %630 = vmatpush1.xpose.msra.mxu0 0.0
      %631 = vmatprep.subr.mxu0 0.0
      %632 = vmatpush1.xpose.msra.mxu0 0.0
      %633 = vmatprep.subr.mxu0 0.0
      %634 = vmatpush1.xpose.msra.mxu0 0.0
      %635 = vmatprep.subr.mxu0 0.0
      %636 = vmatpush1.xpose.msra.mxu0 0.0
      %637 = vmatprep.subr.mxu0 0.0
      %638 = vmatpush1.xpose.msra.mxu0 0.0
      %639 = vmatprep.subr.mxu0 0.0
      %640 = vmatpush1.xpose.msra.mxu0 0.0
      %641 = vmatprep.subr.mxu0 0.0
      %642 = vmatpush1.xpose.msra.mxu0 0.0
      %643 = vmatprep.subr.mxu0 0.0
      %644 = vmatpush1.xpose.msra.mxu0 0.0
      %645 = vmatprep.subr.mxu0 0.0
      %646 = vmatpush1.xpose.msra.mxu0 0.0
      %647 = vmatprep.subr.mxu0 0.0
      %648 = vmatpush1.xpose.msra.mxu0 0.0
      %649 = vmatprep.subr.mxu0 0.0
      %650 = vmatpush1.xpose.msra.mxu0 0.0
      %651 = vmatprep.subr.mxu0 0.0
      %652 = vmatpush1.xpose.msra.mxu0 %v619
      %653 = vmatprep.subr.mxu0 0.0
      %654 = vmatpush2.xpose.msra.mxu0 0.0
      %655 = vmatprep.subr.mxu0 0.0
      %656 = vmatpush2.xpose.msra.mxu0 0.0
      %657 = vmatprep.subr.mxu0 0.0
      %658 = vmatpush2.xpose.msra.mxu0 0.0
      %659 = vmatprep.subr.mxu0 0.0
      %660 = vmatpush2.xpose.msra.mxu0 0.0
      %661 = vmatprep.subr.mxu0 0.0
      %662 = vmatpush2.xpose.msra.mxu0 0.0
      %663 = vmatprep.subr.mxu0 0.0
      %664 = vmatpush2.xpose.msra.mxu0 0.0
      %665 = vmatprep.subr.mxu0 0.0
      %666 = vmatpush2.xpose.msra.mxu0 0.0
      %667 = vmatprep.subr.mxu0 0.0
      %668 = vmatpush2.xpose.msra.mxu0 0.0
      %669 = vmatprep.subr.mxu0 0.0
      %670 = vmatpush2.xpose.msra.mxu0 0.0
      %671 = vmatprep.subr.mxu0 0.0
      %672 = vmatpush2.xpose.msra.mxu0 0.0
      %673 = vmatprep.subr.mxu0 0.0
      %674 = vmatpush2.xpose.msra.mxu0 0.0
      %675 = vmatprep.subr.mxu0 0.0
      %676 = vmatpush2.xpose.msra.mxu0 0.0
      %677 = vmatprep.subr.mxu0 0.0
      %678 = vmatpush2.xpose.msra.mxu0 0.0
      %679 = vmatprep.subr.mxu0 0.0
      %680 = vmatpush2.xpose.msra.mxu0 0.0
      %681 = vmatprep.subr.mxu0 0.0
      %682 = vmatpush2.xpose.msra.mxu0 0.0
      %683 = vmatprep.subr.mxu0 0.0
      %684 = vmatpush2.xpose.msra.mxu0 0.0
      %685 = vmatprep.mubr.f32.mxu0 0.0
      %686 = vmatmul.mubr.f32.gmra.mxu0 %v617
      %v687 = vpop.f32.mrf.mxu0
      %v688 = vadd.f32 0.0, %v687
      %v689 = vpop.f32.mrf.mxu0
      %690 = vdwg.mxu0
      %v691 = vmul.f32 %v688, 0.17677669
      %v692 = vsel %vm361, -1e+09, %v691
      %v693 = vsel %vm450, %v692, -inf
      %694 = vmax.xlane.f32.xlu0 %v693
      %v695 = vpop.xlane.xlu0 %694
      %v696 = vsub.f32 %v692, %v695
      %v697 = vmul.f32 %v696, 1.442695
      %v698 = vpow.pop %v697
      %v699 = vsel %vm450, %v698, 0.0
      %700 = vadd.xlane.f32.xlu0 %v699
      %v701 = vpop.xlane.xlu0 %700
      %703 = vrot.lane.b32.xlu0 %v359, 96
      %v704 = vpop.permute.xlu0 %703
      %v707 = vsel %vm450, %v698, 0
      %709 = vmatprep.subr.mxu0 0.0
      %710 = vmatpush1.msra.mxu0 0.0
      %711 = vmatprep.subr.mxu0 0.0
      %712 = vmatpush1.msra.mxu0 0.0
      %713 = vmatprep.subr.mxu0 0.0
      %714 = vmatpush1.msra.mxu0 0.0
      %715 = vmatprep.subr.mxu0 0.0
      %716 = vmatpush1.msra.mxu0 0.0
      %717 = vmatprep.subr.mxu0 0.0
      %718 = vmatpush1.msra.mxu0 0.0
      %719 = vmatprep.subr.mxu0 0.0
      %720 = vmatpush1.msra.mxu0 0.0
      %721 = vmatprep.subr.mxu0 0.0
      %722 = vmatpush1.msra.mxu0 0.0
      %723 = vmatprep.subr.mxu0 0.0
      %724 = vmatpush1.msra.mxu0 0.0
      %725 = vmatprep.subr.mxu0 0.0
      %726 = vmatpush1.msra.mxu0 0.0
      %727 = vmatprep.subr.mxu0 0.0
      %728 = vmatpush1.msra.mxu0 0.0
      %729 = vmatprep.subr.mxu0 0.0
      %730 = vmatpush1.msra.mxu0 0.0
      %731 = vmatprep.subr.mxu0 0.0
      %732 = vmatpush1.msra.mxu0 0.0
      %733 = vmatprep.subr.mxu0 0.0
      %734 = vmatpush1.msra.mxu0 0.0
      %735 = vmatprep.subr.mxu0 0.0
      %736 = vmatpush1.msra.mxu0 0.0
      %737 = vmatprep.subr.mxu0 0.0
      %738 = vmatpush1.msra.mxu0 0.0
      %739 = vmatprep.subr.mxu0 0.0
      %740 = vmatpush1.msra.mxu0 %v704
      %741 = vmatprep.subr.mxu0 0.0
      %742 = vmatpush2.msra.mxu0 0.0
      %743 = vmatprep.subr.mxu0 0.0
      %744 = vmatpush2.msra.mxu0 0.0
      %745 = vmatprep.subr.mxu0 0.0
      %746 = vmatpush2.msra.mxu0 0.0
      %747 = vmatprep.subr.mxu0 0.0
      %748 = vmatpush2.msra.mxu0 0.0
      %749 = vmatprep.subr.mxu0 0.0
      %750 = vmatpush2.msra.mxu0 0.0
      %751 = vmatprep.subr.mxu0 0.0
      %752 = vmatpush2.msra.mxu0 0.0
      %753 = vmatprep.subr.mxu0 0.0
      %754 = vmatpush2.msra.mxu0 0.0
      %755 = vmatprep.subr.mxu0 0.0
      %756 = vmatpush2.msra.mxu0 0.0
      %757 = vmatprep.subr.mxu0 0.0
      %758 = vmatpush2.msra.mxu0 0.0
      %759 = vmatprep.subr.mxu0 0.0
      %760 = vmatpush2.msra.mxu0 0.0
      %761 = vmatprep.subr.mxu0 0.0
      %762 = vmatpush2.msra.mxu0 0.0
      %763 = vmatprep.subr.mxu0 0.0
      %764 = vmatpush2.msra.mxu0 0.0
      %765 = vmatprep.subr.mxu0 0.0
      %766 = vmatpush2.msra.mxu0 0.0
      %767 = vmatprep.subr.mxu0 0.0
      %768 = vmatpush2.msra.mxu0 0.0
      %769 = vmatprep.subr.mxu0 0.0
      %770 = vmatpush2.msra.mxu0 0.0
      %771 = vmatprep.subr.mxu0 0.0
      %772 = vmatpush2.msra.mxu0 0.0
      %773 = vmatprep.mubr.f32.mxu0 0.0
      %774 = vmatmul.mubr.f32.gmra.mxu0 %v707
      %v775 = vpop.f32.mrf.mxu0
      %v776 = vadd.f32 0.0, %v775
      %v777 = vpop.f32.mrf.mxu0
      %778 = vdwg.mxu0
      %v779 = vrcp.pop %v701
      %v780 = vmul.f32 %v776, %v779
      %v781 = vld [vmem:[%s5 + $0x20] sm:$0xff]
      %v782 = vld [vmem:[%s5 + $0x28] sm:$0xff]
      %v783 = vld [vmem:[%s5 + $0x30] sm:$0xff]
      %v784 = vld [vmem:[%s5 + $0x38] sm:$0xff]
      %v786 = vsel %vm371, %v780, 0
      %788 = vmatprep.subr.mxu0 0.0
      %789 = vmatpush1.msra.mxu0 0.0
      %790 = vmatprep.subr.mxu0 0.0
      %791 = vmatpush1.msra.mxu0 0.0
      %792 = vmatprep.subr.mxu0 0.0
      %793 = vmatpush1.msra.mxu0 0.0
      %794 = vmatprep.subr.mxu0 0.0
      %795 = vmatpush1.msra.mxu0 0.0
      %796 = vmatprep.subr.mxu0 0.0
      %797 = vmatpush1.msra.mxu0 0.0
      %798 = vmatprep.subr.mxu0 0.0
      %799 = vmatpush1.msra.mxu0 0.0
      %800 = vmatprep.subr.mxu0 0.0
      %801 = vmatpush1.msra.mxu0 0.0
      %802 = vmatprep.subr.mxu0 0.0
      %803 = vmatpush1.msra.mxu0 0.0
      %804 = vmatprep.subr.mxu0 0.0
      %805 = vmatpush1.msra.mxu0 0.0
      %806 = vmatprep.subr.mxu0 0.0
      %807 = vmatpush1.msra.mxu0 0.0
      %808 = vmatprep.subr.mxu0 0.0
      %809 = vmatpush1.msra.mxu0 0.0
      %810 = vmatprep.subr.mxu0 0.0
      %811 = vmatpush1.msra.mxu0 0.0
      %812 = vmatprep.subr.mxu0 0.0
      %813 = vmatpush1.msra.mxu0 %v784
      %814 = vmatprep.subr.mxu0 0.0
      %815 = vmatpush1.msra.mxu0 %v783
      %816 = vmatprep.subr.mxu0 0.0
      %817 = vmatpush1.msra.mxu0 %v782
      %818 = vmatprep.subr.mxu0 0.0
      %819 = vmatpush1.msra.mxu0 %v781
      %820 = vmatprep.subr.mxu0 0.0
      %821 = vmatpush2.msra.mxu0 0.0
      %822 = vmatprep.subr.mxu0 0.0
      %823 = vmatpush2.msra.mxu0 0.0
      %824 = vmatprep.subr.mxu0 0.0
      %825 = vmatpush2.msra.mxu0 0.0
      %826 = vmatprep.subr.mxu0 0.0
      %827 = vmatpush2.msra.mxu0 0.0
      %828 = vmatprep.subr.mxu0 0.0
      %829 = vmatpush2.msra.mxu0 0.0
      %830 = vmatprep.subr.mxu0 0.0
      %831 = vmatpush2.msra.mxu0 0.0
      %832 = vmatprep.subr.mxu0 0.0
      %833 = vmatpush2.msra.mxu0 0.0
      %834 = vmatprep.subr.mxu0 0.0
      %835 = vmatpush2.msra.mxu0 0.0
      %836 = vmatprep.subr.mxu0 0.0
      %837 = vmatpush2.msra.mxu0 0.0
      %838 = vmatprep.subr.mxu0 0.0
      %839 = vmatpush2.msra.mxu0 0.0
      %840 = vmatprep.subr.mxu0 0.0
      %841 = vmatpush2.msra.mxu0 0.0
      %842 = vmatprep.subr.mxu0 0.0
      %843 = vmatpush2.msra.mxu0 0.0
      %844 = vmatprep.subr.mxu0 0.0
      %845 = vmatpush2.msra.mxu0 0.0
      %846 = vmatprep.subr.mxu0 0.0
      %847 = vmatpush2.msra.mxu0 0.0
      %848 = vmatprep.subr.mxu0 0.0
      %849 = vmatpush2.msra.mxu0 0.0
      %850 = vmatprep.subr.mxu0 0.0
      %851 = vmatpush2.msra.mxu0 0.0
      %852 = vmatprep.mubr.f32.mxu0 0.0
      %853 = vmatmul.mubr.f32.gmra.mxu0 %v786
      %v854 = vpop.f32.mrf.mxu0
      %v855 = vadd.f32 0.0, %v854
      %v856 = vpop.f32.mrf.mxu0
      %857 = vdwg.mxu0
      %v858 = vadd.f32 %v612, %v855
      %859 = vrot.lane.b32.xlu0 %v357, 64
      %v860 = vpop.permute.xlu0 %859
      %861 = vrot.lane.b32.xlu0 %v358, 64
      %v862 = vpop.permute.xlu0 %861
      %v863 = vsel %vm371, %v860, 0
      %v865 = vsel %vm371, %v862, 0
      %867 = vmatprep.subr.mxu0 0.0
      %868 = vmatpush1.xpose.msra.mxu0 0.0
      %869 = vmatprep.subr.mxu0 0.0
      %870 = vmatpush1.xpose.msra.mxu0 0.0
      %871 = vmatprep.subr.mxu0 0.0
      %872 = vmatpush1.xpose.msra.mxu0 0.0
      %873 = vmatprep.subr.mxu0 0.0
      %874 = vmatpush1.xpose.msra.mxu0 0.0
      %875 = vmatprep.subr.mxu0 0.0
      %876 = vmatpush1.xpose.msra.mxu0 0.0
      %877 = vmatprep.subr.mxu0 0.0
      %878 = vmatpush1.xpose.msra.mxu0 0.0
      %879 = vmatprep.subr.mxu0 0.0
      %880 = vmatpush1.xpose.msra.mxu0 0.0
      %881 = vmatprep.subr.mxu0 0.0
      %882 = vmatpush1.xpose.msra.mxu0 0.0
      %883 = vmatprep.subr.mxu0 0.0
      %884 = vmatpush1.xpose.msra.mxu0 0.0
      %885 = vmatprep.subr.mxu0 0.0
      %886 = vmatpush1.xpose.msra.mxu0 0.0
      %887 = vmatprep.subr.mxu0 0.0
      %888 = vmatpush1.xpose.msra.mxu0 0.0
      %889 = vmatprep.subr.mxu0 0.0
      %890 = vmatpush1.xpose.msra.mxu0 0.0
      %891 = vmatprep.subr.mxu0 0.0
      %892 = vmatpush1.xpose.msra.mxu0 0.0
      %893 = vmatprep.subr.mxu0 0.0
      %894 = vmatpush1.xpose.msra.mxu0 0.0
      %895 = vmatprep.subr.mxu0 0.0
      %896 = vmatpush1.xpose.msra.mxu0 0.0
      %897 = vmatprep.subr.mxu0 0.0
      %898 = vmatpush1.xpose.msra.mxu0 %v865
      %899 = vmatprep.subr.mxu0 0.0
      %900 = vmatpush2.xpose.msra.mxu0 0.0
      %901 = vmatprep.subr.mxu0 0.0
      %902 = vmatpush2.xpose.msra.mxu0 0.0
      %903 = vmatprep.subr.mxu0 0.0
      %904 = vmatpush2.xpose.msra.mxu0 0.0
      %905 = vmatprep.subr.mxu0 0.0
      %906 = vmatpush2.xpose.msra.mxu0 0.0
      %907 = vmatprep.subr.mxu0 0.0
      %908 = vmatpush2.xpose.msra.mxu0 0.0
      %909 = vmatprep.subr.mxu0 0.0
      %910 = vmatpush2.xpose.msra.mxu0 0.0
      %911 = vmatprep.subr.mxu0 0.0
      %912 = vmatpush2.xpose.msra.mxu0 0.0
      %913 = vmatprep.subr.mxu0 0.0
      %914 = vmatpush2.xpose.msra.mxu0 0.0
      %915 = vmatprep.subr.mxu0 0.0
      %916 = vmatpush2.xpose.msra.mxu0 0.0
      %917 = vmatprep.subr.mxu0 0.0
      %918 = vmatpush2.xpose.msra.mxu0 0.0
      %919 = vmatprep.subr.mxu0 0.0
      %920 = vmatpush2.xpose.msra.mxu0 0.0
      %921 = vmatprep.subr.mxu0 0.0
      %922 = vmatpush2.xpose.msra.mxu0 0.0
      %923 = vmatprep.subr.mxu0 0.0
      %924 = vmatpush2.xpose.msra.mxu0 0.0
      %925 = vmatprep.subr.mxu0 0.0
      %926 = vmatpush2.xpose.msra.mxu0 0.0
      %927 = vmatprep.subr.mxu0 0.0
      %928 = vmatpush2.xpose.msra.mxu0 0.0
      %929 = vmatprep.subr.mxu0 0.0
      %930 = vmatpush2.xpose.msra.mxu0 0.0
      %931 = vmatprep.mubr.f32.mxu0 0.0
      %932 = vmatmul.mubr.f32.gmra.mxu0 %v863
      %v933 = vpop.f32.mrf.mxu0
      %v934 = vadd.f32 0.0, %v933
      %v935 = vpop.f32.mrf.mxu0
      %936 = vdwg.mxu0
      %v937 = vmul.f32 %v934, 0.17677669
      %v938 = vsel %vm361, -1e+09, %v937
      %v939 = vsel %vm450, %v938, -inf
      %940 = vmax.xlane.f32.xlu0 %v939
      %v941 = vpop.xlane.xlu0 %940
      %v942 = vsub.f32 %v938, %v941
      %v943 = vmul.f32 %v942, 1.442695
      %v944 = vpow.pop %v943
      %v945 = vsel %vm450, %v944, 0.0
      %946 = vadd.xlane.f32.xlu0 %v945
      %v947 = vpop.xlane.xlu0 %946
      %948 = vrot.lane.b32.xlu0 %v359, 64
      %v949 = vpop.permute.xlu0 %948
      %v952 = vsel %vm450, %v944, 0
      %954 = vmatprep.subr.mxu0 0.0
      %955 = vmatpush1.msra.mxu0 0.0
      %956 = vmatprep.subr.mxu0 0.0
      %957 = vmatpush1.msra.mxu0 0.0
      %958 = vmatprep.subr.mxu0 0.0
      %959 = vmatpush1.msra.mxu0 0.0
      %960 = vmatprep.subr.mxu0 0.0
      %961 = vmatpush1.msra.mxu0 0.0
      %962 = vmatprep.subr.mxu0 0.0
      %963 = vmatpush1.msra.mxu0 0.0
      %964 = vmatprep.subr.mxu0 0.0
      %965 = vmatpush1.msra.mxu0 0.0
      %966 = vmatprep.subr.mxu0 0.0
      %967 = vmatpush1.msra.mxu0 0.0
      %968 = vmatprep.subr.mxu0 0.0
      %969 = vmatpush1.msra.mxu0 0.0
      %970 = vmatprep.subr.mxu0 0.0
      %971 = vmatpush1.msra.mxu0 0.0
      %972 = vmatprep.subr.mxu0 0.0
      %973 = vmatpush1.msra.mxu0 0.0
      %974 = vmatprep.subr.mxu0 0.0
      %975 = vmatpush1.msra.mxu0 0.0
      %976 = vmatprep.subr.mxu0 0.0
      %977 = vmatpush1.msra.mxu0 0.0
      %978 = vmatprep.subr.mxu0 0.0
      %979 = vmatpush1.msra.mxu0 0.0
      %980 = vmatprep.subr.mxu0 0.0
      %981 = vmatpush1.msra.mxu0 0.0
      %982 = vmatprep.subr.mxu0 0.0
      %983 = vmatpush1.msra.mxu0 0.0
      %984 = vmatprep.subr.mxu0 0.0
      %985 = vmatpush1.msra.mxu0 %v949
      %986 = vmatprep.subr.mxu0 0.0
      %987 = vmatpush2.msra.mxu0 0.0
      %988 = vmatprep.subr.mxu0 0.0
      %989 = vmatpush2.msra.mxu0 0.0
      %990 = vmatprep.subr.mxu0 0.0
      %991 = vmatpush2.msra.mxu0 0.0
      %992 = vmatprep.subr.mxu0 0.0
      %993 = vmatpush2.msra.mxu0 0.0
      %994 = vmatprep.subr.mxu0 0.0
      %995 = vmatpush2.msra.mxu0 0.0
      %996 = vmatprep.subr.mxu0 0.0
      %997 = vmatpush2.msra.mxu0 0.0
      %998 = vmatprep.subr.mxu0 0.0
      %999 = vmatpush2.msra.mxu0 0.0
      %1000 = vmatprep.subr.mxu0 0.0
      %1001 = vmatpush2.msra.mxu0 0.0
      %1002 = vmatprep.subr.mxu0 0.0
      %1003 = vmatpush2.msra.mxu0 0.0
      %1004 = vmatprep.subr.mxu0 0.0
      %1005 = vmatpush2.msra.mxu0 0.0
      %1006 = vmatprep.subr.mxu0 0.0
      %1007 = vmatpush2.msra.mxu0 0.0
      %1008 = vmatprep.subr.mxu0 0.0
      %1009 = vmatpush2.msra.mxu0 0.0
      %1010 = vmatprep.subr.mxu0 0.0
      %1011 = vmatpush2.msra.mxu0 0.0
      %1012 = vmatprep.subr.mxu0 0.0
      %1013 = vmatpush2.msra.mxu0 0.0
      %1014 = vmatprep.subr.mxu0 0.0
      %1015 = vmatpush2.msra.mxu0 0.0
      %1016 = vmatprep.subr.mxu0 0.0
      %1017 = vmatpush2.msra.mxu0 0.0
      %1018 = vmatprep.mubr.f32.mxu0 0.0
      %1019 = vmatmul.mubr.f32.gmra.mxu0 %v952
      %v1020 = vpop.f32.mrf.mxu0
      %v1021 = vadd.f32 0.0, %v1020
      %v1022 = vpop.f32.mrf.mxu0
      %1023 = vdwg.mxu0
      %v1024 = vrcp.pop %v947
      %v1025 = vmul.f32 %v1021, %v1024
      %v1026 = vld [vmem:[%s5 + $0x40] sm:$0xff]
      %v1027 = vld [vmem:[%s5 + $0x48] sm:$0xff]
      %v1028 = vld [vmem:[%s5 + $0x50] sm:$0xff]
      %v1029 = vld [vmem:[%s5 + $0x58] sm:$0xff]
      %v1031 = vsel %vm371, %v1025, 0
      %1033 = vmatprep.subr.mxu0 0.0
      %1034 = vmatpush1.msra.mxu0 0.0
      %1035 = vmatprep.subr.mxu0 0.0
      %1036 = vmatpush1.msra.mxu0 0.0
      %1037 = vmatprep.subr.mxu0 0.0
      %1038 = vmatpush1.msra.mxu0 0.0
      %1039 = vmatprep.subr.mxu0 0.0
      %1040 = vmatpush1.msra.mxu0 0.0
      %1041 = vmatprep.subr.mxu0 0.0
      %1042 = vmatpush1.msra.mxu0 0.0
      %1043 = vmatprep.subr.mxu0 0.0
      %1044 = vmatpush1.msra.mxu0 0.0
      %1045 = vmatprep.subr.mxu0 0.0
      %1046 = vmatpush1.msra.mxu0 0.0
      %1047 = vmatprep.subr.mxu0 0.0
      %1048 = vmatpush1.msra.mxu0 0.0
      %1049 = vmatprep.subr.mxu0 0.0
      %1050 = vmatpush1.msra.mxu0 0.0
      %1051 = vmatprep.subr.mxu0 0.0
      %1052 = vmatpush1.msra.mxu0 0.0
      %1053 = vmatprep.subr.mxu0 0.0
      %1054 = vmatpush1.msra.mxu0 0.0
      %1055 = vmatprep.subr.mxu0 0.0
      %1056 = vmatpush1.msra.mxu0 0.0
      %1057 = vmatprep.subr.mxu0 0.0
      %1058 = vmatpush1.msra.mxu0 %v1029
      %1059 = vmatprep.subr.mxu0 0.0
      %1060 = vmatpush1.msra.mxu0 %v1028
      %1061 = vmatprep.subr.mxu0 0.0
      %1062 = vmatpush1.msra.mxu0 %v1027
      %1063 = vmatprep.subr.mxu0 0.0
      %1064 = vmatpush1.msra.mxu0 %v1026
      %1065 = vmatprep.subr.mxu0 0.0
      %1066 = vmatpush2.msra.mxu0 0.0
      %1067 = vmatprep.subr.mxu0 0.0
      %1068 = vmatpush2.msra.mxu0 0.0
      %1069 = vmatprep.subr.mxu0 0.0
      %1070 = vmatpush2.msra.mxu0 0.0
      %1071 = vmatprep.subr.mxu0 0.0
      %1072 = vmatpush2.msra.mxu0 0.0
      %1073 = vmatprep.subr.mxu0 0.0
      %1074 = vmatpush2.msra.mxu0 0.0
      %1075 = vmatprep.subr.mxu0 0.0
      %1076 = vmatpush2.msra.mxu0 0.0
      %1077 = vmatprep.subr.mxu0 0.0
      %1078 = vmatpush2.msra.mxu0 0.0
      %1079 = vmatprep.subr.mxu0 0.0
      %1080 = vmatpush2.msra.mxu0 0.0
      %1081 = vmatprep.subr.mxu0 0.0
      %1082 = vmatpush2.msra.mxu0 0.0
      %1083 = vmatprep.subr.mxu0 0.0
      %1084 = vmatpush2.msra.mxu0 0.0
      %1085 = vmatprep.subr.mxu0 0.0
      %1086 = vmatpush2.msra.mxu0 0.0
      %1087 = vmatprep.subr.mxu0 0.0
      %1088 = vmatpush2.msra.mxu0 0.0
      %1089 = vmatprep.subr.mxu0 0.0
      %1090 = vmatpush2.msra.mxu0 0.0
      %1091 = vmatprep.subr.mxu0 0.0
      %1092 = vmatpush2.msra.mxu0 0.0
      %1093 = vmatprep.subr.mxu0 0.0
      %1094 = vmatpush2.msra.mxu0 0.0
      %1095 = vmatprep.subr.mxu0 0.0
      %1096 = vmatpush2.msra.mxu0 0.0
      %1097 = vmatprep.mubr.f32.mxu0 0.0
      %1098 = vmatmul.mubr.f32.gmra.mxu0 %v1031
      %v1099 = vpop.f32.mrf.mxu0
      %v1100 = vadd.f32 0.0, %v1099
      %v1101 = vpop.f32.mrf.mxu0
      %1102 = vdwg.mxu0
      %v1103 = vadd.f32 %v858, %v1100
      %1104 = vrot.lane.b32.xlu0 %v357, 32
      %v1105 = vpop.permute.xlu0 %1104
      %1106 = vrot.lane.b32.xlu0 %v358, 32
      %v1107 = vpop.permute.xlu0 %1106
      %v1108 = vsel %vm371, %v1105, 0
      %v1110 = vsel %vm371, %v1107, 0
      %1112 = vmatprep.subr.mxu0 0.0
      %1113 = vmatpush1.xpose.msra.mxu0 0.0
      %1114 = vmatprep.subr.mxu0 0.0
      %1115 = vmatpush1.xpose.msra.mxu0 0.0
      %1116 = vmatprep.subr.mxu0 0.0
      %1117 = vmatpush1.xpose.msra.mxu0 0.0
      %1118 = vmatprep.subr.mxu0 0.0
      %1119 = vmatpush1.xpose.msra.mxu0 0.0
      %1120 = vmatprep.subr.mxu0 0.0
      %1121 = vmatpush1.xpose.msra.mxu0 0.0
      %1122 = vmatprep.subr.mxu0 0.0
      %1123 = vmatpush1.xpose.msra.mxu0 0.0
      %1124 = vmatprep.subr.mxu0 0.0
      %1125 = vmatpush1.xpose.msra.mxu0 0.0
      %1126 = vmatprep.subr.mxu0 0.0
      %1127 = vmatpush1.xpose.msra.mxu0 0.0
      %1128 = vmatprep.subr.mxu0 0.0
      %1129 = vmatpush1.xpose.msra.mxu0 0.0
      %1130 = vmatprep.subr.mxu0 0.0
      %1131 = vmatpush1.xpose.msra.mxu0 0.0
      %1132 = vmatprep.subr.mxu0 0.0
      %1133 = vmatpush1.xpose.msra.mxu0 0.0
      %1134 = vmatprep.subr.mxu0 0.0
      %1135 = vmatpush1.xpose.msra.mxu0 0.0
      %1136 = vmatprep.subr.mxu0 0.0
      %1137 = vmatpush1.xpose.msra.mxu0 0.0
      %1138 = vmatprep.subr.mxu0 0.0
      %1139 = vmatpush1.xpose.msra.mxu0 0.0
      %1140 = vmatprep.subr.mxu0 0.0
      %1141 = vmatpush1.xpose.msra.mxu0 0.0
      %1142 = vmatprep.subr.mxu0 0.0
      %1143 = vmatpush1.xpose.msra.mxu0 %v1110
      %1144 = vmatprep.subr.mxu0 0.0
      %1145 = vmatpush2.xpose.msra.mxu0 0.0
      %1146 = vmatprep.subr.mxu0 0.0
      %1147 = vmatpush2.xpose.msra.mxu0 0.0
      %1148 = vmatprep.subr.mxu0 0.0
      %1149 = vmatpush2.xpose.msra.mxu0 0.0
      %1150 = vmatprep.subr.mxu0 0.0
      %1151 = vmatpush2.xpose.msra.mxu0 0.0
      %1152 = vmatprep.subr.mxu0 0.0
      %1153 = vmatpush2.xpose.msra.mxu0 0.0
      %1154 = vmatprep.subr.mxu0 0.0
      %1155 = vmatpush2.xpose.msra.mxu0 0.0
      %1156 = vmatprep.subr.mxu0 0.0
      %1157 = vmatpush2.xpose.msra.mxu0 0.0
      %1158 = vmatprep.subr.mxu0 0.0
      %1159 = vmatpush2.xpose.msra.mxu0 0.0
      %1160 = vmatprep.subr.mxu0 0.0
      %1161 = vmatpush2.xpose.msra.mxu0 0.0
      %1162 = vmatprep.subr.mxu0 0.0
      %1163 = vmatpush2.xpose.msra.mxu0 0.0
      %1164 = vmatprep.subr.mxu0 0.0
      %1165 = vmatpush2.xpose.msra.mxu0 0.0
      %1166 = vmatprep.subr.mxu0 0.0
      %1167 = vmatpush2.xpose.msra.mxu0 0.0
      %1168 = vmatprep.subr.mxu0 0.0
      %1169 = vmatpush2.xpose.msra.mxu0 0.0
      %1170 = vmatprep.subr.mxu0 0.0
      %1171 = vmatpush2.xpose.msra.mxu0 0.0
      %1172 = vmatprep.subr.mxu0 0.0
      %1173 = vmatpush2.xpose.msra.mxu0 0.0
      %1174 = vmatprep.subr.mxu0 0.0
      %1175 = vmatpush2.xpose.msra.mxu0 0.0
      %1176 = vmatprep.mubr.f32.mxu0 0.0
      %1177 = vmatmul.mubr.f32.gmra.mxu0 %v1108
      %v1178 = vpop.f32.mrf.mxu0
      %v1179 = vadd.f32 0.0, %v1178
      %v1180 = vpop.f32.mrf.mxu0
      %1181 = vdwg.mxu0
      %v1182 = vmul.f32 %v1179, 0.17677669
      %v1183 = vsel %vm361, -1e+09, %v1182
      %v1184 = vsel %vm450, %v1183, -inf
      %1185 = vmax.xlane.f32.xlu0 %v1184
      %v1186 = vpop.xlane.xlu0 %1185
      %v1187 = vsub.f32 %v1183, %v1186
      %v1188 = vmul.f32 %v1187, 1.442695
      %v1189 = vpow.pop %v1188
      %v1190 = vsel %vm450, %v1189, 0.0
      %1191 = vadd.xlane.f32.xlu0 %v1190
      %v1192 = vpop.xlane.xlu0 %1191
      %1193 = vrot.lane.b32.xlu0 %v359, 32
      %v1194 = vpop.permute.xlu0 %1193
      %v1197 = vsel %vm450, %v1189, 0
      %1199 = vmatprep.subr.mxu0 0.0
      %1200 = vmatpush1.msra.mxu0 0.0
      %1201 = vmatprep.subr.mxu0 0.0
      %1202 = vmatpush1.msra.mxu0 0.0
      %1203 = vmatprep.subr.mxu0 0.0
      %1204 = vmatpush1.msra.mxu0 0.0
      %1205 = vmatprep.subr.mxu0 0.0
      %1206 = vmatpush1.msra.mxu0 0.0
      %1207 = vmatprep.subr.mxu0 0.0
      %1208 = vmatpush1.msra.mxu0 0.0
      %1209 = vmatprep.subr.mxu0 0.0
      %1210 = vmatpush1.msra.mxu0 0.0
      %1211 = vmatprep.subr.mxu0 0.0
      %1212 = vmatpush1.msra.mxu0 0.0
      %1213 = vmatprep.subr.mxu0 0.0
      %1214 = vmatpush1.msra.mxu0 0.0
      %1215 = vmatprep.subr.mxu0 0.0
      %1216 = vmatpush1.msra.mxu0 0.0
      %1217 = vmatprep.subr.mxu0 0.0
      %1218 = vmatpush1.msra.mxu0 0.0
      %1219 = vmatprep.subr.mxu0 0.0
      %1220 = vmatpush1.msra.mxu0 0.0
      %1221 = vmatprep.subr.mxu0 0.0
      %1222 = vmatpush1.msra.mxu0 0.0
      %1223 = vmatprep.subr.mxu0 0.0
      %1224 = vmatpush1.msra.mxu0 0.0
      %1225 = vmatprep.subr.mxu0 0.0
      %1226 = vmatpush1.msra.mxu0 0.0
      %1227 = vmatprep.subr.mxu0 0.0
      %1228 = vmatpush1.msra.mxu0 0.0
      %1229 = vmatprep.subr.mxu0 0.0
      %1230 = vmatpush1.msra.mxu0 %v1194
      %1231 = vmatprep.subr.mxu0 0.0
      %1232 = vmatpush2.msra.mxu0 0.0
      %1233 = vmatprep.subr.mxu0 0.0
      %1234 = vmatpush2.msra.mxu0 0.0
      %1235 = vmatprep.subr.mxu0 0.0
      %1236 = vmatpush2.msra.mxu0 0.0
      %1237 = vmatprep.subr.mxu0 0.0
      %1238 = vmatpush2.msra.mxu0 0.0
      %1239 = vmatprep.subr.mxu0 0.0
      %1240 = vmatpush2.msra.mxu0 0.0
      %1241 = vmatprep.subr.mxu0 0.0
      %1242 = vmatpush2.msra.mxu0 0.0
      %1243 = vmatprep.subr.mxu0 0.0
      %1244 = vmatpush2.msra.mxu0 0.0
      %1245 = vmatprep.subr.mxu0 0.0
      %1246 = vmatpush2.msra.mxu0 0.0
      %1247 = vmatprep.subr.mxu0 0.0
      %1248 = vmatpush2.msra.mxu0 0.0
      %1249 = vmatprep.subr.mxu0 0.0
      %1250 = vmatpush2.msra.mxu0 0.0
      %1251 = vmatprep.subr.mxu0 0.0
      %1252 = vmatpush2.msra.mxu0 0.0
      %1253 = vmatprep.subr.mxu0 0.0
      %1254 = vmatpush2.msra.mxu0 0.0
      %1255 = vmatprep.subr.mxu0 0.0
      %1256 = vmatpush2.msra.mxu0 0.0
      %1257 = vmatprep.subr.mxu0 0.0
      %1258 = vmatpush2.msra.mxu0 0.0
      %1259 = vmatprep.subr.mxu0 0.0
      %1260 = vmatpush2.msra.mxu0 0.0
      %1261 = vmatprep.subr.mxu0 0.0
      %1262 = vmatpush2.msra.mxu0 0.0
      %1263 = vmatprep.mubr.f32.mxu0 0.0
      %1264 = vmatmul.mubr.f32.gmra.mxu0 %v1197
      %v1265 = vpop.f32.mrf.mxu0
      %v1266 = vadd.f32 0.0, %v1265
      %v1267 = vpop.f32.mrf.mxu0
      %1268 = vdwg.mxu0
      %v1269 = vrcp.pop %v1192
      %v1270 = vmul.f32 %v1266, %v1269
      %v1271 = vld [vmem:[%s5 + $0x60] sm:$0xff]
      %v1272 = vld [vmem:[%s5 + $0x68] sm:$0xff]
      %v1273 = vld [vmem:[%s5 + $0x70] sm:$0xff]
      %v1274 = vld [vmem:[%s5 + $0x78] sm:$0xff]
      %v1276 = vsel %vm371, %v1270, 0
      %1278 = vmatprep.subr.mxu0 0.0
      %1279 = vmatpush1.msra.mxu0 0.0
      %1280 = vmatprep.subr.mxu0 0.0
      %1281 = vmatpush1.msra.mxu0 0.0
      %1282 = vmatprep.subr.mxu0 0.0
      %1283 = vmatpush1.msra.mxu0 0.0
      %1284 = vmatprep.subr.mxu0 0.0
      %1285 = vmatpush1.msra.mxu0 0.0
      %1286 = vmatprep.subr.mxu0 0.0
      %1287 = vmatpush1.msra.mxu0 0.0
      %1288 = vmatprep.subr.mxu0 0.0
      %1289 = vmatpush1.msra.mxu0 0.0
      %1290 = vmatprep.subr.mxu0 0.0
      %1291 = vmatpush1.msra.mxu0 0.0
      %1292 = vmatprep.subr.mxu0 0.0
      %1293 = vmatpush1.msra.mxu0 0.0
      %1294 = vmatprep.subr.mxu0 0.0
      %1295 = vmatpush1.msra.mxu0 0.0
      %1296 = vmatprep.subr.mxu0 0.0
      %1297 = vmatpush1.msra.mxu0 0.0
      %1298 = vmatprep.subr.mxu0 0.0
      %1299 = vmatpush1.msra.mxu0 0.0
      %1300 = vmatprep.subr.mxu0 0.0
      %1301 = vmatpush1.msra.mxu0 0.0
      %1302 = vmatprep.subr.mxu0 0.0
      %1303 = vmatpush1.msra.mxu0 %v1274
      %1304 = vmatprep.subr.mxu0 0.0
      %1305 = vmatpush1.msra.mxu0 %v1273
      %1306 = vmatprep.subr.mxu0 0.0
      %1307 = vmatpush1.msra.mxu0 %v1272
      %1308 = vmatprep.subr.mxu0 0.0
      %1309 = vmatpush1.msra.mxu0 %v1271
      %1310 = vmatprep.subr.mxu0 0.0
      %1311 = vmatpush2.msra.mxu0 0.0
      %1312 = vmatprep.subr.mxu0 0.0
      %1313 = vmatpush2.msra.mxu0 0.0
      %1314 = vmatprep.subr.mxu0 0.0
      %1315 = vmatpush2.msra.mxu0 0.0
      %1316 = vmatprep.subr.mxu0 0.0
      %1317 = vmatpush2.msra.mxu0 0.0
      %1318 = vmatprep.subr.mxu0 0.0
      %1319 = vmatpush2.msra.mxu0 0.0
      %1320 = vmatprep.subr.mxu0 0.0
      %1321 = vmatpush2.msra.mxu0 0.0
      %1322 = vmatprep.subr.mxu0 0.0
      %1323 = vmatpush2.msra.mxu0 0.0
      %1324 = vmatprep.subr.mxu0 0.0
      %1325 = vmatpush2.msra.mxu0 0.0
      %1326 = vmatprep.subr.mxu0 0.0
      %1327 = vmatpush2.msra.mxu0 0.0
      %1328 = vmatprep.subr.mxu0 0.0
      %1329 = vmatpush2.msra.mxu0 0.0
      %1330 = vmatprep.subr.mxu0 0.0
      %1331 = vmatpush2.msra.mxu0 0.0
      %1332 = vmatprep.subr.mxu0 0.0
      %1333 = vmatpush2.msra.mxu0 0.0
      %1334 = vmatprep.subr.mxu0 0.0
      %1335 = vmatpush2.msra.mxu0 0.0
      %1336 = vmatprep.subr.mxu0 0.0
      %1337 = vmatpush2.msra.mxu0 0.0
      %1338 = vmatprep.subr.mxu0 0.0
      %1339 = vmatpush2.msra.mxu0 0.0
      %1340 = vmatprep.subr.mxu0 0.0
      %1341 = vmatpush2.msra.mxu0 0.0
      %1342 = vmatprep.mubr.f32.mxu0 0.0
      %1343 = vmatmul.mubr.f32.gmra.mxu0 %v1276
      %v1344 = vpop.f32.mrf.mxu0
      %v1345 = vadd.f32 0.0, %v1344
      %v1346 = vpop.f32.mrf.mxu0
      %1347 = vdwg.mxu0
      %v1348 = vadd.f32 %v1103, %v1345
      %1349 = vst [vmem:[%s356] sm:$0xff] %v1348
      %p1350 = scmp.lt.s32.totalorder %s18, 1
      %s1351 = scalar_select %p1350, %s18, 1
      %s1352 = smul.addr %s1351, 8
      %s1353 = scalar_lea.vmem %s7, %s1352
      // Predicated region
      $region49: #{decoder_block_forward.7} parent=47 // pred_check
        %p1354 = pneg %p208
      $region50: #{decoder_block_forward.7} parent=47 // pred_check_branch
        %1356 = sbr.rel (%p1354) target = $region52
      $region51: #{decoder_block_forward.7} parent=47 // pred_region
        _
      $region52: #{decoder_block_forward.7} parent=47 // pred_fallthru
        _
    $region48: #{decoder_block_forward.7} parent=5 // pred_fallthru
      _
    %p1357 = scmp.le.s32.totalorder 2, %s13
    // Predicated region
    $region53: #{decoder_block_forward.7} parent=5 // pred_check
      %p1358 = pneg %p1357
    $region54: #{decoder_block_forward.7} parent=5 // pred_check_branch
      %1360 = sbr.rel (%p1358) target = $region56
    $region55: #{decoder_block_forward.7} parent=5 // pred_region
      %s1361 = ssub.s32 %s13, 2
      // Predicated region
      $region57: #{decoder_block_forward.7} parent=55 // pred_check
        %p1362 = pneg %p214
      $region58: #{decoder_block_forward.7} parent=55 // pred_check_branch
        %1364 = sbr.rel (%p1362) target = $region60
      $region59: #{decoder_block_forward.7} parent=55 // pred_region
        %p1365 = scmp.lt.s32.totalorder %s19, 1
        %s1366 = scalar_select %p1365, %s19, 1
        %s1367 = smul.addr %s1366, 8
        %s1368 = scalar_lea.vmem %s7, %s1367
      $region60: #{decoder_block_forward.7} parent=55 // pred_fallthru
        _
    $region56: #{decoder_block_forward.7} parent=5 // pred_fallthru
      _
  $region6: #{decoder_block_forward.7} parent=0 // loop_footer
    %s17 = sadd.s32 1, %s13
  $region7: #{decoder_block_forward.7} parent=0 // loop_footer_branch
    %12 = sbr.rel target = $region3
  $region8: #{decoder_block_forward.7} parent=0 // loop_exit
    _

// kernel: decoder_block_forward.9
$region0: #{decoder_block_forward.9}
  #allocation0 [shape = 'u32[]', space=smem, size = 0x4, offset = 0x4, fixed_abs, tag = 'smem constant byte address 0x4 - core index']
  #allocation1 [shape = 'u32[144,128]{1,0:T(1,128)}', space=vmem, size = 0x12000, scoped, tag = 'internal scratch']
  #allocation2 [shape = 'f32[1]{0:T(128)S(6)}', space=smem, size = 0x200, scoped, tag = 'scoped memory for decoder_block_forward.9']
  #allocation3 [shape = 'f32[1]{0:T(128)S(6)}', space=smem, size = 0x200, scoped, tag = 'scoped memory for decoder_block_forward.9']
  %s0 = inlined_call_operand.<no memory space> [shape: f32[1], index: 0, kind: input, shape index: {}]
  %s1 = inlined_call_operand.<no memory space> [shape: f32[1], index: 1, kind: input, shape index: {}]
  %s2 = inlined_call_operand.vmem [shape: f32[32,128], index: 2, kind: input, shape index: {}]
  %s3 = inlined_call_operand.vmem [shape: f32[128,256], index: 3, kind: input, shape index: {}]
  %s4 = inlined_call_operand.vmem [shape: f32[1,256], index: 4, kind: input, shape index: {}]
  %s5 = inlined_call_operand.vmem [shape: f32[32,256], index: 5, kind: output, shape index: {}]
  %s6 = sld [smem:[#allocation0]]
  $region30: #{decoder_block_forward.9} parent=0
    _
  %s8 = ssub.s32 1, %s6
  %s9 = scalar_select 0, %s8, %s6
  %10 = sst [smem:[#allocation2]] %s0
  %11 = sst [smem:[#allocation3]] %s1
  // Predicated region
  $region2: #{decoder_block_forward.9} parent=0 // pred_check
    _
  $region3: #{decoder_block_forward.9} parent=0 // pred_check_branch
    %13 = sbr.rel (0) target = $region5
  $region4: #{decoder_block_forward.9} parent=0 // pred_region
    _
  $region5: #{decoder_block_forward.9} parent=0 // pred_fallthru
    _
  // Predicated region
  $region6: #{decoder_block_forward.9} parent=0 // pred_check
    _
  $region7: #{decoder_block_forward.9} parent=0 // pred_check_branch
    %15 = sbr.rel (0) target = $region9
  $region8: #{decoder_block_forward.9} parent=0 // pred_region
    _
  $region9: #{decoder_block_forward.9} parent=0 // pred_fallthru
    _
  // Predicated region
  $region10: #{decoder_block_forward.9} parent=0 // pred_check
    _
  $region11: #{decoder_block_forward.9} parent=0 // pred_check_branch
    %17 = sbr.rel (0) target = $region13
  $region12: #{decoder_block_forward.9} parent=0 // pred_region
    _
  $region13: #{decoder_block_forward.9} parent=0 // pred_fallthru
    _
  // Predicated region
  $region14: #{decoder_block_forward.9} parent=0 // pred_check
    _
  $region15: #{decoder_block_forward.9} parent=0 // pred_check_branch
    %19 = sbr.rel (0) target = $region17
  $region16: #{decoder_block_forward.9} parent=0 // pred_region
    _
  $region17: #{decoder_block_forward.9} parent=0 // pred_fallthru
    _
  // Predicated region
  $region18: #{decoder_block_forward.9} parent=0 // pred_check
    _
  $region19: #{decoder_block_forward.9} parent=0 // pred_check_branch
    %21 = sbr.rel (0) target = $region21
  $region20: #{decoder_block_forward.9} parent=0 // pred_region
    _
  $region21: #{decoder_block_forward.9} parent=0 // pred_fallthru
    _
  %v22 = vld [vmem:[%s2] sm:$0xff]
  %v23 = vld [vmem:[%s2 + $0x8] sm:$0xff]
  %v24 = vld [vmem:[%s2 + $0x10] sm:$0xff]
  %v25 = vld [vmem:[%s2 + $0x18] sm:$0xff]
  %v26 = vld [vmem:[%s3] sm:$0xff]
  %v27 = vld [vmem:[%s3 + $0x8] sm:$0xff]
  %v28 = vld [vmem:[%s3 + $0x10] sm:$0xff]
  %v29 = vld [vmem:[%s3 + $0x18] sm:$0xff]
  %v30 = vld [vmem:[%s3 + $0x20] sm:$0xff]
  %v31 = vld [vmem:[%s3 + $0x28] sm:$0xff]
  %v32 = vld [vmem:[%s3 + $0x30] sm:$0xff]
  %v33 = vld [vmem:[%s3 + $0x38] sm:$0xff]
  %v34 = vld [vmem:[%s3 + $0x40] sm:$0xff]
  %v35 = vld [vmem:[%s3 + $0x48] sm:$0xff]
  %v36 = vld [vmem:[%s3 + $0x50] sm:$0xff]
  %v37 = vld [vmem:[%s3 + $0x58] sm:$0xff]
  %v38 = vld [vmem:[%s3 + $0x60] sm:$0xff]
  %v39 = vld [vmem:[%s3 + $0x68] sm:$0xff]
  %v40 = vld [vmem:[%s3 + $0x70] sm:$0xff]
  %v41 = vld [vmem:[%s3 + $0x78] sm:$0xff]
  %v42 = vld [vmem:[%s3 + $0x80] sm:$0xff]
  %v43 = vld [vmem:[%s3 + $0x88] sm:$0xff]
  %v44 = vld [vmem:[%s3 + $0x90] sm:$0xff]
  %v45 = vld [vmem:[%s3 + $0x98] sm:$0xff]
  %v46 = vld [vmem:[%s3 + $0xa0] sm:$0xff]
  %v47 = vld [vmem:[%s3 + $0xa8] sm:$0xff]
  %v48 = vld [vmem:[%s3 + $0xb0] sm:$0xff]
  %v49 = vld [vmem:[%s3 + $0xb8] sm:$0xff]
  %v50 = vld [vmem:[%s3 + $0xc0] sm:$0xff]
  %v51 = vld [vmem:[%s3 + $0xc8] sm:$0xff]
  %v52 = vld [vmem:[%s3 + $0xd0] sm:$0xff]
  %v53 = vld [vmem:[%s3 + $0xd8] sm:$0xff]
  %v54 = vld [vmem:[%s3 + $0xe0] sm:$0xff]
  %v55 = vld [vmem:[%s3 + $0xe8] sm:$0xff]
  %v56 = vld [vmem:[%s3 + $0xf0] sm:$0xff]
  %v57 = vld [vmem:[%s3 + $0xf8] sm:$0xff]
  %v58 = vld [vmem:[%s4] sm:$0x3]
  %v60 = vlaneseq
  %v61 = vshrl.u32 %v60, 7
  %v62 = vsub.s32 0, %v61
  %v63 = vrot.slane %v58, %v62
  %v64 = vlaneseq
  %v65 = vshrl.u32 %v64, 7
  %v66 = vsub.s32 1, %v65
  %v67 = vrot.slane %v58, %v66
  %70 = vmatprep.subr.mxu0 %v57
  %71 = vmatpush1.msra.mxu0 %v56
  %72 = vmatprep.subr.mxu0 %v55
  %73 = vmatpush1.msra.mxu0 %v54
  %74 = vmatprep.subr.mxu0 %v53
  %75 = vmatpush1.msra.mxu0 %v52
  %76 = vmatprep.subr.mxu0 %v51
  %77 = vmatpush1.msra.mxu0 %v50
  %78 = vmatprep.subr.mxu0 %v49
  %79 = vmatpush1.msra.mxu0 %v48
  %80 = vmatprep.subr.mxu0 %v47
  %81 = vmatpush1.msra.mxu0 %v46
  %82 = vmatprep.subr.mxu0 %v45
  %83 = vmatpush1.msra.mxu0 %v44
  %84 = vmatprep.subr.mxu0 %v43
  %85 = vmatpush1.msra.mxu0 %v42
  %86 = vmatprep.subr.mxu0 %v41
  %87 = vmatpush1.msra.mxu0 %v40
  %88 = vmatprep.subr.mxu0 %v39
  %89 = vmatpush1.msra.mxu0 %v38
  %90 = vmatprep.subr.mxu0 %v37
  %91 = vmatpush1.msra.mxu0 %v36
  %92 = vmatprep.subr.mxu0 %v35
  %93 = vmatpush1.msra.mxu0 %v34
  %94 = vmatprep.subr.mxu0 %v33
  %95 = vmatpush1.msra.mxu0 %v32
  %96 = vmatprep.subr.mxu0 %v31
  %97 = vmatpush1.msra.mxu0 %v30
  %98 = vmatprep.subr.mxu0 %v29
  %99 = vmatpush1.msra.mxu0 %v28
  %100 = vmatprep.subr.mxu0 %v27
  %101 = vmatpush1.msra.mxu0 %v26
  %102 = vmatprep.subr.mxu0 0.0
  %103 = vmatpush2.msra.mxu0 0.0
  %104 = vmatprep.subr.mxu0 0.0
  %105 = vmatpush2.msra.mxu0 0.0
  %106 = vmatprep.subr.mxu0 0.0
  %107 = vmatpush2.msra.mxu0 0.0
  %108 = vmatprep.subr.mxu0 0.0
  %109 = vmatpush2.msra.mxu0 0.0
  %110 = vmatprep.subr.mxu0 0.0
  %111 = vmatpush2.msra.mxu0 0.0
  %112 = vmatprep.subr.mxu0 0.0
  %113 = vmatpush2.msra.mxu0 0.0
  %114 = vmatprep.subr.mxu0 0.0
  %115 = vmatpush2.msra.mxu0 0.0
  %116 = vmatprep.subr.mxu0 0.0
  %117 = vmatpush2.msra.mxu0 0.0
  %118 = vmatprep.subr.mxu0 0.0
  %119 = vmatpush2.msra.mxu0 0.0
  %120 = vmatprep.subr.mxu0 0.0
  %121 = vmatpush2.msra.mxu0 0.0
  %122 = vmatprep.subr.mxu0 0.0
  %123 = vmatpush2.msra.mxu0 0.0
  %124 = vmatprep.subr.mxu0 0.0
  %125 = vmatpush2.msra.mxu0 0.0
  %126 = vmatprep.subr.mxu0 0.0
  %127 = vmatpush2.msra.mxu0 0.0
  %128 = vmatprep.subr.mxu0 0.0
  %129 = vmatpush2.msra.mxu0 0.0
  %130 = vmatprep.subr.mxu0 0.0
  %131 = vmatpush2.msra.mxu0 0.0
  %132 = vmatprep.subr.mxu0 0.0
  %133 = vmatpush2.msra.mxu0 0.0
  %134 = vmatprep.mubr.f32.mxu0 0.0
  %135 = vmatmul.mubr.f32.gmra.mxu0 %v22
  %v136 = vpop.f32.mrf.mxu0
  %v137 = vadd.f32 %v63, %v136
  %v138 = vpop.f32.mrf.mxu0
  %v139 = vadd.f32 %v67, %v138
  %140 = vmatprep.mubr.f32.mxu0 0.0
  %141 = vmatmul.mubr.f32.gmra.mxu0 %v23
  %v142 = vpop.f32.mrf.mxu0
  %v143 = vadd.f32 %v63, %v142
  %v144 = vpop.f32.mrf.mxu0
  %v145 = vadd.f32 %v67, %v144
  %146 = vmatprep.mubr.f32.mxu0 0.0
  %147 = vmatmul.mubr.f32.gmra.mxu0 %v24
  %v148 = vpop.f32.mrf.mxu0
  %v149 = vadd.f32 %v63, %v148
  %v150 = vpop.f32.mrf.mxu0
  %v151 = vadd.f32 %v67, %v150
  %152 = vmatprep.mubr.f32.mxu0 0.0
  %153 = vmatmul.mubr.f32.gmra.mxu0 %v25
  %v154 = vpop.f32.mrf.mxu0
  %v155 = vadd.f32 %v63, %v154
  %v156 = vpop.f32.mrf.mxu0
  %v157 = vadd.f32 %v67, %v156
  %158 = vdwg.mxu0
  %159 = vst [vmem:[%s5] sm:$0xff] %v137
  %160 = vst [vmem:[%s5 + $0x8] sm:$0xff] %v139
  %161 = vst [vmem:[%s5 + $0x10] sm:$0xff] %v143
  %162 = vst [vmem:[%s5 + $0x18] sm:$0xff] %v145
  %163 = vst [vmem:[%s5 + $0x20] sm:$0xff] %v149
  %164 = vst [vmem:[%s5 + $0x28] sm:$0xff] %v151
  %165 = vst [vmem:[%s5 + $0x30] sm:$0xff] %v155
  %166 = vst [vmem:[%s5 + $0x38] sm:$0xff] %v157
  // Predicated region
  $region22: #{decoder_block_forward.9} parent=0 // pred_check
    _
  $region23: #{decoder_block_forward.9} parent=0 // pred_check_branch
    %168 = sbr.rel (0) target = $region25
  $region24: #{decoder_block_forward.9} parent=0 // pred_region
    _
  $region25: #{decoder_block_forward.9} parent=0 // pred_fallthru
    _
  // Predicated region
  $region26: #{decoder_block_forward.9} parent=0 // pred_check
    _
  $region27: #{decoder_block_forward.9} parent=0 // pred_check_branch
    %170 = sbr.rel (0) target = $region29
  $region28: #{decoder_block_forward.9} parent=0 // pred_region
    _
  $region29: #{decoder_block_forward.9} parent=0 // pred_fallthru
    _

// kernel: decoder_block_forward.11
$region0: #{decoder_block_forward.11}
  #allocation0 [shape = 'u32[]', space=smem, size = 0x4, offset = 0x4, fixed_abs, tag = 'smem constant byte address 0x4 - core index']
  #allocation1 [shape = 'u32[144,128]{1,0:T(1,128)}', space=vmem, size = 0x12000, scoped, tag = 'internal scratch']
  #allocation2 [shape = 'f32[16,128]{1,0:T(8,128)}', space=vmem, size = 0x2000, scoped, tag = 'scratch operand']
  #allocation3 [shape = 'f32[16,128]{1,0:T(8,128)}', space=vmem, size = 0x2000, scoped, tag = 'scratch operand']
  #allocation4 [shape = 'f32[1]{0:T(128)S(6)}', space=smem, size = 0x200, scoped, tag = 'scoped memory for decoder_block_forward.11']
  #allocation5 [shape = 'f32[1]{0:T(128)S(6)}', space=smem, size = 0x200, scoped, tag = 'scoped memory for decoder_block_forward.11']
  %s0 = inlined_call_operand.<no memory space> [shape: f32[1], index: 0, kind: input, shape index: {}]
  %s1 = inlined_call_operand.<no memory space> [shape: f32[1], index: 1, kind: input, shape index: {}]
  %s2 = inlined_call_operand.vmem [shape: f32[16,128], index: 2, kind: input, shape index: {}]
  %s3 = inlined_call_operand.vmem [shape: f32[128,256], index: 3, kind: input, shape index: {}]
  %s4 = inlined_call_operand.vmem [shape: f32[1,256], index: 4, kind: input, shape index: {}]
  %s5 = inlined_call_operand.vmem [shape: f32[256,128], index: 5, kind: input, shape index: {}]
  %s6 = inlined_call_operand.vmem [shape: f32[1,128], index: 6, kind: input, shape index: {}]
  %s7 = inlined_call_operand.hbm [shape: f32[16,128], index: 7, kind: output, shape index: {}]
  %s8 = sld [smem:[#allocation0]]
  $region46: #{decoder_block_forward.11} parent=0
    _
  %s10 = ssub.s32 1, %s8
  %s11 = scalar_select 0, %s10, %s8
  %12 = sst [smem:[#allocation4]] %s0
  %13 = sst [smem:[#allocation5]] %s1
  $region1: #{decoder_block_forward.11} parent=0
    #allocation6 [shape = 'u8[8192]{0}', space=vmem, size = 0x2000, scoped, tag = 'output window, operand 0, single buffered']
    #allocation7 [shape = 's32[1]{0}', space=sflag, size = 0x4, scoped, tag = 'scoped memory for decoder_block_forward.11']
    %14 = vsyncpa [#allocation7], 0
    // Predicated region
    $region2: #{decoder_block_forward.11} parent=1 // pred_check
      _
    $region3: #{decoder_block_forward.11} parent=1 // pred_check_branch
      %16 = sbr.rel (0) target = $region5
    $region4: #{decoder_block_forward.11} parent=1 // pred_region
      _
    $region5: #{decoder_block_forward.11} parent=1 // pred_fallthru
      _
    // Predicated region
    $region6: #{decoder_block_forward.11} parent=1 // pred_check
      _
    $region7: #{decoder_block_forward.11} parent=1 // pred_check_branch
      %18 = sbr.rel (0) target = $region9
    $region8: #{decoder_block_forward.11} parent=1 // pred_region
      _
    $region9: #{decoder_block_forward.11} parent=1 // pred_fallthru
      _
    // Predicated region
    $region10: #{decoder_block_forward.11} parent=1 // pred_check
      _
    $region11: #{decoder_block_forward.11} parent=1 // pred_check_branch
      %20 = sbr.rel (0) target = $region13
    $region12: #{decoder_block_forward.11} parent=1 // pred_region
      _
    $region13: #{decoder_block_forward.11} parent=1 // pred_fallthru
      _
    // Predicated region
    $region14: #{decoder_block_forward.11} parent=1 // pred_check
      _
    $region15: #{decoder_block_forward.11} parent=1 // pred_check_branch
      %22 = sbr.rel (0) target = $region17
    $region16: #{decoder_block_forward.11} parent=1 // pred_region
      _
    $region17: #{decoder_block_forward.11} parent=1 // pred_fallthru
      _
    // Predicated region
    $region18: #{decoder_block_forward.11} parent=1 // pred_check
      _
    $region19: #{decoder_block_forward.11} parent=1 // pred_check_branch
      %24 = sbr.rel (0) target = $region21
    $region20: #{decoder_block_forward.11} parent=1 // pred_region
      _
    $region21: #{decoder_block_forward.11} parent=1 // pred_fallthru
      _
    // Predicated region
    $region22: #{decoder_block_forward.11} parent=1 // pred_check
      _
    $region23: #{decoder_block_forward.11} parent=1 // pred_check_branch
      %26 = sbr.rel (0) target = $region25
    $region24: #{decoder_block_forward.11} parent=1 // pred_region
      _
    $region25: #{decoder_block_forward.11} parent=1 // pred_fallthru
      _
    // Predicated region
    $region26: #{decoder_block_forward.11} parent=1 // pred_check
      _
    $region27: #{decoder_block_forward.11} parent=1 // pred_check_branch
      %28 = sbr.rel (0) target = $region29
    $region28: #{decoder_block_forward.11} parent=1 // pred_region
      _
    $region29: #{decoder_block_forward.11} parent=1 // pred_fallthru
      _
    %p29 = scmp.eq.s32.totalorder 0, 0
    // Predicated region
    $region30: #{decoder_block_forward.11} parent=1 // pred_check
      %p30 = pneg %p29
    $region31: #{decoder_block_forward.11} parent=1 // pred_check_branch
      %32 = sbr.rel (%p30) target = $region33
    $region32: #{decoder_block_forward.11} parent=1 // pred_region
      %v33 = vld [vmem:[%s2] sm:$0xff]
      %v34 = vld [vmem:[%s2 + $0x8] sm:$0xff]
      %35 = vadd.xlane.f32.xlu0 %v33
      %v36 = vpop.xlane.xlu0 %35
      %37 = vadd.xlane.f32.xlu0 %v34
      %v38 = vpop.xlane.xlu0 %37
      %v39 = vmul.f32 %v36, 0.0078125
      %v40 = vmul.f32 %v38, 0.0078125
      %v41 = vsub.f32 %v33, %v39
      %v42 = vsub.f32 %v34, %v40
      %v43 = vmul.f32 %v41, %v41
      %v44 = vmul.f32 %v42, %v42
      %45 = vadd.xlane.f32.xlu0 %v43
      %v46 = vpop.xlane.xlu0 %45
      %47 = vadd.xlane.f32.xlu0 %v44
      %v48 = vpop.xlane.xlu0 %47
      %v49 = vmul.f32 %v46, 0.007874016
      %v50 = vmul.f32 %v48, 0.007874016
      %s51 = sld [smem:[#allocation4]]
      %v52 = vrsqrt.pop %v49
      %v53 = vmul.f32 %v49, %v52
      %vm54 = vcmp.eq.f32.partialorder %v49, inf
      %v55 = vsel %vm54, %v49, %v53
      %vm56 = vcmp.eq.f32.partialorder %v49, 0.0
      %v57 = vand.u32 %v49, 2147483648
      %v58 = vsel %vm56, %v57, %v55
      %v59 = vrsqrt.pop %v50
      %v60 = vmul.f32 %v50, %v59
      %vm61 = vcmp.eq.f32.partialorder %v50, inf
      %v62 = vsel %vm61, %v50, %v60
      %vm63 = vcmp.eq.f32.partialorder %v50, 0.0
      %v64 = vand.u32 %v50, 2147483648
      %v65 = vsel %vm63, %v64, %v62
      %v66 = vadd.f32 %v58, 1e-06
      %v67 = vadd.f32 %v65, 1e-06
      %v68 = vrcp.pop %v66
      %v69 = vrcp.pop %v67
      %v70 = vstv %s51
      %v71 = vmul.f32 %v70, %v68
      %v72 = vmul.f32 %v70, %v69
      %v73 = vmul.f32 %v41, %v71
      %v74 = vmul.f32 %v42, %v72
      %s75 = sld [smem:[#allocation5]]
      %v76 = vstv %s75
      %v77 = vadd.f32 %v73, %v76
      %v78 = vadd.f32 %v74, %v76
      %79 = vst [vmem:[#allocation2] sm:$0xff] %v77
      %80 = vst [vmem:[#allocation2 + $0x8] sm:$0xff] %v78
      %81 = vst [vmem:[#allocation3] sm:$0xff] 0.0
      %82 = vst [vmem:[#allocation3 + $0x8] sm:$0xff] 0.0
    $region33: #{decoder_block_forward.11} parent=1 // pred_fallthru
      _
    %v83 = vld [vmem:[#allocation2] sm:$0xff]
    %v84 = vld [vmem:[#allocation2 + $0x8] sm:$0xff]
    %v85 = vld [vmem:[%s3] sm:$0xff]
    %v86 = vld [vmem:[%s3 + $0x8] sm:$0xff]
    %v87 = vld [vmem:[%s3 + $0x10] sm:$0xff]
    %v88 = vld [vmem:[%s3 + $0x18] sm:$0xff]
    %v89 = vld [vmem:[%s3 + $0x20] sm:$0xff]
    %v90 = vld [vmem:[%s3 + $0x28] sm:$0xff]
    %v91 = vld [vmem:[%s3 + $0x30] sm:$0xff]
    %v92 = vld [vmem:[%s3 + $0x38] sm:$0xff]
    %v93 = vld [vmem:[%s3 + $0x40] sm:$0xff]
    %v94 = vld [vmem:[%s3 + $0x48] sm:$0xff]
    %v95 = vld [vmem:[%s3 + $0x50] sm:$0xff]
    %v96 = vld [vmem:[%s3 + $0x58] sm:$0xff]
    %v97 = vld [vmem:[%s3 + $0x60] sm:$0xff]
    %v98 = vld [vmem:[%s3 + $0x68] sm:$0xff]
    %v99 = vld [vmem:[%s3 + $0x70] sm:$0xff]
    %v100 = vld [vmem:[%s3 + $0x78] sm:$0xff]
    %v101 = vld [vmem:[%s3 + $0x80] sm:$0xff]
    %v102 = vld [vmem:[%s3 + $0x88] sm:$0xff]
    %v103 = vld [vmem:[%s3 + $0x90] sm:$0xff]
    %v104 = vld [vmem:[%s3 + $0x98] sm:$0xff]
    %v105 = vld [vmem:[%s3 + $0xa0] sm:$0xff]
    %v106 = vld [vmem:[%s3 + $0xa8] sm:$0xff]
    %v107 = vld [vmem:[%s3 + $0xb0] sm:$0xff]
    %v108 = vld [vmem:[%s3 + $0xb8] sm:$0xff]
    %v109 = vld [vmem:[%s3 + $0xc0] sm:$0xff]
    %v110 = vld [vmem:[%s3 + $0xc8] sm:$0xff]
    %v111 = vld [vmem:[%s3 + $0xd0] sm:$0xff]
    %v112 = vld [vmem:[%s3 + $0xd8] sm:$0xff]
    %v113 = vld [vmem:[%s3 + $0xe0] sm:$0xff]
    %v114 = vld [vmem:[%s3 + $0xe8] sm:$0xff]
    %v115 = vld [vmem:[%s3 + $0xf0] sm:$0xff]
    %v116 = vld [vmem:[%s3 + $0xf8] sm:$0xff]
    %v117 = vld [vmem:[%s4] sm:$0x3]
    %v119 = vlaneseq
    %v120 = vshrl.u32 %v119, 7
    %v121 = vsub.s32 0, %v120
    %v122 = vrot.slane %v117, %v121
    %v123 = vlaneseq
    %v124 = vshrl.u32 %v123, 7
    %v125 = vsub.s32 1, %v124
    %v126 = vrot.slane %v117, %v125
    %129 = vmatprep.subr.mxu0 %v116
    %130 = vmatpush1.msra.mxu0 %v115
    %131 = vmatprep.subr.mxu0 %v114
    %132 = vmatpush1.msra.mxu0 %v113
    %133 = vmatprep.subr.mxu0 %v112
    %134 = vmatpush1.msra.mxu0 %v111
    %135 = vmatprep.subr.mxu0 %v110
    %136 = vmatpush1.msra.mxu0 %v109
    %137 = vmatprep.subr.mxu0 %v108
    %138 = vmatpush1.msra.mxu0 %v107
    %139 = vmatprep.subr.mxu0 %v106
    %140 = vmatpush1.msra.mxu0 %v105
    %141 = vmatprep.subr.mxu0 %v104
    %142 = vmatpush1.msra.mxu0 %v103
    %143 = vmatprep.subr.mxu0 %v102
    %144 = vmatpush1.msra.mxu0 %v101
    %145 = vmatprep.subr.mxu0 %v100
    %146 = vmatpush1.msra.mxu0 %v99
    %147 = vmatprep.subr.mxu0 %v98
    %148 = vmatpush1.msra.mxu0 %v97
    %149 = vmatprep.subr.mxu0 %v96
    %150 = vmatpush1.msra.mxu0 %v95
    %151 = vmatprep.subr.mxu0 %v94
    %152 = vmatpush1.msra.mxu0 %v93
    %153 = vmatprep.subr.mxu0 %v92
    %154 = vmatpush1.msra.mxu0 %v91
    %155 = vmatprep.subr.mxu0 %v90
    %156 = vmatpush1.msra.mxu0 %v89
    %157 = vmatprep.subr.mxu0 %v88
    %158 = vmatpush1.msra.mxu0 %v87
    %159 = vmatprep.subr.mxu0 %v86
    %160 = vmatpush1.msra.mxu0 %v85
    %161 = vmatprep.subr.mxu0 0.0
    %162 = vmatpush2.msra.mxu0 0.0
    %163 = vmatprep.subr.mxu0 0.0
    %164 = vmatpush2.msra.mxu0 0.0
    %165 = vmatprep.subr.mxu0 0.0
    %166 = vmatpush2.msra.mxu0 0.0
    %167 = vmatprep.subr.mxu0 0.0
    %168 = vmatpush2.msra.mxu0 0.0
    %169 = vmatprep.subr.mxu0 0.0
    %170 = vmatpush2.msra.mxu0 0.0
    %171 = vmatprep.subr.mxu0 0.0
    %172 = vmatpush2.msra.mxu0 0.0
    %173 = vmatprep.subr.mxu0 0.0
    %174 = vmatpush2.msra.mxu0 0.0
    %175 = vmatprep.subr.mxu0 0.0
    %176 = vmatpush2.msra.mxu0 0.0
    %177 = vmatprep.subr.mxu0 0.0
    %178 = vmatpush2.msra.mxu0 0.0
    %179 = vmatprep.subr.mxu0 0.0
    %180 = vmatpush2.msra.mxu0 0.0
    %181 = vmatprep.subr.mxu0 0.0
    %182 = vmatpush2.msra.mxu0 0.0
    %183 = vmatprep.subr.mxu0 0.0
    %184 = vmatpush2.msra.mxu0 0.0
    %185 = vmatprep.subr.mxu0 0.0
    %186 = vmatpush2.msra.mxu0 0.0
    %187 = vmatprep.subr.mxu0 0.0
    %188 = vmatpush2.msra.mxu0 0.0
    %189 = vmatprep.subr.mxu0 0.0
    %190 = vmatpush2.msra.mxu0 0.0
    %191 = vmatprep.subr.mxu0 0.0
    %192 = vmatpush2.msra.mxu0 0.0
    %193 = vmatprep.mubr.f32.mxu0 0.0
    %194 = vmatmul.mubr.f32.gmra.mxu0 %v83
    %v195 = vpop.f32.mrf.mxu0
    %v196 = vadd.f32 %v122, %v195
    %v197 = vpop.f32.mrf.mxu0
    %v198 = vadd.f32 %v126, %v197
    %199 = vmatprep.mubr.f32.mxu0 0.0
    %200 = vmatmul.mubr.f32.gmra.mxu0 %v84
    %v201 = vpop.f32.mrf.mxu0
    %v202 = vadd.f32 %v122, %v201
    %v203 = vpop.f32.mrf.mxu0
    %v204 = vadd.f32 %v126, %v203
    %205 = vdwg.mxu0
    %v206 = vmax.f32 %v196, 0.0
    %v207 = vmax.f32 %v198, 0.0
    %v208 = vmax.f32 %v202, 0.0
    %v209 = vmax.f32 %v204, 0.0
    %v210 = vld [vmem:[#allocation3] sm:$0xff]
    %v211 = vld [vmem:[#allocation3 + $0x8] sm:$0xff]
    %v212 = vld [vmem:[%s5] sm:$0xff]
    %v213 = vld [vmem:[%s5 + $0x8] sm:$0xff]
    %v214 = vld [vmem:[%s5 + $0x10] sm:$0xff]
    %v215 = vld [vmem:[%s5 + $0x18] sm:$0xff]
    %v216 = vld [vmem:[%s5 + $0x20] sm:$0xff]
    %v217 = vld [vmem:[%s5 + $0x28] sm:$0xff]
    %v218 = vld [vmem:[%s5 + $0x30] sm:$0xff]
    %v219 = vld [vmem:[%s5 + $0x38] sm:$0xff]
    %v220 = vld [vmem:[%s5 + $0x40] sm:$0xff]
    %v221 = vld [vmem:[%s5 + $0x48] sm:$0xff]
    %v222 = vld [vmem:[%s5 + $0x50] sm:$0xff]
    %v223 = vld [vmem:[%s5 + $0x58] sm:$0xff]
    %v224 = vld [vmem:[%s5 + $0x60] sm:$0xff]
    %v225 = vld [vmem:[%s5 + $0x68] sm:$0xff]
    %v226 = vld [vmem:[%s5 + $0x70] sm:$0xff]
    %v227 = vld [vmem:[%s5 + $0x78] sm:$0xff]
    %v228 = vld [vmem:[%s5 + $0x80] sm:$0xff]
    %v229 = vld [vmem:[%s5 + $0x88] sm:$0xff]
    %v230 = vld [vmem:[%s5 + $0x90] sm:$0xff]
    %v231 = vld [vmem:[%s5 + $0x98] sm:$0xff]
    %v232 = vld [vmem:[%s5 + $0xa0] sm:$0xff]
    %v233 = vld [vmem:[%s5 + $0xa8] sm:$0xff]
    %v234 = vld [vmem:[%s5 + $0xb0] sm:$0xff]
    %v235 = vld [vmem:[%s5 + $0xb8] sm:$0xff]
    %v236 = vld [vmem:[%s5 + $0xc0] sm:$0xff]
    %v237 = vld [vmem:[%s5 + $0xc8] sm:$0xff]
    %v238 = vld [vmem:[%s5 + $0xd0] sm:$0xff]
    %v239 = vld [vmem:[%s5 + $0xd8] sm:$0xff]
    %v240 = vld [vmem:[%s5 + $0xe0] sm:$0xff]
    %v241 = vld [vmem:[%s5 + $0xe8] sm:$0xff]
    %v242 = vld [vmem:[%s5 + $0xf0] sm:$0xff]
    %v243 = vld [vmem:[%s5 + $0xf8] sm:$0xff]
    %244 = vmatprep.subr.mxu0 0.0
    %245 = vmatpush1.msra.mxu0 %v227
    %246 = vmatprep.subr.mxu0 0.0
    %247 = vmatpush1.msra.mxu0 %v226
    %248 = vmatprep.subr.mxu0 0.0
    %249 = vmatpush1.msra.mxu0 %v225
    %250 = vmatprep.subr.mxu0 0.0
    %251 = vmatpush1.msra.mxu0 %v224
    %252 = vmatprep.subr.mxu0 0.0
    %253 = vmatpush1.msra.mxu0 %v223
    %254 = vmatprep.subr.mxu0 0.0
    %255 = vmatpush1.msra.mxu0 %v222
    %256 = vmatprep.subr.mxu0 0.0
    %257 = vmatpush1.msra.mxu0 %v221
    %258 = vmatprep.subr.mxu0 0.0
    %259 = vmatpush1.msra.mxu0 %v220
    %260 = vmatprep.subr.mxu0 0.0
    %261 = vmatpush1.msra.mxu0 %v219
    %262 = vmatprep.subr.mxu0 0.0
    %263 = vmatpush1.msra.mxu0 %v218
    %264 = vmatprep.subr.mxu0 0.0
    %265 = vmatpush1.msra.mxu0 %v217
    %266 = vmatprep.subr.mxu0 0.0
    %267 = vmatpush1.msra.mxu0 %v216
    %268 = vmatprep.subr.mxu0 0.0
    %269 = vmatpush1.msra.mxu0 %v215
    %270 = vmatprep.subr.mxu0 0.0
    %271 = vmatpush1.msra.mxu0 %v214
    %272 = vmatprep.subr.mxu0 0.0
    %273 = vmatpush1.msra.mxu0 %v213
    %274 = vmatprep.subr.mxu0 0.0
    %275 = vmatpush1.msra.mxu0 %v212
    %276 = vmatprep.subr.mxu0 0.0
    %277 = vmatpush2.msra.mxu0 %v243
    %278 = vmatprep.subr.mxu0 0.0
    %279 = vmatpush2.msra.mxu0 %v242
    %280 = vmatprep.subr.mxu0 0.0
    %281 = vmatpush2.msra.mxu0 %v241
    %282 = vmatprep.subr.mxu0 0.0
    %283 = vmatpush2.msra.mxu0 %v240
    %284 = vmatprep.subr.mxu0 0.0
    %285 = vmatpush2.msra.mxu0 %v239
    %286 = vmatprep.subr.mxu0 0.0
    %287 = vmatpush2.msra.mxu0 %v238
    %288 = vmatprep.subr.mxu0 0.0
    %289 = vmatpush2.msra.mxu0 %v237
    %290 = vmatprep.subr.mxu0 0.0
    %291 = vmatpush2.msra.mxu0 %v236
    %292 = vmatprep.subr.mxu0 0.0
    %293 = vmatpush2.msra.mxu0 %v235
    %294 = vmatprep.subr.mxu0 0.0
    %295 = vmatpush2.msra.mxu0 %v234
    %296 = vmatprep.subr.mxu0 0.0
    %297 = vmatpush2.msra.mxu0 %v233
    %298 = vmatprep.subr.mxu0 0.0
    %299 = vmatpush2.msra.mxu0 %v232
    %300 = vmatprep.subr.mxu0 0.0
    %301 = vmatpush2.msra.mxu0 %v231
    %302 = vmatprep.subr.mxu0 0.0
    %303 = vmatpush2.msra.mxu0 %v230
    %304 = vmatprep.subr.mxu0 0.0
    %305 = vmatpush2.msra.mxu0 %v229
    %306 = vmatprep.subr.mxu0 0.0
    %307 = vmatpush2.msra.mxu0 %v228
    %308 = vmatprep.mubr.f32.mxu0 %v207
    %309 = vmatmul.mubr.f32.gmra.mxu0 %v206
    %v310 = vpop.f32.mrf.mxu0
    %v311 = vadd.f32 0.0, %v310
    %v312 = vpop.f32.mrf.mxu0
    %313 = vmatprep.mubr.f32.mxu0 %v209
    %314 = vmatmul.mubr.f32.gmra.mxu0 %v208
    %v315 = vpop.f32.mrf.mxu0
    %v316 = vadd.f32 0.0, %v315
    %v317 = vpop.f32.mrf.mxu0
    %318 = vdwg.mxu0
    %v319 = vadd.f32 %v210, %v311
    %v320 = vadd.f32 %v211, %v316
    %321 = vst [vmem:[#allocation3] sm:$0xff] %v319
    %322 = vst [vmem:[#allocation3 + $0x8] sm:$0xff] %v320
    // Predicated region
    $region34: #{decoder_block_forward.11} parent=1 // pred_check
      %p323 = pneg %p29
    $region35: #{decoder_block_forward.11} parent=1 // pred_check_branch
      %325 = sbr.rel (%p323) target = $region37
    $region36: #{decoder_block_forward.11} parent=1 // pred_region
      %v326 = vld [vmem:[#allocation3] sm:$0xff]
      %v327 = vld [vmem:[#allocation3 + $0x8] sm:$0xff]
      %v328 = vld [vmem:[%s6] sm:$0x1]
      %v330 = vlaneseq
      %v331 = vshrl.u32 %v330, 7
      %v332 = vsub.s32 0, %v331
      %v333 = vrot.slane %v328, %v332
      %v335 = vadd.f32 %v326, %v333
      %v336 = vadd.f32 %v327, %v333
      %v337 = vld [vmem:[%s2] sm:$0xff]
      %v338 = vld [vmem:[%s2 + $0x8] sm:$0xff]
      %v339 = vadd.f32 %v335, %v337
      %v340 = vadd.f32 %v336, %v338
      %341 = vst [vmem:[#allocation6] sm:$0xff] %v339
      %342 = vst [vmem:[#allocation6 + $0x8] sm:$0xff] %v340
    $region37: #{decoder_block_forward.11} parent=1 // pred_fallthru
      _
    // Predicated region
    $region38: #{decoder_block_forward.11} parent=1 // pred_check
      _
    $region39: #{decoder_block_forward.11} parent=1 // pred_check_branch
      %344 = sbr.rel (0) target = $region41
    $region40: #{decoder_block_forward.11} parent=1 // pred_region
      %s346 = ssub.s32 256, 256
      %347 = vsyncadd [#allocation7], %s346
      %s348 = sshll.u32 [#allocation6], 4
      %s349 = int_to_ptr.vmem [resolvable:$true] %s348
      %354 = dma.vmem_to_hbm [thread:$0]  %s349, 256, %s7, [#allocation7], 128, 128, 8
    $region41: #{decoder_block_forward.11} parent=1 // pred_fallthru
      _
    // Predicated region
    $region42: #{decoder_block_forward.11} parent=1 // pred_check
      _
    $region43: #{decoder_block_forward.11} parent=1 // pred_check_branch
      %356 = sbr.rel (0) target = $region45
    $region44: #{decoder_block_forward.11} parent=1 // pred_region
      %357 = dma.done [#allocation7], 256
    $region45: #{decoder_block_forward.11} parent=1 // pred_fallthru
      _
    %358 = vsyncpa [#allocation7], 1

// kernel: decoder_block_forward.10
$region0: #{decoder_block_forward.10}
  #allocation0 [shape = 'u32[]', space=smem, size = 0x4, offset = 0x4, fixed_abs, tag = 'smem constant byte address 0x4 - core index']
  #allocation1 [shape = 'u32[144,128]{1,0:T(1,128)}', space=vmem, size = 0x12000, scoped, tag = 'internal scratch']
  %s0 = inlined_call_operand.vmem [shape: f32[2,8,128], index: 0, kind: input, shape index: {}]
  %s1 = inlined_call_operand.vmem [shape: f32[2,16,256], index: 1, kind: input, shape index: {}, may-alias: {1,2}]
  %s2 = inlined_call_operand.vmem [shape: f32[2,16,256], index: 2, kind: input, shape index: {}, may-alias: {1,2}]
  %s3 = inlined_call_operand.vmem [shape: s32[2,1,8,16], index: 3, kind: input, shape index: {}]
  %s4 = inlined_call_operand.vmem [shape: f32[2,8,128], index: 4, kind: input, shape index: {}]
  %s5 = inlined_call_operand.vmem [shape: f32[128,128], index: 5, kind: input, shape index: {}]
  %s6 = inlined_call_operand.vmem [shape: f32[1,128], index: 6, kind: input, shape index: {}]
  %s7 = inlined_call_operand.vmem [shape: f32[2,8,128], index: 7, kind: output, shape index: {}]
  %s8 = sld [smem:[#allocation0]]
  $region137: #{decoder_block_forward.10} parent=0
    _
  %s10 = ssub.s32 1, %s8
  %s11 = scalar_select 0, %s10, %s8
  $region1: #{decoder_block_forward.10} parent=0
    #allocation2 [shape = 'u8[16384]{0}', space=vmem, size = 0x4000, scoped, tag = 'input window, operand 1']
    #allocation3 [shape = 'u8[16384]{0}', space=vmem, size = 0x4000, scoped, tag = 'input window, operand 2']
    loop: start=0, step=1, limit=4
    $region2: #{decoder_block_forward.10} parent=1 // loop_pre_header
      _
    $region3: #{decoder_block_forward.10} parent=1 // loop_header
      %s13 = sphi 0, %s17
      %p14 = scmp.ge.s32.totalorder %s13, 4
      %s23 = sphi 0, %s25
      %s26 = sphi 0, %s23
      %s27 = sphi 0, %s26
      %s43 = sphi 0, %s27
      %s49 = sphi 0, %s51
      %s52 = sphi 0, %s49
      %s53 = sphi 0, %s52
      %s69 = sphi 0, %s53
      %s75 = sphi 0, %s77
      %s78 = sphi 0, %s75
      %s79 = sphi 0, %s78
      %s95 = sphi 0, %s79
      %s101 = sphi 0, %s103
      %s104 = sphi 0, %s101
      %s105 = sphi 0, %s104
      %s121 = sphi 0, %s105
      %s127 = sphi 0, %s129
      %s130 = sphi 0, %s127
      %s131 = sphi 0, %s130
      %s147 = sphi 0, %s131
      %s151 = sphi 0, %s151
      %s153 = sphi 0, %s151
      %s154 = sphi 0, %s153
      %s168 = sphi 0, %s154
      %s172 = sphi 0, %s172
      %s174 = sphi 0, %s172
      %s175 = sphi 0, %s174
      %s189 = sphi 0, %s175
      %s195 = sphi 0, %s197
      %s198 = sphi 0, %s195
      %s199 = sphi 0, %s198
      %s215 = sphi 0, %s199
    $region4: #{decoder_block_forward.10} parent=1 // loop_header_branch
      %16 = sbr.rel (%p14) target = $region8
    $region5: #{decoder_block_forward.10} parent=1 // loop_body
      %s18 = ssub.s32 %s13, 1
      %s19 = ssub.s32 %s13, 2
      %s20 = sadd.s32 %s13, 1
      %s21 = ssub.s32 %s13, %s20
      %p22 = scmp.eq.s32.totalorder %s21, 0
      %s24 = sadd.s32 %s23, 1
      %s25 = scalar_select %p22, %s23, %s24
      %p28 = pneg %p22
      %p29 = scmp.eq.s32.totalorder %s13, 1
      %p30 = por %p28, %p29
      %p31 = scmp.ne.s32.totalorder %s23, %s26
      %p32 = scmp.eq.s32.totalorder %s13, 0
      %p33 = por %p31, %p32
      %p34 = scmp.ne.s32.totalorder %s23, %s26
      %p35 = scmp.eq.s32.totalorder %s18, 1
      %p36 = por %p34, %p35
      %p37 = scmp.ne.s32.totalorder %s26, %s27
      %p38 = scmp.eq.s32.totalorder %s18, 0
      %p39 = por %p37, %p38
      %p40 = scmp.ne.s32.totalorder %s26, %s27
      %p41 = scmp.eq.s32.totalorder %s19, 1
      %p42 = por %p40, %p41
      %p44 = scmp.ne.s32.totalorder %s27, %s43
      %p45 = scmp.eq.s32.totalorder %s19, 0
      %p46 = por %p44, %p45
      %s47 = ssub.s32 %s13, %s20
      %p48 = scmp.eq.s32.totalorder %s47, 0
      %s50 = sadd.s32 %s49, 1
      %s51 = scalar_select %p48, %s49, %s50
      %p54 = pneg %p48
      %p55 = scmp.eq.s32.totalorder %s13, 1
      %p56 = por %p54, %p55
      %p57 = scmp.ne.s32.totalorder %s49, %s52
      %p58 = scmp.eq.s32.totalorder %s13, 0
      %p59 = por %p57, %p58
      %p60 = scmp.ne.s32.totalorder %s49, %s52
      %p61 = scmp.eq.s32.totalorder %s18, 1
      %p62 = por %p60, %p61
      %p63 = scmp.ne.s32.totalorder %s52, %s53
      %p64 = scmp.eq.s32.totalorder %s18, 0
      %p65 = por %p63, %p64
      %p66 = scmp.ne.s32.totalorder %s52, %s53
      %p67 = scmp.eq.s32.totalorder %s19, 1
      %p68 = por %p66, %p67
      %p70 = scmp.ne.s32.totalorder %s53, %s69
      %p71 = scmp.eq.s32.totalorder %s19, 0
      %p72 = por %p70, %p71
      %s73 = ssub.s32 %s13, %s20
      %p74 = scmp.eq.s32.totalorder %s73, 0
      %s76 = sadd.s32 %s75, 1
      %s77 = scalar_select %p74, %s75, %s76
      %p80 = pneg %p74
      %p81 = scmp.eq.s32.totalorder %s13, 1
      %p82 = por %p80, %p81
      %p83 = scmp.ne.s32.totalorder %s75, %s78
      %p84 = scmp.eq.s32.totalorder %s13, 0
      %p85 = por %p83, %p84
      %p86 = scmp.ne.s32.totalorder %s75, %s78
      %p87 = scmp.eq.s32.totalorder %s18, 1
      %p88 = por %p86, %p87
      %p89 = scmp.ne.s32.totalorder %s78, %s79
      %p90 = scmp.eq.s32.totalorder %s18, 0
      %p91 = por %p89, %p90
      %p92 = scmp.ne.s32.totalorder %s78, %s79
      %p93 = scmp.eq.s32.totalorder %s19, 1
      %p94 = por %p92, %p93
      %p96 = scmp.ne.s32.totalorder %s79, %s95
      %p97 = scmp.eq.s32.totalorder %s19, 0
      %p98 = por %p96, %p97
      %s99 = ssub.s32 %s13, %s20
      %p100 = scmp.eq.s32.totalorder %s99, 0
      %s102 = sadd.s32 %s101, 1
      %s103 = scalar_select %p100, %s101, %s102
      %p106 = pneg %p100
      %p107 = scmp.eq.s32.totalorder %s13, 1
      %p108 = por %p106, %p107
      %p109 = scmp.ne.s32.totalorder %s101, %s104
      %p110 = scmp.eq.s32.totalorder %s13, 0
      %p111 = por %p109, %p110
      %p112 = scmp.ne.s32.totalorder %s101, %s104
      %p113 = scmp.eq.s32.totalorder %s18, 1
      %p114 = por %p112, %p113
      %p115 = scmp.ne.s32.totalorder %s104, %s105
      %p116 = scmp.eq.s32.totalorder %s18, 0
      %p117 = por %p115, %p116
      %p118 = scmp.ne.s32.totalorder %s104, %s105
      %p119 = scmp.eq.s32.totalorder %s19, 1
      %p120 = por %p118, %p119
      %p122 = scmp.ne.s32.totalorder %s105, %s121
      %p123 = scmp.eq.s32.totalorder %s19, 0
      %p124 = por %p122, %p123
      %s125 = ssub.s32 %s13, %s20
      %p126 = scmp.eq.s32.totalorder %s125, 0
      %s128 = sadd.s32 %s127, 1
      %s129 = scalar_select %p126, %s127, %s128
      %p132 = pneg %p126
      %p133 = scmp.eq.s32.totalorder %s13, 1
      %p134 = por %p132, %p133
      %p135 = scmp.ne.s32.totalorder %s127, %s130
      %p136 = scmp.eq.s32.totalorder %s13, 0
      %p137 = por %p135, %p136
      %p138 = scmp.ne.s32.totalorder %s127, %s130
      %p139 = scmp.eq.s32.totalorder %s18, 1
      %p140 = por %p138, %p139
      %p141 = scmp.ne.s32.totalorder %s130, %s131
      %p142 = scmp.eq.s32.totalorder %s18, 0
      %p143 = por %p141, %p142
      %p144 = scmp.ne.s32.totalorder %s130, %s131
      %p145 = scmp.eq.s32.totalorder %s19, 1
      %p146 = por %p144, %p145
      %p148 = scmp.ne.s32.totalorder %s131, %s147
      %p149 = scmp.eq.s32.totalorder %s19, 0
      %p150 = por %p148, %p149
      %s152 = sadd.s32 %s151, 1
      %p155 = scmp.eq.s32.totalorder %s13, 1
      %p156 = scmp.ne.s32.totalorder %s151, %s153
      %p157 = scmp.eq.s32.totalorder %s13, 0
      %p158 = por %p156, %p157
      %p159 = scmp.ne.s32.totalorder %s151, %s153
      %p160 = scmp.eq.s32.totalorder %s18, 1
      %p161 = por %p159, %p160
      %p162 = scmp.ne.s32.totalorder %s153, %s154
      %p163 = scmp.eq.s32.totalorder %s18, 0
      %p164 = por %p162, %p163
      %p165 = scmp.ne.s32.totalorder %s153, %s154
      %p166 = scmp.eq.s32.totalorder %s19, 1
      %p167 = por %p165, %p166
      %p169 = scmp.ne.s32.totalorder %s154, %s168
      %p170 = scmp.eq.s32.totalorder %s19, 0
      %p171 = por %p169, %p170
      %s173 = sadd.s32 %s172, 1
      %p176 = scmp.eq.s32.totalorder %s13, 1
      %p177 = scmp.ne.s32.totalorder %s172, %s174
      %p178 = scmp.eq.s32.totalorder %s13, 0
      %p179 = por %p177, %p178
      %p180 = scmp.ne.s32.totalorder %s172, %s174
      %p181 = scmp.eq.s32.totalorder %s18, 1
      %p182 = por %p180, %p181
      %p183 = scmp.ne.s32.totalorder %s174, %s175
      %p184 = scmp.eq.s32.totalorder %s18, 0
      %p185 = por %p183, %p184
      %p186 = scmp.ne.s32.totalorder %s174, %s175
      %p187 = scmp.eq.s32.totalorder %s19, 1
      %p188 = por %p186, %p187
      %p190 = scmp.ne.s32.totalorder %s175, %s189
      %p191 = scmp.eq.s32.totalorder %s19, 0
      %p192 = por %p190, %p191
      %s193 = ssub.s32 %s13, %s20
      %p194 = scmp.eq.s32.totalorder %s193, 0
      %s196 = sadd.s32 %s195, 1
      %s197 = scalar_select %p194, %s195, %s196
      %p200 = pneg %p194
      %p201 = scmp.eq.s32.totalorder %s13, 1
      %p202 = por %p200, %p201
      %p203 = scmp.ne.s32.totalorder %s195, %s198
      %p204 = scmp.eq.s32.totalorder %s13, 0
      %p205 = por %p203, %p204
      %p206 = scmp.ne.s32.totalorder %s195, %s198
      %p207 = scmp.eq.s32.totalorder %s18, 1
      %p208 = por %p206, %p207
      %p209 = scmp.ne.s32.totalorder %s198, %s199
      %p210 = scmp.eq.s32.totalorder %s18, 0
      %p211 = por %p209, %p210
      %p212 = scmp.ne.s32.totalorder %s198, %s199
      %p213 = scmp.eq.s32.totalorder %s19, 1
      %p214 = por %p212, %p213
      %p216 = scmp.ne.s32.totalorder %s199, %s215
      %p217 = scmp.eq.s32.totalorder %s19, 0
      %p218 = por %p216, %p217
      %p219 = scmp.le.s32.totalorder 1, %s13
      %p220 = scmp.lt.s32.totalorder %s13, 3
      %p221 = pnand %p219, %p220
      %p222 = pneg %p221
      // Predicated region
      $region9: #{decoder_block_forward.10} parent=5 // pred_check
        _
      $region10: #{decoder_block_forward.10} parent=5 // pred_check_branch
        %224 = sbr.rel (%p221) target = $region12
      $region11: #{decoder_block_forward.10} parent=5 // pred_region
        %s225 = ssub.s32 %s13, 1
        // Predicated region
        $region13: #{decoder_block_forward.10} parent=11 // pred_check
          %p226 = pneg %p164
        $region14: #{decoder_block_forward.10} parent=11 // pred_check_branch
          %228 = sbr.rel (%p226) target = $region16
        $region15: #{decoder_block_forward.10} parent=11 // pred_region
          _
        $region16: #{decoder_block_forward.10} parent=11 // pred_fallthru
          _
        // Predicated region
        $region17: #{decoder_block_forward.10} parent=11 // pred_check
          %p229 = pneg %p185
        $region18: #{decoder_block_forward.10} parent=11 // pred_check_branch
          %231 = sbr.rel (%p229) target = $region20
        $region19: #{decoder_block_forward.10} parent=11 // pred_region
          _
        $region20: #{decoder_block_forward.10} parent=11 // pred_fallthru
          _
      $region12: #{decoder_block_forward.10} parent=5 // pred_fallthru
        _
      %p232 = scmp.lt.s32.totalorder %s13, 2
      // Predicated region
      $region21: #{decoder_block_forward.10} parent=5 // pred_check
        %p233 = pneg %p232
      $region22: #{decoder_block_forward.10} parent=5 // pred_check_branch
        %235 = sbr.rel (%p233) target = $region24
      $region23: #{decoder_block_forward.10} parent=5 // pred_region
        // Predicated region
        $region25: #{decoder_block_forward.10} parent=23 // pred_check
          %p236 = pneg %p33
        $region26: #{decoder_block_forward.10} parent=23 // pred_check_branch
          %238 = sbr.rel (%p236) target = $region28
        $region27: #{decoder_block_forward.10} parent=23 // pred_region
          %p239 = scmp.lt.s32.totalorder %s13, 1
          %s240 = scalar_select %p239, %s13, 1
          %s241 = smul.addr %s240, 8
          %s242 = scalar_lea.vmem %s0, %s241
        $region28: #{decoder_block_forward.10} parent=23 // pred_fallthru
          _
        // Predicated region
        $region29: #{decoder_block_forward.10} parent=23 // pred_check
          %p243 = pneg %p59
        $region30: #{decoder_block_forward.10} parent=23 // pred_check_branch
          %245 = sbr.rel (%p243) target = $region32
        $region31: #{decoder_block_forward.10} parent=23 // pred_region
          %s246 = sand.u32 %s49, 1
          %s247 = sand.u32 %s49, 1
          %s248 = smul.addr %s247, 16
          %s249 = scalar_lea.vmem [#allocation2], %s248
          %s250 = smul.addr %s13, 4
          %s251 = smul.addr %s250, 8
          %s252 = scalar_lea.vmem %s1, %s251
          // Predicated region
          $region33: #{decoder_block_forward.10} parent=31 // pred_check
            _
          $region34: #{decoder_block_forward.10} parent=31 // pred_check_branch
            %254 = sbr.rel (0) target = $region36
          $region35: #{decoder_block_forward.10} parent=31 // pred_region
            // Predicated region
            $region37: #{decoder_block_forward.10} parent=35 // pred_check
              _
            $region38: #{decoder_block_forward.10} parent=35 // pred_check_branch
              %256 = sbr.rel (0) target = $region40
            $region39: #{decoder_block_forward.10} parent=35 // pred_region
              // Predicated region
              $region52: #{decoder_block_forward.10} parent=39 // pred_check
                _
              $region53: #{decoder_block_forward.10} parent=39 // pred_check_branch
                %274 = sbr.rel (0) target = $region55
              $region54: #{decoder_block_forward.10} parent=39 // pred_region
                loop: start=0, step=1, limit=1
                $region56: #{decoder_block_forward.10} parent=54 // loop_pre_header
                  _
                $region57: #{decoder_block_forward.10} parent=54 // loop_header
                  %s276 = sphi 0, %s280
                  %p277 = scmp.ge.s32.totalorder %s276, 1
                  %s281 = sphi %s252, %s252
                  %s282 = sphi %s249, %s249
                $region58: #{decoder_block_forward.10} parent=54 // loop_header_branch
                  %279 = sbr.rel (%p277) target = $region62
                $region59: #{decoder_block_forward.10} parent=54 // loop_body
                  %v283 = vld [vmem:[%s281] sm:$0xff]
                  %284 = vst [vmem:[%s282] sm:$0xff] %v283
                  %v285 = vld [vmem:[%s281 + $0x10] sm:$0xff]
                  %286 = vst [vmem:[%s282 + $0x8] sm:$0xff] %v285
                $region60: #{decoder_block_forward.10} parent=54 // loop_footer
                  %s280 = sadd.s32 1, %s276
                $region61: #{decoder_block_forward.10} parent=54 // loop_footer_branch
                  %275 = sbr.rel target = $region57
                $region62: #{decoder_block_forward.10} parent=54 // loop_exit
                  _
              $region55: #{decoder_block_forward.10} parent=39 // pred_fallthru
                _
              // Predicated region
              $region63: #{decoder_block_forward.10} parent=39 // pred_check
                _
              $region64: #{decoder_block_forward.10} parent=39 // pred_check_branch
                %288 = sbr.rel target = $region66
              $region65: #{decoder_block_forward.10} parent=39 // pred_region
                _
              $region66: #{decoder_block_forward.10} parent=39 // pred_fallthru
                _
            $region40: #{decoder_block_forward.10} parent=35 // pred_fallthru
              _
            // Predicated region
            $region41: #{decoder_block_forward.10} parent=35 // pred_check
              _
            $region42: #{decoder_block_forward.10} parent=35 // pred_check_branch
              %258 = sbr.rel target = $region44
            $region43: #{decoder_block_forward.10} parent=35 // pred_region
              %s260 = ssub.s32 256, 1
              loop: start=0, step=1, limit=1
              $region45: #{decoder_block_forward.10} parent=43 // loop_pre_header
                _
              $region46: #{decoder_block_forward.10} parent=43 // loop_header
                %s262 = sphi 0, %s266
                %p263 = scmp.ge.s32.totalorder %s262, 1
                %s267 = sphi %s252, %s252
                %s268 = sphi %s249, %s249
              $region47: #{decoder_block_forward.10} parent=43 // loop_header_branch
                %265 = sbr.rel (%p263) target = $region51
              $region48: #{decoder_block_forward.10} parent=43 // loop_body
                %v269 = vld [vmem:[%s267] sm:%s260]
                %270 = vst [vmem:[%s268] sm:%s260] %v269
                %v271 = vld [vmem:[%s267 + $0x10] sm:%s260]
                %272 = vst [vmem:[%s268 + $0x8] sm:%s260] %v271
              $region49: #{decoder_block_forward.10} parent=43 // loop_footer
                %s266 = sadd.s32 1, %s262
              $region50: #{decoder_block_forward.10} parent=43 // loop_footer_branch
                %261 = sbr.rel target = $region46
              $region51: #{decoder_block_forward.10} parent=43 // loop_exit
                _
            $region44: #{decoder_block_forward.10} parent=35 // pred_fallthru
              _
          $region36: #{decoder_block_forward.10} parent=31 // pred_fallthru
            _
          %289 = vnop
        $region32: #{decoder_block_forward.10} parent=23 // pred_fallthru
          _
        // Predicated region
        $region67: #{decoder_block_forward.10} parent=23 // pred_check
          %p290 = pneg %p85
        $region68: #{decoder_block_forward.10} parent=23 // pred_check_branch
          %292 = sbr.rel (%p290) target = $region70
        $region69: #{decoder_block_forward.10} parent=23 // pred_region
          %s293 = sand.u32 %s75, 1
          %s294 = sand.u32 %s75, 1
          %s295 = smul.addr %s294, 16
          %s296 = scalar_lea.vmem [#allocation3], %s295
          %s297 = smul.addr %s13, 4
          %s298 = sadd.s32 1, %s297
          %s299 = smul.addr %s298, 8
          %s300 = scalar_lea.vmem %s2, %s299
          // Predicated region
          $region71: #{decoder_block_forward.10} parent=69 // pred_check
            _
          $region72: #{decoder_block_forward.10} parent=69 // pred_check_branch
            %302 = sbr.rel (0) target = $region74
          $region73: #{decoder_block_forward.10} parent=69 // pred_region
            // Predicated region
            $region75: #{decoder_block_forward.10} parent=73 // pred_check
              _
            $region76: #{decoder_block_forward.10} parent=73 // pred_check_branch
              %304 = sbr.rel (0) target = $region78
            $region77: #{decoder_block_forward.10} parent=73 // pred_region
              // Predicated region
              $region90: #{decoder_block_forward.10} parent=77 // pred_check
                _
              $region91: #{decoder_block_forward.10} parent=77 // pred_check_branch
                %322 = sbr.rel (0) target = $region93
              $region92: #{decoder_block_forward.10} parent=77 // pred_region
                loop: start=0, step=1, limit=1
                $region94: #{decoder_block_forward.10} parent=92 // loop_pre_header
                  _
                $region95: #{decoder_block_forward.10} parent=92 // loop_header
                  %s324 = sphi 0, %s328
                  %p325 = scmp.ge.s32.totalorder %s324, 1
                  %s329 = sphi %s300, %s300
                  %s330 = sphi %s296, %s296
                $region96: #{decoder_block_forward.10} parent=92 // loop_header_branch
                  %327 = sbr.rel (%p325) target = $region100
                $region97: #{decoder_block_forward.10} parent=92 // loop_body
                  %v331 = vld [vmem:[%s329] sm:$0xff]
                  %332 = vst [vmem:[%s330] sm:$0xff] %v331
                  %v333 = vld [vmem:[%s329 + $0x10] sm:$0xff]
                  %334 = vst [vmem:[%s330 + $0x8] sm:$0xff] %v333
                $region98: #{decoder_block_forward.10} parent=92 // loop_footer
                  %s328 = sadd.s32 1, %s324
                $region99: #{decoder_block_forward.10} parent=92 // loop_footer_branch
                  %323 = sbr.rel target = $region95
                $region100: #{decoder_block_forward.10} parent=92 // loop_exit
                  _
              $region93: #{decoder_block_forward.10} parent=77 // pred_fallthru
                _
              // Predicated region
              $region101: #{decoder_block_forward.10} parent=77 // pred_check
                _
              $region102: #{decoder_block_forward.10} parent=77 // pred_check_branch
                %336 = sbr.rel target = $region104
              $region103: #{decoder_block_forward.10} parent=77 // pred_region
                _
              $region104: #{decoder_block_forward.10} parent=77 // pred_fallthru
                _
            $region78: #{decoder_block_forward.10} parent=73 // pred_fallthru
              _
            // Predicated region
            $region79: #{decoder_block_forward.10} parent=73 // pred_check
              _
            $region80: #{decoder_block_forward.10} parent=73 // pred_check_branch
              %306 = sbr.rel target = $region82
            $region81: #{decoder_block_forward.10} parent=73 // pred_region
              %s308 = ssub.s32 256, 1
              loop: start=0, step=1, limit=1
              $region83: #{decoder_block_forward.10} parent=81 // loop_pre_header
                _
              $region84: #{decoder_block_forward.10} parent=81 // loop_header
                %s310 = sphi 0, %s314
                %p311 = scmp.ge.s32.totalorder %s310, 1
                %s315 = sphi %s300, %s300
                %s316 = sphi %s296, %s296
              $region85: #{decoder_block_forward.10} parent=81 // loop_header_branch
                %313 = sbr.rel (%p311) target = $region89
              $region86: #{decoder_block_forward.10} parent=81 // loop_body
                %v317 = vld [vmem:[%s315] sm:%s308]
                %318 = vst [vmem:[%s316] sm:%s308] %v317
                %v319 = vld [vmem:[%s315 + $0x10] sm:%s308]
                %320 = vst [vmem:[%s316 + $0x8] sm:%s308] %v319
              $region87: #{decoder_block_forward.10} parent=81 // loop_footer
                %s314 = sadd.s32 1, %s310
              $region88: #{decoder_block_forward.10} parent=81 // loop_footer_branch
                %309 = sbr.rel target = $region84
              $region89: #{decoder_block_forward.10} parent=81 // loop_exit
                _
            $region82: #{decoder_block_forward.10} parent=73 // pred_fallthru
              _
          $region74: #{decoder_block_forward.10} parent=69 // pred_fallthru
            _
          %337 = vnop
        $region70: #{decoder_block_forward.10} parent=23 // pred_fallthru
          _
        // Predicated region
        $region105: #{decoder_block_forward.10} parent=23 // pred_check
          %p338 = pneg %p111
        $region106: #{decoder_block_forward.10} parent=23 // pred_check_branch
          %340 = sbr.rel (%p338) target = $region108
        $region107: #{decoder_block_forward.10} parent=23 // pred_region
          %p341 = scmp.lt.s32.totalorder %s13, 1
          %s342 = scalar_select %p341, %s13, 1
          %s343 = smul.addr %s342, 8
          %s344 = scalar_lea.vmem %s3, %s343
        $region108: #{decoder_block_forward.10} parent=23 // pred_fallthru
          _
        // Predicated region
        $region109: #{decoder_block_forward.10} parent=23 // pred_check
          %p345 = pneg %p137
        $region110: #{decoder_block_forward.10} parent=23 // pred_check_branch
          %347 = sbr.rel (%p345) target = $region112
        $region111: #{decoder_block_forward.10} parent=23 // pred_region
          %p348 = scmp.lt.s32.totalorder %s13, 1
          %s349 = scalar_select %p348, %s13, 1
          %s350 = smul.addr %s349, 8
          %s351 = scalar_lea.vmem %s4, %s350
        $region112: #{decoder_block_forward.10} parent=23 // pred_fallthru
          _
      $region24: #{decoder_block_forward.10} parent=5 // pred_fallthru
        _
      %p352 = scmp.le.s32.totalorder 1, %s13
      %p353 = scmp.lt.s32.totalorder %s13, 3
      %p354 = pnand %p352, %p353
      %p355 = pneg %p354
      // Predicated region
      $region113: #{decoder_block_forward.10} parent=5 // pred_check
        _
      $region114: #{decoder_block_forward.10} parent=5 // pred_check_branch
        %357 = sbr.rel (%p354) target = $region116
      $region115: #{decoder_block_forward.10} parent=5 // pred_region
        %s358 = ssub.s32 %s13, 1
        %s359 = sand.u32 %s52, 1
        %s360 = sand.u32 %s52, 1
        %s361 = smul.addr %s360, 16
        %s362 = scalar_lea.vmem [#allocation2], %s361
        // Predicated region
        $region117: #{decoder_block_forward.10} parent=115 // pred_check
          %p363 = pneg %p65
        $region118: #{decoder_block_forward.10} parent=115 // pred_check_branch
          %365 = sbr.rel (%p363) target = $region120
        $region119: #{decoder_block_forward.10} parent=115 // pred_region
          _
        $region120: #{decoder_block_forward.10} parent=115 // pred_fallthru
          _
        %s366 = sand.u32 %s78, 1
        %s367 = sand.u32 %s78, 1
        %s368 = smul.addr %s367, 16
        %s369 = scalar_lea.vmem [#allocation3], %s368
        // Predicated region
        $region121: #{decoder_block_forward.10} parent=115 // pred_check
          %p370 = pneg %p91
        $region122: #{decoder_block_forward.10} parent=115 // pred_check_branch
          %372 = sbr.rel (%p370) target = $region124
        $region123: #{decoder_block_forward.10} parent=115 // pred_region
          _
        $region124: #{decoder_block_forward.10} parent=115 // pred_fallthru
          _
        %p373 = scmp.lt.s32.totalorder %s18, 1
        %s374 = scalar_select %p373, %s18, 1
        %s375 = smul.addr %s374, 8
        %s376 = scalar_lea.vmem %s0, %s375
        %p377 = pneg %p39
        %p378 = pneg %p36
        %s379 = sand.u32 %s52, 1
        %s380 = sand.u32 %s52, 1
        %s381 = smul.addr %s380, 16
        %s382 = scalar_lea.vmem [#allocation2], %s381
        %p383 = pneg %p65
        %p384 = pneg %p62
        %s385 = sand.u32 %s78, 1
        %s386 = sand.u32 %s78, 1
        %s387 = smul.addr %s386, 16
        %s388 = scalar_lea.vmem [#allocation3], %s387
        %p389 = pneg %p91
        %p390 = pneg %p88
        %p391 = scmp.lt.s32.totalorder %s18, 1
        %s392 = scalar_select %p391, %s18, 1
        %s393 = smul.addr %s392, 8
        %s394 = scalar_lea.vmem %s3, %s393
        %p395 = pneg %p117
        %p396 = pneg %p114
        %p397 = scmp.lt.s32.totalorder %s18, 1
        %s398 = scalar_select %p397, %s18, 1
        %s399 = smul.addr %s398, 8
        %s400 = scalar_lea.vmem %s4, %s399
        %p401 = pneg %p143
        %p402 = pneg %p140
        %p403 = pneg %p164
        %p404 = pneg %p161
        %p405 = pneg %p185
        %p406 = pneg %p182
        %p407 = pneg %p211
        %p408 = pneg %p208
        %p409 = scmp.lt.s32.totalorder %s18, 1
        %s410 = scalar_select %p409, %s18, 1
        %s411 = smul.addr %s410, 8
        %s412 = scalar_lea.vmem %s7, %s411
        %p413 = scmp.lt.s32.totalorder %s18, 1
        %s414 = scalar_select %p413, %s18, 1
        %s415 = smul.addr %s414, 8
        %s416 = scalar_lea.vmem %s0, %s415
        %p417 = scmp.lt.s32.totalorder %s18, 1
        %s418 = scalar_select %p417, %s18, 1
        %s419 = smul.addr %s418, 8
        %s420 = scalar_lea.vmem %s3, %s419
        %p421 = scmp.lt.s32.totalorder %s18, 1
        %s422 = scalar_select %p421, %s18, 1
        %s423 = smul.addr %s422, 8
        %s424 = scalar_lea.vmem %s4, %s423
        %p425 = scmp.lt.s32.totalorder %s18, 1
        %s426 = scalar_select %p425, %s18, 1
        %s427 = smul.addr %s426, 8
        %s428 = scalar_lea.vmem %s7, %s427
        %v429 = vld [vmem:[%s416] sm:$0xff]
        %v430 = vld [vmem:[%s362] sm:$0xff]
        %v431 = vld [vmem:[%s362 + $0x8] sm:$0xff]
        %v432 = vld [vmem:[%s369] sm:$0xff]
        %v433 = vld [vmem:[%s369 + $0x8] sm:$0xff]
        %v434 = vld [vmem:[%s420] sm:$0xff]
        %vm435 = vcmp.eq.s32.totalorder %v434, 0
        %v436 = vld [vmem:[%s424] sm:$0xff]
        %v437 = vld [vmem:[%s6] sm:$0x1]
        %v439 = vlaneseq
        %v440 = vshrl.u32 %v439, 7
        %v441 = vsub.s32 0, %v440
        %v442 = vrot.slane %v437, %v441
        %v444 = vadd.f32 %v436, %v442
        %vm445 = vcmask 261120
        %v447 = vsel %vm445, %v429, 0
        %v450 = vsel %vm445, %v430, 0
        %v453 = vsel %vm445, %v431, 0
        %455 = vmatprep.subr.mxu0 0.0
        %456 = vmatpush1.xpose.msra.mxu0 0.0
        %457 = vmatprep.subr.mxu0 0.0
        %458 = vmatpush1.xpose.msra.mxu0 0.0
        %459 = vmatprep.subr.mxu0 0.0
        %460 = vmatpush1.xpose.msra.mxu0 0.0
        %461 = vmatprep.subr.mxu0 0.0
        %462 = vmatpush1.xpose.msra.mxu0 0.0
        %463 = vmatprep.subr.mxu0 0.0
        %464 = vmatpush1.xpose.msra.mxu0 0.0
        %465 = vmatprep.subr.mxu0 0.0
        %466 = vmatpush1.xpose.msra.mxu0 0.0
        %467 = vmatprep.subr.mxu0 0.0
        %468 = vmatpush1.xpose.msra.mxu0 0.0
        %469 = vmatprep.subr.mxu0 0.0
        %470 = vmatpush1.xpose.msra.mxu0 0.0
        %471 = vmatprep.subr.mxu0 0.0
        %472 = vmatpush1.xpose.msra.mxu0 0.0
        %473 = vmatprep.subr.mxu0 0.0
        %474 = vmatpush1.xpose.msra.mxu0 0.0
        %475 = vmatprep.subr.mxu0 0.0
        %476 = vmatpush1.xpose.msra.mxu0 0.0
        %477 = vmatprep.subr.mxu0 0.0
        %478 = vmatpush1.xpose.msra.mxu0 0.0
        %479 = vmatprep.subr.mxu0 0.0
        %480 = vmatpush1.xpose.msra.mxu0 0.0
        %481 = vmatprep.subr.mxu0 0.0
        %482 = vmatpush1.xpose.msra.mxu0 0.0
        %483 = vmatprep.subr.mxu0 0.0
        %484 = vmatpush1.xpose.msra.mxu0 %v453
        %485 = vmatprep.subr.mxu0 0.0
        %486 = vmatpush1.xpose.msra.mxu0 %v450
        %487 = vmatprep.subr.mxu0 0.0
        %488 = vmatpush2.xpose.msra.mxu0 0.0
        %489 = vmatprep.subr.mxu0 0.0
        %490 = vmatpush2.xpose.msra.mxu0 0.0
        %491 = vmatprep.subr.mxu0 0.0
        %492 = vmatpush2.xpose.msra.mxu0 0.0
        %493 = vmatprep.subr.mxu0 0.0
        %494 = vmatpush2.xpose.msra.mxu0 0.0
        %495 = vmatprep.subr.mxu0 0.0
        %496 = vmatpush2.xpose.msra.mxu0 0.0
        %497 = vmatprep.subr.mxu0 0.0
        %498 = vmatpush2.xpose.msra.mxu0 0.0
        %499 = vmatprep.subr.mxu0 0.0
        %500 = vmatpush2.xpose.msra.mxu0 0.0
        %501 = vmatprep.subr.mxu0 0.0
        %502 = vmatpush2.xpose.msra.mxu0 0.0
        %503 = vmatprep.subr.mxu0 0.0
        %504 = vmatpush2.xpose.msra.mxu0 0.0
        %505 = vmatprep.subr.mxu0 0.0
        %506 = vmatpush2.xpose.msra.mxu0 0.0
        %507 = vmatprep.subr.mxu0 0.0
        %508 = vmatpush2.xpose.msra.mxu0 0.0
        %509 = vmatprep.subr.mxu0 0.0
        %510 = vmatpush2.xpose.msra.mxu0 0.0
        %511 = vmatprep.subr.mxu0 0.0
        %512 = vmatpush2.xpose.msra.mxu0 0.0
        %513 = vmatprep.subr.mxu0 0.0
        %514 = vmatpush2.xpose.msra.mxu0 0.0
        %515 = vmatprep.subr.mxu0 0.0
        %516 = vmatpush2.xpose.msra.mxu0 0.0
        %517 = vmatprep.subr.mxu0 0.0
        %518 = vmatpush2.xpose.msra.mxu0 0.0
        %519 = vmatprep.mubr.f32.mxu0 0.0
        %520 = vmatmul.mubr.f32.gmra.mxu0 %v447
        %v521 = vpop.f32.mrf.mxu0
        %v522 = vadd.f32 0.0, %v521
        %v523 = vpop.f32.mrf.mxu0
        %524 = vdwg.mxu0
        %v525 = vmul.f32 %v522, 0.17677669
        %v526 = vsel %vm435, -1e+09, %v525
        %vm527 = vcmask 130048
        %v528 = vsel %vm527, %v526, -inf
        %529 = vmax.xlane.f32.xlu0 %v528
        %v530 = vpop.xlane.xlu0 %529
        %v531 = vsub.f32 %v526, %v530
        %v532 = vmul.f32 %v531, 1.442695
        %v533 = vpow.pop %v532
        %v534 = vsel %vm527, %v533, 0.0
        %535 = vadd.xlane.f32.xlu0 %v534
        %v536 = vpop.xlane.xlu0 %535
        %v538 = vsel %vm527, %v533, 0
        %540 = vmatprep.subr.mxu0 0.0
        %541 = vmatpush1.msra.mxu0 0.0
        %542 = vmatprep.subr.mxu0 0.0
        %543 = vmatpush1.msra.mxu0 0.0
        %544 = vmatprep.subr.mxu0 0.0
        %545 = vmatpush1.msra.mxu0 0.0
        %546 = vmatprep.subr.mxu0 0.0
        %547 = vmatpush1.msra.mxu0 0.0
        %548 = vmatprep.subr.mxu0 0.0
        %549 = vmatpush1.msra.mxu0 0.0
        %550 = vmatprep.subr.mxu0 0.0
        %551 = vmatpush1.msra.mxu0 0.0
        %552 = vmatprep.subr.mxu0 0.0
        %553 = vmatpush1.msra.mxu0 0.0
        %554 = vmatprep.subr.mxu0 0.0
        %555 = vmatpush1.msra.mxu0 0.0
        %556 = vmatprep.subr.mxu0 0.0
        %557 = vmatpush1.msra.mxu0 0.0
        %558 = vmatprep.subr.mxu0 0.0
        %559 = vmatpush1.msra.mxu0 0.0
        %560 = vmatprep.subr.mxu0 0.0
        %561 = vmatpush1.msra.mxu0 0.0
        %562 = vmatprep.subr.mxu0 0.0
        %563 = vmatpush1.msra.mxu0 0.0
        %564 = vmatprep.subr.mxu0 0.0
        %565 = vmatpush1.msra.mxu0 0.0
        %566 = vmatprep.subr.mxu0 0.0
        %567 = vmatpush1.msra.mxu0 0.0
        %568 = vmatprep.subr.mxu0 0.0
        %569 = vmatpush1.msra.mxu0 %v433
        %570 = vmatprep.subr.mxu0 0.0
        %571 = vmatpush1.msra.mxu0 %v432
        %572 = vmatprep.subr.mxu0 0.0
        %573 = vmatpush2.msra.mxu0 0.0
        %574 = vmatprep.subr.mxu0 0.0
        %575 = vmatpush2.msra.mxu0 0.0
        %576 = vmatprep.subr.mxu0 0.0
        %577 = vmatpush2.msra.mxu0 0.0
        %578 = vmatprep.subr.mxu0 0.0
        %579 = vmatpush2.msra.mxu0 0.0
        %580 = vmatprep.subr.mxu0 0.0
        %581 = vmatpush2.msra.mxu0 0.0
        %582 = vmatprep.subr.mxu0 0.0
        %583 = vmatpush2.msra.mxu0 0.0
        %584 = vmatprep.subr.mxu0 0.0
        %585 = vmatpush2.msra.mxu0 0.0
        %586 = vmatprep.subr.mxu0 0.0
        %587 = vmatpush2.msra.mxu0 0.0
        %588 = vmatprep.subr.mxu0 0.0
        %589 = vmatpush2.msra.mxu0 0.0
        %590 = vmatprep.subr.mxu0 0.0
        %591 = vmatpush2.msra.mxu0 0.0
        %592 = vmatprep.subr.mxu0 0.0
        %593 = vmatpush2.msra.mxu0 0.0
        %594 = vmatprep.subr.mxu0 0.0
        %595 = vmatpush2.msra.mxu0 0.0
        %596 = vmatprep.subr.mxu0 0.0
        %597 = vmatpush2.msra.mxu0 0.0
        %598 = vmatprep.subr.mxu0 0.0
        %599 = vmatpush2.msra.mxu0 0.0
        %600 = vmatprep.subr.mxu0 0.0
        %601 = vmatpush2.msra.mxu0 0.0
        %602 = vmatprep.subr.mxu0 0.0
        %603 = vmatpush2.msra.mxu0 0.0
        %604 = vmatprep.mubr.f32.mxu0 0.0
        %605 = vmatmul.mubr.f32.gmra.mxu0 %v538
        %v606 = vpop.f32.mrf.mxu0
        %v607 = vadd.f32 0.0, %v606
        %v608 = vpop.f32.mrf.mxu0
        %609 = vdwg.mxu0
        %v610 = vrcp.pop %v536
        %v611 = vmul.f32 %v607, %v610
        %v612 = vld [vmem:[%s5] sm:$0xff]
        %v613 = vld [vmem:[%s5 + $0x8] sm:$0xff]
        %v614 = vld [vmem:[%s5 + $0x10] sm:$0xff]
        %v615 = vld [vmem:[%s5 + $0x18] sm:$0xff]
        %v617 = vsel %vm445, %v611, 0
        %619 = vmatprep.subr.mxu0 0.0
        %620 = vmatpush1.msra.mxu0 0.0
        %621 = vmatprep.subr.mxu0 0.0
        %622 = vmatpush1.msra.mxu0 0.0
        %623 = vmatprep.subr.mxu0 0.0
        %624 = vmatpush1.msra.mxu0 0.0
        %625 = vmatprep.subr.mxu0 0.0
        %626 = vmatpush1.msra.mxu0 0.0
        %627 = vmatprep.subr.mxu0 0.0
        %628 = vmatpush1.msra.mxu0 0.0
        %629 = vmatprep.subr.mxu0 0.0
        %630 = vmatpush1.msra.mxu0 0.0
        %631 = vmatprep.subr.mxu0 0.0
        %632 = vmatpush1.msra.mxu0 0.0
        %633 = vmatprep.subr.mxu0 0.0
        %634 = vmatpush1.msra.mxu0 0.0
        %635 = vmatprep.subr.mxu0 0.0
        %636 = vmatpush1.msra.mxu0 0.0
        %637 = vmatprep.subr.mxu0 0.0
        %638 = vmatpush1.msra.mxu0 0.0
        %639 = vmatprep.subr.mxu0 0.0
        %640 = vmatpush1.msra.mxu0 0.0
        %641 = vmatprep.subr.mxu0 0.0
        %642 = vmatpush1.msra.mxu0 0.0
        %643 = vmatprep.subr.mxu0 0.0
        %644 = vmatpush1.msra.mxu0 %v615
        %645 = vmatprep.subr.mxu0 0.0
        %646 = vmatpush1.msra.mxu0 %v614
        %647 = vmatprep.subr.mxu0 0.0
        %648 = vmatpush1.msra.mxu0 %v613
        %649 = vmatprep.subr.mxu0 0.0
        %650 = vmatpush1.msra.mxu0 %v612
        %651 = vmatprep.subr.mxu0 0.0
        %652 = vmatpush2.msra.mxu0 0.0
        %653 = vmatprep.subr.mxu0 0.0
        %654 = vmatpush2.msra.mxu0 0.0
        %655 = vmatprep.subr.mxu0 0.0
        %656 = vmatpush2.msra.mxu0 0.0
        %657 = vmatprep.subr.mxu0 0.0
        %658 = vmatpush2.msra.mxu0 0.0
        %659 = vmatprep.subr.mxu0 0.0
        %660 = vmatpush2.msra.mxu0 0.0
        %661 = vmatprep.subr.mxu0 0.0
        %662 = vmatpush2.msra.mxu0 0.0
        %663 = vmatprep.subr.mxu0 0.0
        %664 = vmatpush2.msra.mxu0 0.0
        %665 = vmatprep.subr.mxu0 0.0
        %666 = vmatpush2.msra.mxu0 0.0
        %667 = vmatprep.subr.mxu0 0.0
        %668 = vmatpush2.msra.mxu0 0.0
        %669 = vmatprep.subr.mxu0 0.0
        %670 = vmatpush2.msra.mxu0 0.0
        %671 = vmatprep.subr.mxu0 0.0
        %672 = vmatpush2.msra.mxu0 0.0
        %673 = vmatprep.subr.mxu0 0.0
        %674 = vmatpush2.msra.mxu0 0.0
        %675 = vmatprep.subr.mxu0 0.0
        %676 = vmatpush2.msra.mxu0 0.0
        %677 = vmatprep.subr.mxu0 0.0
        %678 = vmatpush2.msra.mxu0 0.0
        %679 = vmatprep.subr.mxu0 0.0
        %680 = vmatpush2.msra.mxu0 0.0
        %681 = vmatprep.subr.mxu0 0.0
        %682 = vmatpush2.msra.mxu0 0.0
        %683 = vmatprep.mubr.f32.mxu0 0.0
        %684 = vmatmul.mubr.f32.gmra.mxu0 %v617
        %v685 = vpop.f32.mrf.mxu0
        %v686 = vadd.f32 0.0, %v685
        %v687 = vpop.f32.mrf.mxu0
        %688 = vdwg.mxu0
        %v689 = vadd.f32 %v444, %v686
        %690 = vrot.lane.b32.xlu0 %v429, 96
        %v691 = vpop.permute.xlu0 %690
        %692 = vrot.lane.b32.xlu0 %v430, 96
        %v693 = vpop.permute.xlu0 %692
        %694 = vrot.lane.b32.xlu0 %v431, 96
        %v695 = vpop.permute.xlu0 %694
        %v696 = vsel %vm445, %v691, 0
        %v698 = vsel %vm445, %v693, 0
        %v700 = vsel %vm445, %v695, 0
        %702 = vmatprep.subr.mxu0 0.0
        %703 = vmatpush1.xpose.msra.mxu0 0.0
        %704 = vmatprep.subr.mxu0 0.0
        %705 = vmatpush1.xpose.msra.mxu0 0.0
        %706 = vmatprep.subr.mxu0 0.0
        %707 = vmatpush1.xpose.msra.mxu0 0.0
        %708 = vmatprep.subr.mxu0 0.0
        %709 = vmatpush1.xpose.msra.mxu0 0.0
        %710 = vmatprep.subr.mxu0 0.0
        %711 = vmatpush1.xpose.msra.mxu0 0.0
        %712 = vmatprep.subr.mxu0 0.0
        %713 = vmatpush1.xpose.msra.mxu0 0.0
        %714 = vmatprep.subr.mxu0 0.0
        %715 = vmatpush1.xpose.msra.mxu0 0.0
        %716 = vmatprep.subr.mxu0 0.0
        %717 = vmatpush1.xpose.msra.mxu0 0.0
        %718 = vmatprep.subr.mxu0 0.0
        %719 = vmatpush1.xpose.msra.mxu0 0.0
        %720 = vmatprep.subr.mxu0 0.0
        %721 = vmatpush1.xpose.msra.mxu0 0.0
        %722 = vmatprep.subr.mxu0 0.0
        %723 = vmatpush1.xpose.msra.mxu0 0.0
        %724 = vmatprep.subr.mxu0 0.0
        %725 = vmatpush1.xpose.msra.mxu0 0.0
        %726 = vmatprep.subr.mxu0 0.0
        %727 = vmatpush1.xpose.msra.mxu0 0.0
        %728 = vmatprep.subr.mxu0 0.0
        %729 = vmatpush1.xpose.msra.mxu0 0.0
        %730 = vmatprep.subr.mxu0 0.0
        %731 = vmatpush1.xpose.msra.mxu0 %v700
        %732 = vmatprep.subr.mxu0 0.0
        %733 = vmatpush1.xpose.msra.mxu0 %v698
        %734 = vmatprep.subr.mxu0 0.0
        %735 = vmatpush2.xpose.msra.mxu0 0.0
        %736 = vmatprep.subr.mxu0 0.0
        %737 = vmatpush2.xpose.msra.mxu0 0.0
        %738 = vmatprep.subr.mxu0 0.0
        %739 = vmatpush2.xpose.msra.mxu0 0.0
        %740 = vmatprep.subr.mxu0 0.0
        %741 = vmatpush2.xpose.msra.mxu0 0.0
        %742 = vmatprep.subr.mxu0 0.0
        %743 = vmatpush2.xpose.msra.mxu0 0.0
        %744 = vmatprep.subr.mxu0 0.0
        %745 = vmatpush2.xpose.msra.mxu0 0.0
        %746 = vmatprep.subr.mxu0 0.0
        %747 = vmatpush2.xpose.msra.mxu0 0.0
        %748 = vmatprep.subr.mxu0 0.0
        %749 = vmatpush2.xpose.msra.mxu0 0.0
        %750 = vmatprep.subr.mxu0 0.0
        %751 = vmatpush2.xpose.msra.mxu0 0.0
        %752 = vmatprep.subr.mxu0 0.0
        %753 = vmatpush2.xpose.msra.mxu0 0.0
        %754 = vmatprep.subr.mxu0 0.0
        %755 = vmatpush2.xpose.msra.mxu0 0.0
        %756 = vmatprep.subr.mxu0 0.0
        %757 = vmatpush2.xpose.msra.mxu0 0.0
        %758 = vmatprep.subr.mxu0 0.0
        %759 = vmatpush2.xpose.msra.mxu0 0.0
        %760 = vmatprep.subr.mxu0 0.0
        %761 = vmatpush2.xpose.msra.mxu0 0.0
        %762 = vmatprep.subr.mxu0 0.0
        %763 = vmatpush2.xpose.msra.mxu0 0.0
        %764 = vmatprep.subr.mxu0 0.0
        %765 = vmatpush2.xpose.msra.mxu0 0.0
        %766 = vmatprep.mubr.f32.mxu0 0.0
        %767 = vmatmul.mubr.f32.gmra.mxu0 %v696
        %v768 = vpop.f32.mrf.mxu0
        %v769 = vadd.f32 0.0, %v768
        %v770 = vpop.f32.mrf.mxu0
        %771 = vdwg.mxu0
        %v772 = vmul.f32 %v769, 0.17677669
        %v773 = vsel %vm435, -1e+09, %v772
        %v774 = vsel %vm527, %v773, -inf
        %775 = vmax.xlane.f32.xlu0 %v774
        %v776 = vpop.xlane.xlu0 %775
        %v777 = vsub.f32 %v773, %v776
        %v778 = vmul.f32 %v777, 1.442695
        %v779 = vpow.pop %v778
        %v780 = vsel %vm527, %v779, 0.0
        %781 = vadd.xlane.f32.xlu0 %v780
        %v782 = vpop.xlane.xlu0 %781
        %785 = vrot.lane.b32.xlu0 %v432, 96
        %v786 = vpop.permute.xlu0 %785
        %787 = vrot.lane.b32.xlu0 %v433, 96
        %v788 = vpop.permute.xlu0 %787
        %v792 = vsel %vm527, %v779, 0
        %794 = vmatprep.subr.mxu0 0.0
        %795 = vmatpush1.msra.mxu0 0.0
        %796 = vmatprep.subr.mxu0 0.0
        %797 = vmatpush1.msra.mxu0 0.0
        %798 = vmatprep.subr.mxu0 0.0
        %799 = vmatpush1.msra.mxu0 0.0
        %800 = vmatprep.subr.mxu0 0.0
        %801 = vmatpush1.msra.mxu0 0.0
        %802 = vmatprep.subr.mxu0 0.0
        %803 = vmatpush1.msra.mxu0 0.0
        %804 = vmatprep.subr.mxu0 0.0
        %805 = vmatpush1.msra.mxu0 0.0
        %806 = vmatprep.subr.mxu0 0.0
        %807 = vmatpush1.msra.mxu0 0.0
        %808 = vmatprep.subr.mxu0 0.0
        %809 = vmatpush1.msra.mxu0 0.0
        %810 = vmatprep.subr.mxu0 0.0
        %811 = vmatpush1.msra.mxu0 0.0
        %812 = vmatprep.subr.mxu0 0.0
        %813 = vmatpush1.msra.mxu0 0.0
        %814 = vmatprep.subr.mxu0 0.0
        %815 = vmatpush1.msra.mxu0 0.0
        %816 = vmatprep.subr.mxu0 0.0
        %817 = vmatpush1.msra.mxu0 0.0
        %818 = vmatprep.subr.mxu0 0.0
        %819 = vmatpush1.msra.mxu0 0.0
        %820 = vmatprep.subr.mxu0 0.0
        %821 = vmatpush1.msra.mxu0 0.0
        %822 = vmatprep.subr.mxu0 0.0
        %823 = vmatpush1.msra.mxu0 %v788
        %824 = vmatprep.subr.mxu0 0.0
        %825 = vmatpush1.msra.mxu0 %v786
        %826 = vmatprep.subr.mxu0 0.0
        %827 = vmatpush2.msra.mxu0 0.0
        %828 = vmatprep.subr.mxu0 0.0
        %829 = vmatpush2.msra.mxu0 0.0
        %830 = vmatprep.subr.mxu0 0.0
        %831 = vmatpush2.msra.mxu0 0.0
        %832 = vmatprep.subr.mxu0 0.0
        %833 = vmatpush2.msra.mxu0 0.0
        %834 = vmatprep.subr.mxu0 0.0
        %835 = vmatpush2.msra.mxu0 0.0
        %836 = vmatprep.subr.mxu0 0.0
        %837 = vmatpush2.msra.mxu0 0.0
        %838 = vmatprep.subr.mxu0 0.0
        %839 = vmatpush2.msra.mxu0 0.0
        %840 = vmatprep.subr.mxu0 0.0
        %841 = vmatpush2.msra.mxu0 0.0
        %842 = vmatprep.subr.mxu0 0.0
        %843 = vmatpush2.msra.mxu0 0.0
        %844 = vmatprep.subr.mxu0 0.0
        %845 = vmatpush2.msra.mxu0 0.0
        %846 = vmatprep.subr.mxu0 0.0
        %847 = vmatpush2.msra.mxu0 0.0
        %848 = vmatprep.subr.mxu0 0.0
        %849 = vmatpush2.msra.mxu0 0.0
        %850 = vmatprep.subr.mxu0 0.0
        %851 = vmatpush2.msra.mxu0 0.0
        %852 = vmatprep.subr.mxu0 0.0
        %853 = vmatpush2.msra.mxu0 0.0
        %854 = vmatprep.subr.mxu0 0.0
        %855 = vmatpush2.msra.mxu0 0.0
        %856 = vmatprep.subr.mxu0 0.0
        %857 = vmatpush2.msra.mxu0 0.0
        %858 = vmatprep.mubr.f32.mxu0 0.0
        %859 = vmatmul.mubr.f32.gmra.mxu0 %v792
        %v860 = vpop.f32.mrf.mxu0
        %v861 = vadd.f32 0.0, %v860
        %v862 = vpop.f32.mrf.mxu0
        %863 = vdwg.mxu0
        %v864 = vrcp.pop %v782
        %v865 = vmul.f32 %v861, %v864
        %v866 = vld [vmem:[%s5 + $0x20] sm:$0xff]
        %v867 = vld [vmem:[%s5 + $0x28] sm:$0xff]
        %v868 = vld [vmem:[%s5 + $0x30] sm:$0xff]
        %v869 = vld [vmem:[%s5 + $0x38] sm:$0xff]
        %v871 = vsel %vm445, %v865, 0
        %873 = vmatprep.subr.mxu0 0.0
        %874 = vmatpush1.msra.mxu0 0.0
        %875 = vmatprep.subr.mxu0 0.0
        %876 = vmatpush1.msra.mxu0 0.0
        %877 = vmatprep.subr.mxu0 0.0
        %878 = vmatpush1.msra.mxu0 0.0
        %879 = vmatprep.subr.mxu0 0.0
        %880 = vmatpush1.msra.mxu0 0.0
        %881 = vmatprep.subr.mxu0 0.0
        %882 = vmatpush1.msra.mxu0 0.0
        %883 = vmatprep.subr.mxu0 0.0
        %884 = vmatpush1.msra.mxu0 0.0
        %885 = vmatprep.subr.mxu0 0.0
        %886 = vmatpush1.msra.mxu0 0.0
        %887 = vmatprep.subr.mxu0 0.0
        %888 = vmatpush1.msra.mxu0 0.0
        %889 = vmatprep.subr.mxu0 0.0
        %890 = vmatpush1.msra.mxu0 0.0
        %891 = vmatprep.subr.mxu0 0.0
        %892 = vmatpush1.msra.mxu0 0.0
        %893 = vmatprep.subr.mxu0 0.0
        %894 = vmatpush1.msra.mxu0 0.0
        %895 = vmatprep.subr.mxu0 0.0
        %896 = vmatpush1.msra.mxu0 0.0
        %897 = vmatprep.subr.mxu0 0.0
        %898 = vmatpush1.msra.mxu0 %v869
        %899 = vmatprep.subr.mxu0 0.0
        %900 = vmatpush1.msra.mxu0 %v868
        %901 = vmatprep.subr.mxu0 0.0
        %902 = vmatpush1.msra.mxu0 %v867
        %903 = vmatprep.subr.mxu0 0.0
        %904 = vmatpush1.msra.mxu0 %v866
        %905 = vmatprep.subr.mxu0 0.0
        %906 = vmatpush2.msra.mxu0 0.0
        %907 = vmatprep.subr.mxu0 0.0
        %908 = vmatpush2.msra.mxu0 0.0
        %909 = vmatprep.subr.mxu0 0.0
        %910 = vmatpush2.msra.mxu0 0.0
        %911 = vmatprep.subr.mxu0 0.0
        %912 = vmatpush2.msra.mxu0 0.0
        %913 = vmatprep.subr.mxu0 0.0
        %914 = vmatpush2.msra.mxu0 0.0
        %915 = vmatprep.subr.mxu0 0.0
        %916 = vmatpush2.msra.mxu0 0.0
        %917 = vmatprep.subr.mxu0 0.0
        %918 = vmatpush2.msra.mxu0 0.0
        %919 = vmatprep.subr.mxu0 0.0
        %920 = vmatpush2.msra.mxu0 0.0
        %921 = vmatprep.subr.mxu0 0.0
        %922 = vmatpush2.msra.mxu0 0.0
        %923 = vmatprep.subr.mxu0 0.0
        %924 = vmatpush2.msra.mxu0 0.0
        %925 = vmatprep.subr.mxu0 0.0
        %926 = vmatpush2.msra.mxu0 0.0
        %927 = vmatprep.subr.mxu0 0.0
        %928 = vmatpush2.msra.mxu0 0.0
        %929 = vmatprep.subr.mxu0 0.0
        %930 = vmatpush2.msra.mxu0 0.0
        %931 = vmatprep.subr.mxu0 0.0
        %932 = vmatpush2.msra.mxu0 0.0
        %933 = vmatprep.subr.mxu0 0.0
        %934 = vmatpush2.msra.mxu0 0.0
        %935 = vmatprep.subr.mxu0 0.0
        %936 = vmatpush2.msra.mxu0 0.0
        %937 = vmatprep.mubr.f32.mxu0 0.0
        %938 = vmatmul.mubr.f32.gmra.mxu0 %v871
        %v939 = vpop.f32.mrf.mxu0
        %v940 = vadd.f32 0.0, %v939
        %v941 = vpop.f32.mrf.mxu0
        %942 = vdwg.mxu0
        %v943 = vadd.f32 %v689, %v940
        %944 = vrot.lane.b32.xlu0 %v429, 64
        %v945 = vpop.permute.xlu0 %944
        %946 = vrot.lane.b32.xlu0 %v430, 64
        %v947 = vpop.permute.xlu0 %946
        %948 = vrot.lane.b32.xlu0 %v431, 64
        %v949 = vpop.permute.xlu0 %948
        %v950 = vsel %vm445, %v945, 0
        %v952 = vsel %vm445, %v947, 0
        %v954 = vsel %vm445, %v949, 0
        %956 = vmatprep.subr.mxu0 0.0
        %957 = vmatpush1.xpose.msra.mxu0 0.0
        %958 = vmatprep.subr.mxu0 0.0
        %959 = vmatpush1.xpose.msra.mxu0 0.0
        %960 = vmatprep.subr.mxu0 0.0
        %961 = vmatpush1.xpose.msra.mxu0 0.0
        %962 = vmatprep.subr.mxu0 0.0
        %963 = vmatpush1.xpose.msra.mxu0 0.0
        %964 = vmatprep.subr.mxu0 0.0
        %965 = vmatpush1.xpose.msra.mxu0 0.0
        %966 = vmatprep.subr.mxu0 0.0
        %967 = vmatpush1.xpose.msra.mxu0 0.0
        %968 = vmatprep.subr.mxu0 0.0
        %969 = vmatpush1.xpose.msra.mxu0 0.0
        %970 = vmatprep.subr.mxu0 0.0
        %971 = vmatpush1.xpose.msra.mxu0 0.0
        %972 = vmatprep.subr.mxu0 0.0
        %973 = vmatpush1.xpose.msra.mxu0 0.0
        %974 = vmatprep.subr.mxu0 0.0
        %975 = vmatpush1.xpose.msra.mxu0 0.0
        %976 = vmatprep.subr.mxu0 0.0
        %977 = vmatpush1.xpose.msra.mxu0 0.0
        %978 = vmatprep.subr.mxu0 0.0
        %979 = vmatpush1.xpose.msra.mxu0 0.0
        %980 = vmatprep.subr.mxu0 0.0
        %981 = vmatpush1.xpose.msra.mxu0 0.0
        %982 = vmatprep.subr.mxu0 0.0
        %983 = vmatpush1.xpose.msra.mxu0 0.0
        %984 = vmatprep.subr.mxu0 0.0
        %985 = vmatpush1.xpose.msra.mxu0 %v954
        %986 = vmatprep.subr.mxu0 0.0
        %987 = vmatpush1.xpose.msra.mxu0 %v952
        %988 = vmatprep.subr.mxu0 0.0
        %989 = vmatpush2.xpose.msra.mxu0 0.0
        %990 = vmatprep.subr.mxu0 0.0
        %991 = vmatpush2.xpose.msra.mxu0 0.0
        %992 = vmatprep.subr.mxu0 0.0
        %993 = vmatpush2.xpose.msra.mxu0 0.0
        %994 = vmatprep.subr.mxu0 0.0
        %995 = vmatpush2.xpose.msra.mxu0 0.0
        %996 = vmatprep.subr.mxu0 0.0
        %997 = vmatpush2.xpose.msra.mxu0 0.0
        %998 = vmatprep.subr.mxu0 0.0
        %999 = vmatpush2.xpose.msra.mxu0 0.0
        %1000 = vmatprep.subr.mxu0 0.0
        %1001 = vmatpush2.xpose.msra.mxu0 0.0
        %1002 = vmatprep.subr.mxu0 0.0
        %1003 = vmatpush2.xpose.msra.mxu0 0.0
        %1004 = vmatprep.subr.mxu0 0.0
        %1005 = vmatpush2.xpose.msra.mxu0 0.0
        %1006 = vmatprep.subr.mxu0 0.0
        %1007 = vmatpush2.xpose.msra.mxu0 0.0
        %1008 = vmatprep.subr.mxu0 0.0
        %1009 = vmatpush2.xpose.msra.mxu0 0.0
        %1010 = vmatprep.subr.mxu0 0.0
        %1011 = vmatpush2.xpose.msra.mxu0 0.0
        %1012 = vmatprep.subr.mxu0 0.0
        %1013 = vmatpush2.xpose.msra.mxu0 0.0
        %1014 = vmatprep.subr.mxu0 0.0
        %1015 = vmatpush2.xpose.msra.mxu0 0.0
        %1016 = vmatprep.subr.mxu0 0.0
        %1017 = vmatpush2.xpose.msra.mxu0 0.0
        %1018 = vmatprep.subr.mxu0 0.0
        %1019 = vmatpush2.xpose.msra.mxu0 0.0
        %1020 = vmatprep.mubr.f32.mxu0 0.0
        %1021 = vmatmul.mubr.f32.gmra.mxu0 %v950
        %v1022 = vpop.f32.mrf.mxu0
        %v1023 = vadd.f32 0.0, %v1022
        %v1024 = vpop.f32.mrf.mxu0
        %1025 = vdwg.mxu0
        %v1026 = vmul.f32 %v1023, 0.17677669
        %v1027 = vsel %vm435, -1e+09, %v1026
        %v1028 = vsel %vm527, %v1027, -inf
        %1029 = vmax.xlane.f32.xlu0 %v1028
        %v1030 = vpop.xlane.xlu0 %1029
        %v1031 = vsub.f32 %v1027, %v1030
        %v1032 = vmul.f32 %v1031, 1.442695
        %v1033 = vpow.pop %v1032
        %v1034 = vsel %vm527, %v1033, 0.0
        %1035 = vadd.xlane.f32.xlu0 %v1034
        %v1036 = vpop.xlane.xlu0 %1035
        %1037 = vrot.lane.b32.xlu0 %v432, 64
        %v1038 = vpop.permute.xlu0 %1037
        %1039 = vrot.lane.b32.xlu0 %v433, 64
        %v1040 = vpop.permute.xlu0 %1039
        %v1044 = vsel %vm527, %v1033, 0
        %1046 = vmatprep.subr.mxu0 0.0
        %1047 = vmatpush1.msra.mxu0 0.0
        %1048 = vmatprep.subr.mxu0 0.0
        %1049 = vmatpush1.msra.mxu0 0.0
        %1050 = vmatprep.subr.mxu0 0.0
        %1051 = vmatpush1.msra.mxu0 0.0
        %1052 = vmatprep.subr.mxu0 0.0
        %1053 = vmatpush1.msra.mxu0 0.0
        %1054 = vmatprep.subr.mxu0 0.0
        %1055 = vmatpush1.msra.mxu0 0.0
        %1056 = vmatprep.subr.mxu0 0.0
        %1057 = vmatpush1.msra.mxu0 0.0
        %1058 = vmatprep.subr.mxu0 0.0
        %1059 = vmatpush1.msra.mxu0 0.0
        %1060 = vmatprep.subr.mxu0 0.0
        %1061 = vmatpush1.msra.mxu0 0.0
        %1062 = vmatprep.subr.mxu0 0.0
        %1063 = vmatpush1.msra.mxu0 0.0
        %1064 = vmatprep.subr.mxu0 0.0
        %1065 = vmatpush1.msra.mxu0 0.0
        %1066 = vmatprep.subr.mxu0 0.0
        %1067 = vmatpush1.msra.mxu0 0.0
        %1068 = vmatprep.subr.mxu0 0.0
        %1069 = vmatpush1.msra.mxu0 0.0
        %1070 = vmatprep.subr.mxu0 0.0
        %1071 = vmatpush1.msra.mxu0 0.0
        %1072 = vmatprep.subr.mxu0 0.0
        %1073 = vmatpush1.msra.mxu0 0.0
        %1074 = vmatprep.subr.mxu0 0.0
        %1075 = vmatpush1.msra.mxu0 %v1040
        %1076 = vmatprep.subr.mxu0 0.0
        %1077 = vmatpush1.msra.mxu0 %v1038
        %1078 = vmatprep.subr.mxu0 0.0
        %1079 = vmatpush2.msra.mxu0 0.0
        %1080 = vmatprep.subr.mxu0 0.0
        %1081 = vmatpush2.msra.mxu0 0.0
        %1082 = vmatprep.subr.mxu0 0.0
        %1083 = vmatpush2.msra.mxu0 0.0
        %1084 = vmatprep.subr.mxu0 0.0
        %1085 = vmatpush2.msra.mxu0 0.0
        %1086 = vmatprep.subr.mxu0 0.0
        %1087 = vmatpush2.msra.mxu0 0.0
        %1088 = vmatprep.subr.mxu0 0.0
        %1089 = vmatpush2.msra.mxu0 0.0
        %1090 = vmatprep.subr.mxu0 0.0
        %1091 = vmatpush2.msra.mxu0 0.0
        %1092 = vmatprep.subr.mxu0 0.0
        %1093 = vmatpush2.msra.mxu0 0.0
        %1094 = vmatprep.subr.mxu0 0.0
        %1095 = vmatpush2.msra.mxu0 0.0
        %1096 = vmatprep.subr.mxu0 0.0
        %1097 = vmatpush2.msra.mxu0 0.0
        %1098 = vmatprep.subr.mxu0 0.0
        %1099 = vmatpush2.msra.mxu0 0.0
        %1100 = vmatprep.subr.mxu0 0.0
        %1101 = vmatpush2.msra.mxu0 0.0
        %1102 = vmatprep.subr.mxu0 0.0
        %1103 = vmatpush2.msra.mxu0 0.0
        %1104 = vmatprep.subr.mxu0 0.0
        %1105 = vmatpush2.msra.mxu0 0.0
        %1106 = vmatprep.subr.mxu0 0.0
        %1107 = vmatpush2.msra.mxu0 0.0
        %1108 = vmatprep.subr.mxu0 0.0
        %1109 = vmatpush2.msra.mxu0 0.0
        %1110 = vmatprep.mubr.f32.mxu0 0.0
        %1111 = vmatmul.mubr.f32.gmra.mxu0 %v1044
        %v1112 = vpop.f32.mrf.mxu0
        %v1113 = vadd.f32 0.0, %v1112
        %v1114 = vpop.f32.mrf.mxu0
        %1115 = vdwg.mxu0
        %v1116 = vrcp.pop %v1036
        %v1117 = vmul.f32 %v1113, %v1116
        %v1118 = vld [vmem:[%s5 + $0x40] sm:$0xff]
        %v1119 = vld [vmem:[%s5 + $0x48] sm:$0xff]
        %v1120 = vld [vmem:[%s5 + $0x50] sm:$0xff]
        %v1121 = vld [vmem:[%s5 + $0x58] sm:$0xff]
        %v1123 = vsel %vm445, %v1117, 0
        %1125 = vmatprep.subr.mxu0 0.0
        %1126 = vmatpush1.msra.mxu0 0.0
        %1127 = vmatprep.subr.mxu0 0.0
        %1128 = vmatpush1.msra.mxu0 0.0
        %1129 = vmatprep.subr.mxu0 0.0
        %1130 = vmatpush1.msra.mxu0 0.0
        %1131 = vmatprep.subr.mxu0 0.0
        %1132 = vmatpush1.msra.mxu0 0.0
        %1133 = vmatprep.subr.mxu0 0.0
        %1134 = vmatpush1.msra.mxu0 0.0
        %1135 = vmatprep.subr.mxu0 0.0
        %1136 = vmatpush1.msra.mxu0 0.0
        %1137 = vmatprep.subr.mxu0 0.0
        %1138 = vmatpush1.msra.mxu0 0.0
        %1139 = vmatprep.subr.mxu0 0.0
        %1140 = vmatpush1.msra.mxu0 0.0
        %1141 = vmatprep.subr.mxu0 0.0
        %1142 = vmatpush1.msra.mxu0 0.0
        %1143 = vmatprep.subr.mxu0 0.0
        %1144 = vmatpush1.msra.mxu0 0.0
        %1145 = vmatprep.subr.mxu0 0.0
        %1146 = vmatpush1.msra.mxu0 0.0
        %1147 = vmatprep.subr.mxu0 0.0
        %1148 = vmatpush1.msra.mxu0 0.0
        %1149 = vmatprep.subr.mxu0 0.0
        %1150 = vmatpush1.msra.mxu0 %v1121
        %1151 = vmatprep.subr.mxu0 0.0
        %1152 = vmatpush1.msra.mxu0 %v1120
        %1153 = vmatprep.subr.mxu0 0.0
        %1154 = vmatpush1.msra.mxu0 %v1119
        %1155 = vmatprep.subr.mxu0 0.0
        %1156 = vmatpush1.msra.mxu0 %v1118
        %1157 = vmatprep.subr.mxu0 0.0
        %1158 = vmatpush2.msra.mxu0 0.0
        %1159 = vmatprep.subr.mxu0 0.0
        %1160 = vmatpush2.msra.mxu0 0.0
        %1161 = vmatprep.subr.mxu0 0.0
        %1162 = vmatpush2.msra.mxu0 0.0
        %1163 = vmatprep.subr.mxu0 0.0
        %1164 = vmatpush2.msra.mxu0 0.0
        %1165 = vmatprep.subr.mxu0 0.0
        %1166 = vmatpush2.msra.mxu0 0.0
        %1167 = vmatprep.subr.mxu0 0.0
        %1168 = vmatpush2.msra.mxu0 0.0
        %1169 = vmatprep.subr.mxu0 0.0
        %1170 = vmatpush2.msra.mxu0 0.0
        %1171 = vmatprep.subr.mxu0 0.0
        %1172 = vmatpush2.msra.mxu0 0.0
        %1173 = vmatprep.subr.mxu0 0.0
        %1174 = vmatpush2.msra.mxu0 0.0
        %1175 = vmatprep.subr.mxu0 0.0
        %1176 = vmatpush2.msra.mxu0 0.0
        %1177 = vmatprep.subr.mxu0 0.0
        %1178 = vmatpush2.msra.mxu0 0.0
        %1179 = vmatprep.subr.mxu0 0.0
        %1180 = vmatpush2.msra.mxu0 0.0
        %1181 = vmatprep.subr.mxu0 0.0
        %1182 = vmatpush2.msra.mxu0 0.0
        %1183 = vmatprep.subr.mxu0 0.0
        %1184 = vmatpush2.msra.mxu0 0.0
        %1185 = vmatprep.subr.mxu0 0.0
        %1186 = vmatpush2.msra.mxu0 0.0
        %1187 = vmatprep.subr.mxu0 0.0
        %1188 = vmatpush2.msra.mxu0 0.0
        %1189 = vmatprep.mubr.f32.mxu0 0.0
        %1190 = vmatmul.mubr.f32.gmra.mxu0 %v1123
        %v1191 = vpop.f32.mrf.mxu0
        %v1192 = vadd.f32 0.0, %v1191
        %v1193 = vpop.f32.mrf.mxu0
        %1194 = vdwg.mxu0
        %v1195 = vadd.f32 %v943, %v1192
        %1196 = vrot.lane.b32.xlu0 %v429, 32
        %v1197 = vpop.permute.xlu0 %1196
        %1198 = vrot.lane.b32.xlu0 %v430, 32
        %v1199 = vpop.permute.xlu0 %1198
        %1200 = vrot.lane.b32.xlu0 %v431, 32
        %v1201 = vpop.permute.xlu0 %1200
        %v1202 = vsel %vm445, %v1197, 0
        %v1204 = vsel %vm445, %v1199, 0
        %v1206 = vsel %vm445, %v1201, 0
        %1208 = vmatprep.subr.mxu0 0.0
        %1209 = vmatpush1.xpose.msra.mxu0 0.0
        %1210 = vmatprep.subr.mxu0 0.0
        %1211 = vmatpush1.xpose.msra.mxu0 0.0
        %1212 = vmatprep.subr.mxu0 0.0
        %1213 = vmatpush1.xpose.msra.mxu0 0.0
        %1214 = vmatprep.subr.mxu0 0.0
        %1215 = vmatpush1.xpose.msra.mxu0 0.0
        %1216 = vmatprep.subr.mxu0 0.0
        %1217 = vmatpush1.xpose.msra.mxu0 0.0
        %1218 = vmatprep.subr.mxu0 0.0
        %1219 = vmatpush1.xpose.msra.mxu0 0.0
        %1220 = vmatprep.subr.mxu0 0.0
        %1221 = vmatpush1.xpose.msra.mxu0 0.0
        %1222 = vmatprep.subr.mxu0 0.0
        %1223 = vmatpush1.xpose.msra.mxu0 0.0
        %1224 = vmatprep.subr.mxu0 0.0
        %1225 = vmatpush1.xpose.msra.mxu0 0.0
        %1226 = vmatprep.subr.mxu0 0.0
        %1227 = vmatpush1.xpose.msra.mxu0 0.0
        %1228 = vmatprep.subr.mxu0 0.0
        %1229 = vmatpush1.xpose.msra.mxu0 0.0
        %1230 = vmatprep.subr.mxu0 0.0
        %1231 = vmatpush1.xpose.msra.mxu0 0.0
        %1232 = vmatprep.subr.mxu0 0.0
        %1233 = vmatpush1.xpose.msra.mxu0 0.0
        %1234 = vmatprep.subr.mxu0 0.0
        %1235 = vmatpush1.xpose.msra.mxu0 0.0
        %1236 = vmatprep.subr.mxu0 0.0
        %1237 = vmatpush1.xpose.msra.mxu0 %v1206
        %1238 = vmatprep.subr.mxu0 0.0
        %1239 = vmatpush1.xpose.msra.mxu0 %v1204
        %1240 = vmatprep.subr.mxu0 0.0
        %1241 = vmatpush2.xpose.msra.mxu0 0.0
        %1242 = vmatprep.subr.mxu0 0.0
        %1243 = vmatpush2.xpose.msra.mxu0 0.0
        %1244 = vmatprep.subr.mxu0 0.0
        %1245 = vmatpush2.xpose.msra.mxu0 0.0
        %1246 = vmatprep.subr.mxu0 0.0
        %1247 = vmatpush2.xpose.msra.mxu0 0.0
        %1248 = vmatprep.subr.mxu0 0.0
        %1249 = vmatpush2.xpose.msra.mxu0 0.0
        %1250 = vmatprep.subr.mxu0 0.0
        %1251 = vmatpush2.xpose.msra.mxu0 0.0
        %1252 = vmatprep.subr.mxu0 0.0
        %1253 = vmatpush2.xpose.msra.mxu0 0.0
        %1254 = vmatprep.subr.mxu0 0.0
        %1255 = vmatpush2.xpose.msra.mxu0 0.0
        %1256 = vmatprep.subr.mxu0 0.0
        %1257 = vmatpush2.xpose.msra.mxu0 0.0
        %1258 = vmatprep.subr.mxu0 0.0
        %1259 = vmatpush2.xpose.msra.mxu0 0.0
        %1260 = vmatprep.subr.mxu0 0.0
        %1261 = vmatpush2.xpose.msra.mxu0 0.0
        %1262 = vmatprep.subr.mxu0 0.0
        %1263 = vmatpush2.xpose.msra.mxu0 0.0
        %1264 = vmatprep.subr.mxu0 0.0
        %1265 = vmatpush2.xpose.msra.mxu0 0.0
        %1266 = vmatprep.subr.mxu0 0.0
        %1267 = vmatpush2.xpose.msra.mxu0 0.0
        %1268 = vmatprep.subr.mxu0 0.0
        %1269 = vmatpush2.xpose.msra.mxu0 0.0
        %1270 = vmatprep.subr.mxu0 0.0
        %1271 = vmatpush2.xpose.msra.mxu0 0.0
        %1272 = vmatprep.mubr.f32.mxu0 0.0
        %1273 = vmatmul.mubr.f32.gmra.mxu0 %v1202
        %v1274 = vpop.f32.mrf.mxu0
        %v1275 = vadd.f32 0.0, %v1274
        %v1276 = vpop.f32.mrf.mxu0
        %1277 = vdwg.mxu0
        %v1278 = vmul.f32 %v1275, 0.17677669
        %v1279 = vsel %vm435, -1e+09, %v1278
        %v1280 = vsel %vm527, %v1279, -inf
        %1281 = vmax.xlane.f32.xlu0 %v1280
        %v1282 = vpop.xlane.xlu0 %1281
        %v1283 = vsub.f32 %v1279, %v1282
        %v1284 = vmul.f32 %v1283, 1.442695
        %v1285 = vpow.pop %v1284
        %v1286 = vsel %vm527, %v1285, 0.0
        %1287 = vadd.xlane.f32.xlu0 %v1286
        %v1288 = vpop.xlane.xlu0 %1287
        %1289 = vrot.lane.b32.xlu0 %v432, 32
        %v1290 = vpop.permute.xlu0 %1289
        %1291 = vrot.lane.b32.xlu0 %v433, 32
        %v1292 = vpop.permute.xlu0 %1291
        %v1296 = vsel %vm527, %v1285, 0
        %1298 = vmatprep.subr.mxu0 0.0
        %1299 = vmatpush1.msra.mxu0 0.0
        %1300 = vmatprep.subr.mxu0 0.0
        %1301 = vmatpush1.msra.mxu0 0.0
        %1302 = vmatprep.subr.mxu0 0.0
        %1303 = vmatpush1.msra.mxu0 0.0
        %1304 = vmatprep.subr.mxu0 0.0
        %1305 = vmatpush1.msra.mxu0 0.0
        %1306 = vmatprep.subr.mxu0 0.0
        %1307 = vmatpush1.msra.mxu0 0.0
        %1308 = vmatprep.subr.mxu0 0.0
        %1309 = vmatpush1.msra.mxu0 0.0
        %1310 = vmatprep.subr.mxu0 0.0
        %1311 = vmatpush1.msra.mxu0 0.0
        %1312 = vmatprep.subr.mxu0 0.0
        %1313 = vmatpush1.msra.mxu0 0.0
        %1314 = vmatprep.subr.mxu0 0.0
        %1315 = vmatpush1.msra.mxu0 0.0
        %1316 = vmatprep.subr.mxu0 0.0
        %1317 = vmatpush1.msra.mxu0 0.0
        %1318 = vmatprep.subr.mxu0 0.0
        %1319 = vmatpush1.msra.mxu0 0.0
        %1320 = vmatprep.subr.mxu0 0.0
        %1321 = vmatpush1.msra.mxu0 0.0
        %1322 = vmatprep.subr.mxu0 0.0
        %1323 = vmatpush1.msra.mxu0 0.0
        %1324 = vmatprep.subr.mxu0 0.0
        %1325 = vmatpush1.msra.mxu0 0.0
        %1326 = vmatprep.subr.mxu0 0.0
        %1327 = vmatpush1.msra.mxu0 %v1292
        %1328 = vmatprep.subr.mxu0 0.0
        %1329 = vmatpush1.msra.mxu0 %v1290
        %1330 = vmatprep.subr.mxu0 0.0
        %1331 = vmatpush2.msra.mxu0 0.0
        %1332 = vmatprep.subr.mxu0 0.0
        %1333 = vmatpush2.msra.mxu0 0.0
        %1334 = vmatprep.subr.mxu0 0.0
        %1335 = vmatpush2.msra.mxu0 0.0
        %1336 = vmatprep.subr.mxu0 0.0
        %1337 = vmatpush2.msra.mxu0 0.0
        %1338 = vmatprep.subr.mxu0 0.0
        %1339 = vmatpush2.msra.mxu0 0.0
        %1340 = vmatprep.subr.mxu0 0.0
        %1341 = vmatpush2.msra.mxu0 0.0
        %1342 = vmatprep.subr.mxu0 0.0
        %1343 = vmatpush2.msra.mxu0 0.0
        %1344 = vmatprep.subr.mxu0 0.0
        %1345 = vmatpush2.msra.mxu0 0.0
        %1346 = vmatprep.subr.mxu0 0.0
        %1347 = vmatpush2.msra.mxu0 0.0
        %1348 = vmatprep.subr.mxu0 0.0
        %1349 = vmatpush2.msra.mxu0 0.0
        %1350 = vmatprep.subr.mxu0 0.0
        %1351 = vmatpush2.msra.mxu0 0.0
        %1352 = vmatprep.subr.mxu0 0.0
        %1353 = vmatpush2.msra.mxu0 0.0
        %1354 = vmatprep.subr.mxu0 0.0
        %1355 = vmatpush2.msra.mxu0 0.0
        %1356 = vmatprep.subr.mxu0 0.0
        %1357 = vmatpush2.msra.mxu0 0.0
        %1358 = vmatprep.subr.mxu0 0.0
        %1359 = vmatpush2.msra.mxu0 0.0
        %1360 = vmatprep.subr.mxu0 0.0
        %1361 = vmatpush2.msra.mxu0 0.0
        %1362 = vmatprep.mubr.f32.mxu0 0.0
        %1363 = vmatmul.mubr.f32.gmra.mxu0 %v1296
        %v1364 = vpop.f32.mrf.mxu0
        %v1365 = vadd.f32 0.0, %v1364
        %v1366 = vpop.f32.mrf.mxu0
        %1367 = vdwg.mxu0
        %v1368 = vrcp.pop %v1288
        %v1369 = vmul.f32 %v1365, %v1368
        %v1370 = vld [vmem:[%s5 + $0x60] sm:$0xff]
        %v1371 = vld [vmem:[%s5 + $0x68] sm:$0xff]
        %v1372 = vld [vmem:[%s5 + $0x70] sm:$0xff]
        %v1373 = vld [vmem:[%s5 + $0x78] sm:$0xff]
        %v1375 = vsel %vm445, %v1369, 0
        %1377 = vmatprep.subr.mxu0 0.0
        %1378 = vmatpush1.msra.mxu0 0.0
        %1379 = vmatprep.subr.mxu0 0.0
        %1380 = vmatpush1.msra.mxu0 0.0
        %1381 = vmatprep.subr.mxu0 0.0
        %1382 = vmatpush1.msra.mxu0 0.0
        %1383 = vmatprep.subr.mxu0 0.0
        %1384 = vmatpush1.msra.mxu0 0.0
        %1385 = vmatprep.subr.mxu0 0.0
        %1386 = vmatpush1.msra.mxu0 0.0
        %1387 = vmatprep.subr.mxu0 0.0
        %1388 = vmatpush1.msra.mxu0 0.0
        %1389 = vmatprep.subr.mxu0 0.0
        %1390 = vmatpush1.msra.mxu0 0.0
        %1391 = vmatprep.subr.mxu0 0.0
        %1392 = vmatpush1.msra.mxu0 0.0
        %1393 = vmatprep.subr.mxu0 0.0
        %1394 = vmatpush1.msra.mxu0 0.0
        %1395 = vmatprep.subr.mxu0 0.0
        %1396 = vmatpush1.msra.mxu0 0.0
        %1397 = vmatprep.subr.mxu0 0.0
        %1398 = vmatpush1.msra.mxu0 0.0
        %1399 = vmatprep.subr.mxu0 0.0
        %1400 = vmatpush1.msra.mxu0 0.0
        %1401 = vmatprep.subr.mxu0 0.0
        %1402 = vmatpush1.msra.mxu0 %v1373
        %1403 = vmatprep.subr.mxu0 0.0
        %1404 = vmatpush1.msra.mxu0 %v1372
        %1405 = vmatprep.subr.mxu0 0.0
        %1406 = vmatpush1.msra.mxu0 %v1371
        %1407 = vmatprep.subr.mxu0 0.0
        %1408 = vmatpush1.msra.mxu0 %v1370
        %1409 = vmatprep.subr.mxu0 0.0
        %1410 = vmatpush2.msra.mxu0 0.0
        %1411 = vmatprep.subr.mxu0 0.0
        %1412 = vmatpush2.msra.mxu0 0.0
        %1413 = vmatprep.subr.mxu0 0.0
        %1414 = vmatpush2.msra.mxu0 0.0
        %1415 = vmatprep.subr.mxu0 0.0
        %1416 = vmatpush2.msra.mxu0 0.0
        %1417 = vmatprep.subr.mxu0 0.0
        %1418 = vmatpush2.msra.mxu0 0.0
        %1419 = vmatprep.subr.mxu0 0.0
        %1420 = vmatpush2.msra.mxu0 0.0
        %1421 = vmatprep.subr.mxu0 0.0
        %1422 = vmatpush2.msra.mxu0 0.0
        %1423 = vmatprep.subr.mxu0 0.0
        %1424 = vmatpush2.msra.mxu0 0.0
        %1425 = vmatprep.subr.mxu0 0.0
        %1426 = vmatpush2.msra.mxu0 0.0
        %1427 = vmatprep.subr.mxu0 0.0
        %1428 = vmatpush2.msra.mxu0 0.0
        %1429 = vmatprep.subr.mxu0 0.0
        %1430 = vmatpush2.msra.mxu0 0.0
        %1431 = vmatprep.subr.mxu0 0.0
        %1432 = vmatpush2.msra.mxu0 0.0
        %1433 = vmatprep.subr.mxu0 0.0
        %1434 = vmatpush2.msra.mxu0 0.0
        %1435 = vmatprep.subr.mxu0 0.0
        %1436 = vmatpush2.msra.mxu0 0.0
        %1437 = vmatprep.subr.mxu0 0.0
        %1438 = vmatpush2.msra.mxu0 0.0
        %1439 = vmatprep.subr.mxu0 0.0
        %1440 = vmatpush2.msra.mxu0 0.0
        %1441 = vmatprep.mubr.f32.mxu0 0.0
        %1442 = vmatmul.mubr.f32.gmra.mxu0 %v1375
        %v1443 = vpop.f32.mrf.mxu0
        %v1444 = vadd.f32 0.0, %v1443
        %v1445 = vpop.f32.mrf.mxu0
        %1446 = vdwg.mxu0
        %v1447 = vadd.f32 %v1195, %v1444
        %1448 = vst [vmem:[%s428] sm:$0xff] %v1447
        %p1449 = scmp.lt.s32.totalorder %s18, 1
        %s1450 = scalar_select %p1449, %s18, 1
        %s1451 = smul.addr %s1450, 8
        %s1452 = scalar_lea.vmem %s7, %s1451
        // Predicated region
        $region125: #{decoder_block_forward.10} parent=115 // pred_check
          %p1453 = pneg %p208
        $region126: #{decoder_block_forward.10} parent=115 // pred_check_branch
          %1455 = sbr.rel (%p1453) target = $region128
        $region127: #{decoder_block_forward.10} parent=115 // pred_region
          _
        $region128: #{decoder_block_forward.10} parent=115 // pred_fallthru
          _
      $region116: #{decoder_block_forward.10} parent=5 // pred_fallthru
        _
      %p1456 = scmp.le.s32.totalorder 2, %s13
      // Predicated region
      $region129: #{decoder_block_forward.10} parent=5 // pred_check
        %p1457 = pneg %p1456
      $region130: #{decoder_block_forward.10} parent=5 // pred_check_branch
        %1459 = sbr.rel (%p1457) target = $region132
      $region131: #{decoder_block_forward.10} parent=5 // pred_region
        %s1460 = ssub.s32 %s13, 2
        // Predicated region
        $region133: #{decoder_block_forward.10} parent=131 // pred_check
          %p1461 = pneg %p214
        $region134: #{decoder_block_forward.10} parent=131 // pred_check_branch
          %1463 = sbr.rel (%p1461) target = $region136
        $region135: #{decoder_block_forward.10} parent=131 // pred_region
          %p1464 = scmp.lt.s32.totalorder %s19, 1
          %s1465 = scalar_select %p1464, %s19, 1
          %s1466 = smul.addr %s1465, 8
          %s1467 = scalar_lea.vmem %s7, %s1466
        $region136: #{decoder_block_forward.10} parent=131 // pred_fallthru
          _
      $region132: #{decoder_block_forward.10} parent=5 // pred_fallthru
        _
    $region6: #{decoder_block_forward.10} parent=1 // loop_footer
      %s17 = sadd.s32 1, %s13
    $region7: #{decoder_block_forward.10} parent=1 // loop_footer_branch
      %12 = sbr.rel target = $region3
    $region8: #{decoder_block_forward.10} parent=1 // loop_exit
      _

</llo_original>
